<compile_context>
chip_gen: v5e
topology: v5e:2x2
jax: 0.10.0
libtpu: 0.0.40
codegen_flags: <defaults>
</compile_context>

<pallas_src>
import math

import jax
import jax.numpy as jnp
from jax import lax
from jax.experimental import pallas as pl
from jax.experimental.pallas import tpu as pltpu


MATMUL_DTYPE = jnp.bfloat16      # MXU-native on v6e/v7x; flip to float32 if desired.

# Row-tile targets (multiples of 8).  Sized far under scoped-VMEM defaults on all
# of v5e / v6e / v7x even with double buffering.
_CONV1_ROW_TILE = 1152           # 8 images * 144 pooled pixels
_CONV2_ROW_TILE = 1600           # 16 images * 100 conv2 output pixels
_MLP_ROW_TILE = 256              # batch rows per MLP block


# ---------------------------------------------------------------------------
# Pallas kernels
# ---------------------------------------------------------------------------
def conv1_relu_pool_kernel(p_ref, w_ref, b_ref, o_ref):
    """conv1 (im2col matmul vs block-diag weight) + bias + ReLU + 2x2/2 max-pool.

    p_ref: (TM, 100)  -- 4 pool-window members packed along lanes (25 each)
    w_ref: (100, 40)  -- block-diagonal conv1 weight (4 copies of (25,10))
    b_ref: (1, 40)    -- conv1 bias tiled 4x
    o_ref: (TM, 10)   -- pooled activations (ReLU/max commute => torch semantics)
    """
    y = jnp.dot(p_ref[...], w_ref[...], preferred_element_type=jnp.float32)
    y = jnp.maximum(y + b_ref[...], 0.0)
    pooled = jnp.maximum(jnp.maximum(y[:, 0:10], y[:, 10:20]),
                         jnp.maximum(y[:, 20:30], y[:, 30:40]))
    o_ref[...] = pooled.astype(o_ref.dtype)


def conv2_relu_kernel(p_ref, w_ref, b_ref, o_ref):
    """conv2 (im2col matmul) + bias + ReLU.  p:(TM,90) w:(90,20) b:(1,20) o:(TM,20)."""
    y = jnp.dot(p_ref[...], w_ref[...], preferred_element_type=jnp.float32)
    o_ref[...] = jnp.maximum(y + b_ref[...], 0.0).astype(o_ref.dtype)


def mlp_logsoftmax_kernel(x_ref, w1_ref, b1_ref, w2_ref, b2_ref, o_ref):
    """fc1 + ReLU + fc2 + row-wise log_softmax, fused.

    x:(TB,2000) w1:(2000,500) b1:(1,500) w2:(500,10) b2:(1,10) o:(TB,10)
    """
    h = jnp.dot(x_ref[...], w1_ref[...], preferred_element_type=jnp.float32)
    h = jnp.maximum(h + b1_ref[...], 0.0)
    z = jnp.dot(h.astype(w2_ref.dtype), w2_ref[...],
                preferred_element_type=jnp.float32) + b2_ref[...]
    m = jnp.max(z, axis=-1, keepdims=True)
    lse = m + jnp.log(jnp.sum(jnp.exp(z - m), axis=-1, keepdims=True))
    o_ref[...] = (z - lse).astype(o_ref.dtype)


_PARALLEL = pltpu.CompilerParams(dimension_semantics=("parallel",))


# ---------------------------------------------------------------------------
# JAX glue: im2col patch extraction (pure layout plumbing)
# ---------------------------------------------------------------------------
def _im2col(x_nhwc, kh, kw):
    """(N,H,W,C) -> (N,OH,OW,kh*kw*C); feature index = (i*kw + j)*C + c."""
    n, h, w, c = x_nhwc.shape
    oh, ow = h - kh + 1, w - kw + 1
    cols = []
    for i in range(kh):
        for j in range(kw):
            cols.append(x_nhwc[:, i:i + oh, j:j + ow, :])
    return jnp.concatenate(cols, axis=-1)


# ---------------------------------------------------------------------------
# One-time parameter preparation (matmul layouts, bf16 cast, flatten fold)
# ---------------------------------------------------------------------------
def prepare_params(p, dtype=MATMUL_DTYPE):
    # conv1 weight as (kh*kw, cout), then block-diagonal over the 4 pool members.
    w1m = p["conv1_w"].transpose(2, 3, 1, 0).reshape(25, 10)
    w1bd = jnp.einsum("ab,fc->afbc", jnp.eye(4, dtype=w1m.dtype), w1m).reshape(100, 40)
    # fc1 weight with rows permuted so NHWC flatten (p*20 + c) matches torch's
    # NCHW flatten (c*100 + p):   fw1[p*20+c, o] = fc1_w[o, c*100+p]
    fw1 = (p["fc1_w"].reshape(500, 20, 100)   # [o, c, p]
                     .transpose(2, 1, 0)      # [p, c, o]
                     .reshape(2000, 500))
    return {
        "w1bd": w1bd.astype(dtype),
        "b1": jnp.tile(p["conv1_b"].reshape(1, 10), (1, 4)).astype(jnp.float32),
        "w2m": p["conv2_w"].transpose(2, 3, 1, 0).reshape(90, 20).astype(dtype),
        "b2": p["conv2_b"].reshape(1, 20).astype(jnp.float32),
        "fw1": fw1.astype(dtype),
        "fb1": p["fc1_b"].reshape(1, 500).astype(jnp.float32),
        "fw2": p["fc2_w"].T.astype(dtype),
        "fb2": p["fc2_b"].reshape(1, 10).astype(jnp.float32),
    }


# ---------------------------------------------------------------------------
# Forward pass
# ---------------------------------------------------------------------------
def digit_forward(x, prep):
    """x: (N, 1, 28, 28) float32 (NCHW, as in PyTorch). Returns (N, 10) log-probs."""
    n = x.shape[0]
    dt = prep["w1bd"].dtype
    x_nhwc = jnp.transpose(x, (0, 2, 3, 1)).astype(dt)            # (N,28,28,1)

    # ---- conv1 (5x5, 1->10) + ReLU + maxpool 2x2, pool members packed on lanes --
    cols = _im2col(x_nhwc, 5, 5)                                  # (N,24,24,25)
    p1 = (cols.reshape(n, 12, 2, 12, 2, 25)
              .transpose(0, 1, 3, 2, 4, 5)                        # (N,ph,pw,a,b,f)
              .reshape(n * 144, 100))
    m1 = n * 144
    tm1 = m1 if m1 <= _CONV1_ROW_TILE else _CONV1_ROW_TILE
    pooled = pl.pallas_call(
        conv1_relu_pool_kernel,
        out_shape=jax.ShapeDtypeStruct((m1, 10), dt),
        grid=(pl.cdiv(m1, tm1),),
        in_specs=[
            pl.BlockSpec((tm1, 100), lambda i: (i, 0)),
            pl.BlockSpec((100, 40), lambda i: (0, 0)),   # weight resident in VMEM
            pl.BlockSpec((1, 40), lambda i: (0, 0)),     # bias resident
        ],
        out_specs=pl.BlockSpec((tm1, 10), lambda i: (i, 0)),
        compiler_params=_PARALLEL,
    )(p1, prep["w1bd"], prep["b1"])

    # ---- conv2 (3x3, 10->20) + ReLU --------------------------------------------
    pooled = pooled.reshape(n, 12, 12, 10)                        # NHWC, free reshape
    p2 = _im2col(pooled, 3, 3).reshape(n * 100, 90)               # (N*100, 90)
    m2 = n * 100
    tm2 = m2 if m2 <= _CONV2_ROW_TILE else _CONV2_ROW_TILE
    c2 = pl.pallas_call(
        conv2_relu_kernel,
        out_shape=jax.ShapeDtypeStruct((m2, 20), dt),
        grid=(pl.cdiv(m2, tm2),),
        in_specs=[
            pl.BlockSpec((tm2, 90), lambda i: (i, 0)),
            pl.BlockSpec((90, 20), lambda i: (0, 0)),
            pl.BlockSpec((1, 20), lambda i: (0, 0)),
        ],
        out_specs=pl.BlockSpec((tm2, 20), lambda i: (i, 0)),
        compiler_params=_PARALLEL,
    )(p2, prep["w2m"], prep["b2"])

    # ---- fc1 + ReLU + fc2 + log_softmax -----------------------------------------
    # NHWC flatten is a contiguous (free) reshape; NCHW permutation lives in fw1.
    feat = c2.reshape(n, 2000)
    tb = n if n <= _MLP_ROW_TILE else _MLP_ROW_TILE
    out = pl.pallas_call(
        mlp_logsoftmax_kernel,
        out_shape=jax.ShapeDtypeStruct((n, 10), jnp.float32),
        grid=(pl.cdiv(n, tb),),
        in_specs=[
            pl.BlockSpec((tb, 2000), lambda i: (i, 0)),
            pl.BlockSpec((2000, 500), lambda i: (0, 0)),   # fc1 weight resident
            pl.BlockSpec((1, 500), lambda i: (0, 0)),
            pl.BlockSpec((500, 10), lambda i: (0, 0)),
            pl.BlockSpec((1, 10), lambda i: (0, 0)),
        ],
        out_specs=pl.BlockSpec((tb, 10), lambda i: (i, 0)),
        compiler_params=_PARALLEL,
    )(feat, prep["fw1"], prep["fb1"], prep["fw2"], prep["fb2"])
    return out


# ---------------------------------------------------------------------------
# Deterministic parameter init (PyTorch-style U(-1/sqrt(fan_in), 1/sqrt(fan_in)))
# ---------------------------------------------------------------------------
def init_params(key):
    ks = jax.random.split(key, 8)

    def u(k, shape, fan_in):
        bound = 1.0 / math.sqrt(fan_in)
        return jax.random.uniform(k, shape, jnp.float32, -bound, bound)

    return {
        "conv1_w": u(ks[0], (10, 1, 5, 5), 1 * 5 * 5),
        "conv1_b": u(ks[1], (10,), 1 * 5 * 5),
        "conv2_w": u(ks[2], (20, 10, 3, 3), 10 * 3 * 3),
        "conv2_b": u(ks[3], (20,), 10 * 3 * 3),
        "fc1_w": u(ks[4], (500, 2000), 2000),
        "fc1_b": u(ks[5], (500,), 2000),
        "fc2_w": u(ks[6], (10, 500), 500),
        "fc2_b": u(ks[7], (10,), 500),
    }


# ---------------------------------------------------------------------------
# Pure-JAX f32 reference (mirrors the PyTorch forward exactly) for validation
# ---------------------------------------------------------------------------
def reference_forward(x, p):
    dn = ("NCHW", "OIHW", "NCHW")
    y = lax.conv_general_dilated(x, p["conv1_w"], (1, 1), "VALID", dimension_numbers=dn)
    y = y + p["conv1_b"][None, :, None, None]
    y = jnp.maximum(y, 0.0)
    y = lax.reduce_window(y, -jnp.inf, lax.max, (1, 1, 2, 2), (1, 1, 2, 2), "VALID")
    y = lax.conv_general_dilated(y, p["conv2_w"], (1, 1), "VALID", dimension_numbers=dn)
    y = y + p["conv2_b"][None, :, None, None]
    y = jnp.maximum(y, 0.0)
    y = y.reshape(x.shape[0], -1)
    y = jnp.maximum(y @ p["fc1_w"].T + p["fc1_b"], 0.0)
    y = y @ p["fc2_w"].T + p["fc2_b"]
    return jax.nn.log_softmax(y, axis=1)


if __name__ == "__main__":
    key = jax.random.PRNGKey(0)
    k_param, k_x = jax.random.split(key)
    params = init_params(k_param)
    prep = prepare_params(params)            # one-time weight layout / bf16 prep

    # MNIST-shaped input is required by fc1 (20*10*10); keep batch small for the demo.
    x = jax.random.normal(k_x, (2, 1, 28, 28), jnp.float32)

    fwd = jax.jit(digit_forward)
    out = jax.block_until_ready(fwd(x, prep))
    ref = jax.block_until_ready(reference_forward(x, params))

    assert out.shape == (2, 10) and out.dtype == jnp.float32
    # log_softmax rows must sum to 1 in prob space
    assert bool(jnp.allclose(jnp.sum(jnp.exp(out), axis=1), 1.0, atol=1e-3))
    # bf16 matmul operands (f32 accumulation): tolerance loosened slightly vs f32 ref.
    if not bool(jnp.allclose(out, ref, atol=2e-2, rtol=2e-2)):
        max_err = float(jnp.max(jnp.abs(out - ref)))
        raise AssertionError(f"Pallas output mismatch vs reference (max abs err={max_err})")

    print("KERNEL_OK")
</pallas_src>

<mosaic_0001>
module attributes {stable_mosaic.version = 11 : i64} {
  func.func @conv1_relu_pool_kernel(%arg0: i32, %arg1: memref<288x100xbf16, #tpu.memory_space<vmem>>, %arg2: memref<100x40xbf16, #tpu.memory_space<vmem>>, %arg3: memref<1x40xf32, #tpu.memory_space<vmem>>, %arg4: memref<288x10xbf16, #tpu.memory_space<vmem>>) attributes {dimension_semantics = [#tpu.dimension_semantics<parallel>], iteration_bounds = array<i64: 1>, scalar_prefetch = 0 : i64, scratch_operands = 0 : i64, tpu.core_type = #tpu.core_type<tc>, window_params = [{transform_indices = @transform_0, window_bounds = array<i64: 288, 100>}, {pipeline_mode = #tpu.pipeline_mode<synchronous>, transform_indices = @transform_1, window_bounds = array<i64: 100, 40>}, {pipeline_mode = #tpu.pipeline_mode<synchronous>, transform_indices = @transform_2, window_bounds = array<i64: 1, 40>}, {transform_indices = @transform_3, window_bounds = array<i64: 288, 10>}]} {
    %c0 = arith.constant 0 : index
    %c0_0 = arith.constant 0 : index
    %0 = vector.load %arg1[%c0, %c0_0] : memref<288x100xbf16, #tpu.memory_space<vmem>>, vector<288x100xbf16>
    %c0_1 = arith.constant 0 : index
    %c0_2 = arith.constant 0 : index
    %1 = vector.load %arg2[%c0_1, %c0_2] : memref<100x40xbf16, #tpu.memory_space<vmem>>, vector<100x40xbf16>
    %cst = arith.constant dense<0.000000e+00> : vector<288x40xf32>
    %2 = tpu.matmul %0, %1, %cst {dimension_numbers = #tpu.dot_dimension_numbers<[1], [0], [0], [1], [0, 0, 1, 1], [], []>} : vector<288x100xbf16>, vector<100x40xbf16>, vector<288x40xf32> -> vector<288x40xf32>
    %c0_3 = arith.constant 0 : index
    %c0_4 = arith.constant 0 : index
    %3 = vector.load %arg3[%c0_3, %c0_4] : memref<1x40xf32, #tpu.memory_space<vmem>>, vector<1x40xf32>
    %4 = vector.broadcast %3 : vector<1x40xf32> to vector<288x40xf32>
    %5 = arith.addf %2, %4 : vector<288x40xf32>
    %cst_5 = arith.constant 0.000000e+00 : f32
    %6 = vector.broadcast %cst_5 : f32 to vector<288x40xf32>
    %7 = arith.maximumf %5, %6 : vector<288x40xf32>
    %8 = vector.extract_strided_slice %7 {offsets = [0, 0], sizes = [288, 10], strides = [1, 1]} : vector<288x40xf32> to vector<288x10xf32>
    %9 = vector.extract_strided_slice %7 {offsets = [0, 10], sizes = [288, 10], strides = [1, 1]} : vector<288x40xf32> to vector<288x10xf32>
    %10 = arith.maximumf %8, %9 : vector<288x10xf32>
    %11 = vector.extract_strided_slice %7 {offsets = [0, 20], sizes = [288, 10], strides = [1, 1]} : vector<288x40xf32> to vector<288x10xf32>
    %12 = vector.extract_strided_slice %7 {offsets = [0, 30], sizes = [288, 10], strides = [1, 1]} : vector<288x40xf32> to vector<288x10xf32>
    %13 = arith.maximumf %11, %12 : vector<288x10xf32>
    %14 = arith.maximumf %10, %13 : vector<288x10xf32>
    %15 = arith.truncf %14 : vector<288x10xf32> to vector<288x10xbf16>
    %c0_6 = arith.constant 0 : index
    %c0_7 = arith.constant 0 : index
    %16 = vector.load %arg4[%c0_6, %c0_7] : memref<288x10xbf16, #tpu.memory_space<vmem>>, vector<288x10xbf16>
    tpu.vector_store %arg4[%c0_6, %c0_7], %15 {strides = array<i32>} : memref<288x10xbf16, #tpu.memory_space<vmem>>, vector<288x10xbf16>,
    return
  }
  func.func @transform_0(%arg0: i32) -> (i32, i32) {
    %c0_i32 = arith.constant 0 : i32
    %c0_i32_0 = arith.constant 0 : i32
    return %arg0, %c0_i32 : i32, i32
  }
  func.func @transform_1(%arg0: i32) -> (i32, i32) {
    %c0_i32 = arith.constant 0 : i32
    %c0_i32_0 = arith.constant 0 : i32
    %c0_i32_1 = arith.constant 0 : i32
    return %c0_i32, %c0_i32_0 : i32, i32
  }
  func.func @transform_2(%arg0: i32) -> (i32, i32) {
    %c0_i32 = arith.constant 0 : i32
    %c0_i32_0 = arith.constant 0 : i32
    %c0_i32_1 = arith.constant 0 : i32
    return %c0_i32, %c0_i32_0 : i32, i32
  }
  func.func @transform_3(%arg0: i32) -> (i32, i32) {
    %c0_i32 = arith.constant 0 : i32
    %c0_i32_0 = arith.constant 0 : i32
    return %arg0, %c0_i32 : i32, i32
  }
}

module attributes {stable_mosaic.version = 11 : i64} {
  func.func @conv2_relu_kernel(%arg0: i32, %arg1: memref<200x90xbf16, #tpu.memory_space<vmem>>, %arg2: memref<90x20xbf16, #tpu.memory_space<vmem>>, %arg3: memref<1x20xf32, #tpu.memory_space<vmem>>, %arg4: memref<200x20xbf16, #tpu.memory_space<vmem>>) attributes {dimension_semantics = [#tpu.dimension_semantics<parallel>], iteration_bounds = array<i64: 1>, scalar_prefetch = 0 : i64, scratch_operands = 0 : i64, tpu.core_type = #tpu.core_type<tc>, window_params = [{transform_indices = @transform_0, window_bounds = array<i64: 200, 90>}, {pipeline_mode = #tpu.pipeline_mode<synchronous>, transform_indices = @transform_1, window_bounds = array<i64: 90, 20>}, {pipeline_mode = #tpu.pipeline_mode<synchronous>, transform_indices = @transform_2, window_bounds = array<i64: 1, 20>}, {transform_indices = @transform_3, window_bounds = array<i64: 200, 20>}]} {
    %c0 = arith.constant 0 : index
    %c0_0 = arith.constant 0 : index
    %0 = vector.load %arg1[%c0, %c0_0] : memref<200x90xbf16, #tpu.memory_space<vmem>>, vector<200x90xbf16>
    %c0_1 = arith.constant 0 : index
    %c0_2 = arith.constant 0 : index
    %1 = vector.load %arg2[%c0_1, %c0_2] : memref<90x20xbf16, #tpu.memory_space<vmem>>, vector<90x20xbf16>
    %cst = arith.constant dense<0.000000e+00> : vector<200x20xf32>
    %2 = tpu.matmul %0, %1, %cst {dimension_numbers = #tpu.dot_dimension_numbers<[1], [0], [0], [1], [0, 0, 1, 1], [], []>} : vector<200x90xbf16>, vector<90x20xbf16>, vector<200x20xf32> -> vector<200x20xf32>
    %c0_3 = arith.constant 0 : index
    %c0_4 = arith.constant 0 : index
    %3 = vector.load %arg3[%c0_3, %c0_4] : memref<1x20xf32, #tpu.memory_space<vmem>>, vector<1x20xf32>
    %4 = vector.broadcast %3 : vector<1x20xf32> to vector<200x20xf32>
    %5 = arith.addf %2, %4 : vector<200x20xf32>
    %cst_5 = arith.constant 0.000000e+00 : f32
    %6 = vector.broadcast %cst_5 : f32 to vector<200x20xf32>
    %7 = arith.maximumf %5, %6 : vector<200x20xf32>
    %8 = arith.truncf %7 : vector<200x20xf32> to vector<200x20xbf16>
    %c0_6 = arith.constant 0 : index
    %c0_7 = arith.constant 0 : index
    %9 = vector.load %arg4[%c0_6, %c0_7] : memref<200x20xbf16, #tpu.memory_space<vmem>>, vector<200x20xbf16>
    tpu.vector_store %arg4[%c0_6, %c0_7], %8 {strides = array<i32>} : memref<200x20xbf16, #tpu.memory_space<vmem>>, vector<200x20xbf16>,
    return
  }
  func.func @transform_0(%arg0: i32) -> (i32, i32) {
    %c0_i32 = arith.constant 0 : i32
    %c0_i32_0 = arith.constant 0 : i32
    return %arg0, %c0_i32 : i32, i32
  }
  func.func @transform_1(%arg0: i32) -> (i32, i32) {
    %c0_i32 = arith.constant 0 : i32
    %c0_i32_0 = arith.constant 0 : i32
    %c0_i32_1 = arith.constant 0 : i32
    return %c0_i32, %c0_i32_0 : i32, i32
  }
  func.func @transform_2(%arg0: i32) -> (i32, i32) {
    %c0_i32 = arith.constant 0 : i32
    %c0_i32_0 = arith.constant 0 : i32
    %c0_i32_1 = arith.constant 0 : i32
    return %c0_i32, %c0_i32_0 : i32, i32
  }
  func.func @transform_3(%arg0: i32) -> (i32, i32) {
    %c0_i32 = arith.constant 0 : i32
    %c0_i32_0 = arith.constant 0 : i32
    return %arg0, %c0_i32 : i32, i32
  }
}

module attributes {stable_mosaic.version = 11 : i64} {
  func.func @mlp_logsoftmax_kernel(%arg0: i32, %arg1: memref<2x2000xbf16, #tpu.memory_space<vmem>>, %arg2: memref<2000x500xbf16, #tpu.memory_space<vmem>>, %arg3: memref<1x500xf32, #tpu.memory_space<vmem>>, %arg4: memref<500x10xbf16, #tpu.memory_space<vmem>>, %arg5: memref<1x10xf32, #tpu.memory_space<vmem>>, %arg6: memref<2x10xf32, #tpu.memory_space<vmem>>) attributes {dimension_semantics = [#tpu.dimension_semantics<parallel>], iteration_bounds = array<i64: 1>, scalar_prefetch = 0 : i64, scratch_operands = 0 : i64, tpu.core_type = #tpu.core_type<tc>, window_params = [{transform_indices = @transform_0, window_bounds = array<i64: 2, 2000>}, {pipeline_mode = #tpu.pipeline_mode<synchronous>, transform_indices = @transform_1, window_bounds = array<i64: 2000, 500>}, {pipeline_mode = #tpu.pipeline_mode<synchronous>, transform_indices = @transform_2, window_bounds = array<i64: 1, 500>}, {pipeline_mode = #tpu.pipeline_mode<synchronous>, transform_indices = @transform_3, window_bounds = array<i64: 500, 10>}, {pipeline_mode = #tpu.pipeline_mode<synchronous>, transform_indices = @transform_4, window_bounds = array<i64: 1, 10>}, {transform_indices = @transform_5, window_bounds = array<i64: 2, 10>}]} {
    %c0 = arith.constant 0 : index
    %c0_0 = arith.constant 0 : index
    %0 = vector.load %arg1[%c0, %c0_0] : memref<2x2000xbf16, #tpu.memory_space<vmem>>, vector<2x2000xbf16>
    %c0_1 = arith.constant 0 : index
    %c0_2 = arith.constant 0 : index
    %1 = vector.load %arg2[%c0_1, %c0_2] : memref<2000x500xbf16, #tpu.memory_space<vmem>>, vector<2000x500xbf16>
    %cst = arith.constant dense<0.000000e+00> : vector<2x500xf32>
    %2 = tpu.matmul %0, %1, %cst {dimension_numbers = #tpu.dot_dimension_numbers<[1], [0], [0], [1], [0, 0, 1, 1], [], []>} : vector<2x2000xbf16>, vector<2000x500xbf16>, vector<2x500xf32> -> vector<2x500xf32>
    %c0_3 = arith.constant 0 : index
    %c0_4 = arith.constant 0 : index
    %3 = vector.load %arg3[%c0_3, %c0_4] : memref<1x500xf32, #tpu.memory_space<vmem>>, vector<1x500xf32>
    %4 = vector.broadcast %3 : vector<1x500xf32> to vector<2x500xf32>
    %5 = arith.addf %2, %4 : vector<2x500xf32>
    %cst_5 = arith.constant 0.000000e+00 : f32
    %6 = vector.broadcast %cst_5 : f32 to vector<2x500xf32>
    %7 = arith.maximumf %5, %6 : vector<2x500xf32>
    %8 = arith.truncf %7 : vector<2x500xf32> to vector<2x500xbf16>
    %c0_6 = arith.constant 0 : index
    %c0_7 = arith.constant 0 : index
    %9 = vector.load %arg4[%c0_6, %c0_7] : memref<500x10xbf16, #tpu.memory_space<vmem>>, vector<500x10xbf16>
    %cst_8 = arith.constant dense<0.000000e+00> : vector<2x10xf32>
    %10 = tpu.matmul %8, %9, %cst_8 {dimension_numbers = #tpu.dot_dimension_numbers<[1], [0], [0], [1], [0, 0, 1, 1], [], []>} : vector<2x500xbf16>, vector<500x10xbf16>, vector<2x10xf32> -> vector<2x10xf32>
    %c0_9 = arith.constant 0 : index
    %c0_10 = arith.constant 0 : index
    %11 = vector.load %arg5[%c0_9, %c0_10] : memref<1x10xf32, #tpu.memory_space<vmem>>, vector<1x10xf32>
    %12 = vector.broadcast %11 : vector<1x10xf32> to vector<2x10xf32>
    %13 = arith.addf %10, %12 : vector<2x10xf32>
    %cst_11 = arith.constant dense<0xFF800000> : vector<2xf32>
    %14 = vector.multi_reduction <maximumf>, %13, %cst_11 [1] : vector<2x10xf32> to vector<2xf32>
    %15 = vector.shape_cast %14 : vector<2xf32> to vector<2x1xf32>
    %16 = vector.broadcast %15 : vector<2x1xf32> to vector<2x10xf32>
    %17 = arith.subf %13, %16 : vector<2x10xf32>
    %18 = math.exp %17 : vector<2x10xf32>
    %cst_12 = arith.constant dense<0.000000e+00> : vector<2xf32>
    %19 = vector.multi_reduction <add>, %18, %cst_12 [1] : vector<2x10xf32> to vector<2xf32>
    %20 = vector.shape_cast %19 : vector<2xf32> to vector<2x1xf32>
    %21 = math.log %20 : vector<2x1xf32>
    %22 = arith.addf %15, %21 : vector<2x1xf32>
    %23 = vector.broadcast %22 : vector<2x1xf32> to vector<2x10xf32>
    %24 = arith.subf %13, %23 : vector<2x10xf32>
    %c0_13 = arith.constant 0 : index
    %c0_14 = arith.constant 0 : index
    %25 = vector.load %arg6[%c0_13, %c0_14] : memref<2x10xf32, #tpu.memory_space<vmem>>, vector<2x10xf32>
    tpu.vector_store %arg6[%c0_13, %c0_14], %24 {strides = array<i32>} : memref<2x10xf32, #tpu.memory_space<vmem>>, vector<2x10xf32>,
    return
  }
  func.func @transform_0(%arg0: i32) -> (i32, i32) {
    %c0_i32 = arith.constant 0 : i32
    %c0_i32_0 = arith.constant 0 : i32
    return %arg0, %c0_i32 : i32, i32
  }
  func.func @transform_1(%arg0: i32) -> (i32, i32) {
    %c0_i32 = arith.constant 0 : i32
    %c0_i32_0 = arith.constant 0 : i32
    %c0_i32_1 = arith.constant 0 : i32
    return %c0_i32, %c0_i32_0 : i32, i32
  }
  func.func @transform_2(%arg0: i32) -> (i32, i32) {
    %c0_i32 = arith.constant 0 : i32
    %c0_i32_0 = arith.constant 0 : i32
    %c0_i32_1 = arith.constant 0 : i32
    return %c0_i32, %c0_i32_0 : i32, i32
  }
  func.func @transform_3(%arg0: i32) -> (i32, i32) {
    %c0_i32 = arith.constant 0 : i32
    %c0_i32_0 = arith.constant 0 : i32
    %c0_i32_1 = arith.constant 0 : i32
    return %c0_i32, %c0_i32_0 : i32, i32
  }
  func.func @transform_4(%arg0: i32) -> (i32, i32) {
    %c0_i32 = arith.constant 0 : i32
    %c0_i32_0 = arith.constant 0 : i32
    %c0_i32_1 = arith.constant 0 : i32
    return %c0_i32, %c0_i32_0 : i32, i32
  }
  func.func @transform_5(%arg0: i32) -> (i32, i32) {
    %c0_i32 = arith.constant 0 : i32
    %c0_i32_0 = arith.constant 0 : i32
    return %arg0, %c0_i32 : i32, i32
  }
}

</mosaic_0001>

<llo_original>
// kernel: digit_forward.3
$region0: #{digit_forward.3}
  #allocation0 [shape = 'u32[]', space=smem, size = 0x4, offset = 0x4, fixed_abs, tag = 'smem constant byte address 0x4 - core index']
  #allocation1 [shape = 'u32[72,128]{1,0:T(1,128)}', space=vmem, size = 0x9000, scoped, tag = 'internal scratch']
  %s0 = inlined_call_operand.vmem [shape: bf16[288,100], index: 0, kind: input, shape index: {}]
  %s1 = inlined_call_operand.vmem [shape: bf16[100,40], index: 1, kind: input, shape index: {}]
  %s2 = inlined_call_operand.vmem [shape: f32[1,40], index: 2, kind: input, shape index: {}]
  %s3 = inlined_call_operand.vmem [shape: bf16[288,10], index: 3, kind: output, shape index: {}]
  %s4 = sld [smem:[#allocation0]]
  $region22: #{digit_forward.3} parent=0
    _
  %s6 = ssub.s32 1, %s4
  %s7 = scalar_select 0, %s6, %s4
  // Predicated region
  $region2: #{digit_forward.3} parent=0 // pred_check
    _
  $region3: #{digit_forward.3} parent=0 // pred_check_branch
    %9 = sbr.rel (0) target = $region5
  $region4: #{digit_forward.3} parent=0 // pred_region
    _
  $region5: #{digit_forward.3} parent=0 // pred_fallthru
    _
  // Predicated region
  $region6: #{digit_forward.3} parent=0 // pred_check
    _
  $region7: #{digit_forward.3} parent=0 // pred_check_branch
    %11 = sbr.rel (0) target = $region9
  $region8: #{digit_forward.3} parent=0 // pred_region
    _
  $region9: #{digit_forward.3} parent=0 // pred_fallthru
    _
  // Predicated region
  $region10: #{digit_forward.3} parent=0 // pred_check
    _
  $region11: #{digit_forward.3} parent=0 // pred_check_branch
    %13 = sbr.rel (0) target = $region13
  $region12: #{digit_forward.3} parent=0 // pred_region
    _
  $region13: #{digit_forward.3} parent=0 // pred_fallthru
    _
  %v15 = vld [vmem:[%s0] sm:$0xf]
  %v16 = vld [vmem:[%s0 + $0x4] sm:$0xf]
  %v17 = vld [vmem:[%s0 + $0x8] sm:$0xf]
  %v18 = vld [vmem:[%s0 + $0xc] sm:$0xf]
  %v19 = vld [vmem:[%s0 + $0x10] sm:$0xf]
  %v20 = vld [vmem:[%s0 + $0x14] sm:$0xf]
  %v21 = vld [vmem:[%s0 + $0x18] sm:$0xf]
  %v22 = vld [vmem:[%s0 + $0x1c] sm:$0xf]
  %v23 = vld [vmem:[%s0 + $0x20] sm:$0xf]
  %v24 = vld [vmem:[%s0 + $0x24] sm:$0xf]
  %v25 = vld [vmem:[%s0 + $0x28] sm:$0xf]
  %v26 = vld [vmem:[%s0 + $0x2c] sm:$0xf]
  %v27 = vld [vmem:[%s0 + $0x30] sm:$0xf]
  %v28 = vld [vmem:[%s0 + $0x34] sm:$0xf]
  %v29 = vld [vmem:[%s0 + $0x38] sm:$0xf]
  %v30 = vld [vmem:[%s0 + $0x3c] sm:$0xf]
  %v31 = vld [vmem:[%s0 + $0x40] sm:$0xf]
  %v32 = vld [vmem:[%s0 + $0x44] sm:$0xf]
  %v33 = vld [vmem:[%s0 + $0x48] sm:$0xf]
  %v34 = vld [vmem:[%s0 + $0x4c] sm:$0xf]
  %v35 = vld [vmem:[%s0 + $0x50] sm:$0xf]
  %v36 = vld [vmem:[%s0 + $0x54] sm:$0xf]
  %v37 = vld [vmem:[%s0 + $0x58] sm:$0xf]
  %v38 = vld [vmem:[%s0 + $0x5c] sm:$0xf]
  %v39 = vld [vmem:[%s0 + $0x60] sm:$0xf]
  %v40 = vld [vmem:[%s0 + $0x64] sm:$0xf]
  %v41 = vld [vmem:[%s0 + $0x68] sm:$0xf]
  %v42 = vld [vmem:[%s0 + $0x6c] sm:$0xf]
  %v43 = vld [vmem:[%s0 + $0x70] sm:$0xf]
  %v44 = vld [vmem:[%s0 + $0x74] sm:$0xf]
  %v45 = vld [vmem:[%s0 + $0x78] sm:$0xf]
  %v46 = vld [vmem:[%s0 + $0x7c] sm:$0xf]
  %v47 = vld [vmem:[%s0 + $0x80] sm:$0xf]
  %v48 = vld [vmem:[%s0 + $0x84] sm:$0xf]
  %v49 = vld [vmem:[%s0 + $0x88] sm:$0xf]
  %v50 = vld [vmem:[%s0 + $0x8c] sm:$0xf]
  %v51 = vld [vmem:[%s1] sm:$0xf]
  %v52 = vld [vmem:[%s1 + $0x4] sm:$0xf]
  %v53 = vld [vmem:[%s1 + $0x8] sm:$0xf]
  %v54 = vld [vmem:[%s1 + $0xc] sm:$0xf]
  %v55 = vld [vmem:[%s1 + $0x10] sm:$0xf]
  %v56 = vld [vmem:[%s1 + $0x14] sm:$0xf]
  %v57 = vld [vmem:[%s1 + $0x18] sm:$0xf]
  %v58 = vld [vmem:[%s1 + $0x1c] sm:$0xf]
  %v59 = vld [vmem:[%s1 + $0x20] sm:$0xf]
  %v60 = vld [vmem:[%s1 + $0x24] sm:$0xf]
  %v61 = vld [vmem:[%s1 + $0x28] sm:$0xf]
  %v62 = vld [vmem:[%s1 + $0x2c] sm:$0xf]
  %v63 = vld [vmem:[%s1 + $0x30] sm:$0x3]
  %v64 = vld [vmem:[%s2] sm:$0x1]
  %v66 = vperm.slane %v64, 0
  %v104 = vunpack.c.l.b16 %v15
  %v105 = vunpack.c.l.b16 %v16
  %v106 = vunpack.c.l.b16 %v17
  %v107 = vunpack.c.l.b16 %v18
  %v108 = vunpack.c.l.b16 %v19
  %v109 = vunpack.c.l.b16 %v20
  %v110 = vunpack.c.l.b16 %v21
  %v111 = vunpack.c.l.b16 %v22
  %v112 = vunpack.c.l.b16 %v23
  %v113 = vunpack.c.l.b16 %v24
  %v114 = vunpack.c.l.b16 %v25
  %v115 = vunpack.c.l.b16 %v26
  %v116 = vunpack.c.l.b16 %v27
  %v117 = vunpack.c.l.b16 %v28
  %v118 = vunpack.c.l.b16 %v29
  %v119 = vunpack.c.l.b16 %v30
  %v120 = vunpack.c.l.b16 %v31
  %v121 = vunpack.c.l.b16 %v32
  %v122 = vunpack.c.l.b16 %v33
  %v123 = vunpack.c.l.b16 %v34
  %v124 = vunpack.c.l.b16 %v35
  %v125 = vunpack.c.l.b16 %v36
  %v126 = vunpack.c.l.b16 %v37
  %v127 = vunpack.c.l.b16 %v38
  %v128 = vunpack.c.l.b16 %v39
  %v129 = vunpack.c.l.b16 %v40
  %v130 = vunpack.c.l.b16 %v41
  %v131 = vunpack.c.l.b16 %v42
  %v132 = vunpack.c.l.b16 %v43
  %v133 = vunpack.c.l.b16 %v44
  %v134 = vunpack.c.l.b16 %v45
  %v135 = vunpack.c.l.b16 %v46
  %v136 = vunpack.c.l.b16 %v47
  %v137 = vunpack.c.l.b16 %v48
  %v138 = vunpack.c.l.b16 %v49
  %v139 = vunpack.c.l.b16 %v50
  %v140 = vpack.c.b16 %v105, %v104
  %v141 = vpack.c.b16 %v107, %v106
  %v142 = vpack.c.b16 %v109, %v108
  %v143 = vpack.c.b16 %v111, %v110
  %v144 = vpack.c.b16 %v113, %v112
  %v145 = vpack.c.b16 %v115, %v114
  %v146 = vpack.c.b16 %v117, %v116
  %v147 = vpack.c.b16 %v119, %v118
  %v148 = vpack.c.b16 %v121, %v120
  %v149 = vpack.c.b16 %v123, %v122
  %v150 = vpack.c.b16 %v125, %v124
  %v151 = vpack.c.b16 %v127, %v126
  %v152 = vpack.c.b16 %v129, %v128
  %v153 = vpack.c.b16 %v131, %v130
  %v154 = vpack.c.b16 %v133, %v132
  %v155 = vpack.c.b16 %v135, %v134
  %v156 = vpack.c.b16 %v137, %v136
  %v157 = vpack.c.b16 %v139, %v138
  %v171 = vunpack.c.l.b16 %v51
  %v172 = vunpack.c.l.b16 %v52
  %v173 = vunpack.c.l.b16 %v53
  %v174 = vunpack.c.l.b16 %v54
  %v175 = vunpack.c.l.b16 %v55
  %v176 = vunpack.c.l.b16 %v56
  %v177 = vunpack.c.l.b16 %v57
  %v178 = vunpack.c.l.b16 %v58
  %v179 = vunpack.c.l.b16 %v59
  %v180 = vunpack.c.l.b16 %v60
  %v181 = vunpack.c.l.b16 %v61
  %v182 = vunpack.c.l.b16 %v62
  %v183 = vunpack.c.l.b16 %v63
  %v184 = vpack.c.b16 %v172, %v171
  %v185 = vpack.c.b16 %v174, %v173
  %v186 = vpack.c.b16 %v176, %v175
  %v187 = vpack.c.b16 %v178, %v177
  %v188 = vpack.c.b16 %v180, %v179
  %v189 = vpack.c.b16 %v182, %v181
  %v190 = vpack.c.b16 %v183, %v183
  %vm197 = vcmask 818176
  %v199 = vsel %vm197, %v140, 0
  %v202 = vsel %vm197, %v141, 0
  %v205 = vsel %vm197, %v142, 0
  %v208 = vsel %vm197, %v143, 0
  %v211 = vsel %vm197, %v144, 0
  %v214 = vsel %vm197, %v145, 0
  %v217 = vsel %vm197, %v146, 0
  %v220 = vsel %vm197, %v147, 0
  %v223 = vsel %vm197, %v148, 0
  %v226 = vsel %vm197, %v149, 0
  %v229 = vsel %vm197, %v150, 0
  %v232 = vsel %vm197, %v151, 0
  %v235 = vsel %vm197, %v152, 0
  %v238 = vsel %vm197, %v153, 0
  %v241 = vsel %vm197, %v154, 0
  %v244 = vsel %vm197, %v155, 0
  %v247 = vsel %vm197, %v156, 0
  %v250 = vsel %vm197, %v157, 0
  %vm252 = vcmask 1041408
  %v254 = vsel %vm252, %v190, 0
  %256 = vmatpush.bf16.msra.mxu0 0
  %257 = vmatpush.bf16.msra.mxu0 %v254
  %258 = vmatpush.bf16.msra.mxu0 %v189
  %259 = vmatpush.bf16.msra.mxu0 %v188
  %260 = vmatpush.bf16.msra.mxu0 %v187
  %261 = vmatpush.bf16.msra.mxu0 %v186
  %262 = vmatpush.bf16.msra.mxu0 %v185
  %263 = vmatpush.bf16.msra.mxu0 %v184
  %264 = vmatmul.bf16.gmra.mxu0 %v199
  %v265 = vpop.f32.mrf.mxu0
  %v266 = vadd.f32 %v66, %v265
  %v267 = vpop.f32.mrf.mxu0
  %v268 = vadd.f32 %v66, %v267
  %269 = vmatmul.bf16.gmra.mxu0 %v202
  %v270 = vpop.f32.mrf.mxu0
  %v271 = vadd.f32 %v66, %v270
  %v272 = vpop.f32.mrf.mxu0
  %v273 = vadd.f32 %v66, %v272
  %274 = vmatmul.bf16.gmra.mxu0 %v205
  %v275 = vpop.f32.mrf.mxu0
  %v276 = vadd.f32 %v66, %v275
  %v277 = vpop.f32.mrf.mxu0
  %v278 = vadd.f32 %v66, %v277
  %279 = vmatmul.bf16.gmra.mxu0 %v208
  %v280 = vpop.f32.mrf.mxu0
  %v281 = vadd.f32 %v66, %v280
  %v282 = vpop.f32.mrf.mxu0
  %v283 = vadd.f32 %v66, %v282
  %284 = vmatmul.bf16.gmra.mxu0 %v211
  %v285 = vpop.f32.mrf.mxu0
  %v286 = vadd.f32 %v66, %v285
  %v287 = vpop.f32.mrf.mxu0
  %v288 = vadd.f32 %v66, %v287
  %289 = vmatmul.bf16.gmra.mxu0 %v214
  %v290 = vpop.f32.mrf.mxu0
  %v291 = vadd.f32 %v66, %v290
  %v292 = vpop.f32.mrf.mxu0
  %v293 = vadd.f32 %v66, %v292
  %294 = vmatmul.bf16.gmra.mxu0 %v217
  %v295 = vpop.f32.mrf.mxu0
  %v296 = vadd.f32 %v66, %v295
  %v297 = vpop.f32.mrf.mxu0
  %v298 = vadd.f32 %v66, %v297
  %299 = vmatmul.bf16.gmra.mxu0 %v220
  %v300 = vpop.f32.mrf.mxu0
  %v301 = vadd.f32 %v66, %v300
  %v302 = vpop.f32.mrf.mxu0
  %v303 = vadd.f32 %v66, %v302
  %304 = vmatmul.bf16.gmra.mxu0 %v223
  %v305 = vpop.f32.mrf.mxu0
  %v306 = vadd.f32 %v66, %v305
  %v307 = vpop.f32.mrf.mxu0
  %v308 = vadd.f32 %v66, %v307
  %309 = vmatmul.bf16.gmra.mxu0 %v226
  %v310 = vpop.f32.mrf.mxu0
  %v311 = vadd.f32 %v66, %v310
  %v312 = vpop.f32.mrf.mxu0
  %v313 = vadd.f32 %v66, %v312
  %314 = vmatmul.bf16.gmra.mxu0 %v229
  %v315 = vpop.f32.mrf.mxu0
  %v316 = vadd.f32 %v66, %v315
  %v317 = vpop.f32.mrf.mxu0
  %v318 = vadd.f32 %v66, %v317
  %319 = vmatmul.bf16.gmra.mxu0 %v232
  %v320 = vpop.f32.mrf.mxu0
  %v321 = vadd.f32 %v66, %v320
  %v322 = vpop.f32.mrf.mxu0
  %v323 = vadd.f32 %v66, %v322
  %324 = vmatmul.bf16.gmra.mxu0 %v235
  %v325 = vpop.f32.mrf.mxu0
  %v326 = vadd.f32 %v66, %v325
  %v327 = vpop.f32.mrf.mxu0
  %v328 = vadd.f32 %v66, %v327
  %329 = vmatmul.bf16.gmra.mxu0 %v238
  %v330 = vpop.f32.mrf.mxu0
  %v331 = vadd.f32 %v66, %v330
  %v332 = vpop.f32.mrf.mxu0
  %v333 = vadd.f32 %v66, %v332
  %334 = vmatmul.bf16.gmra.mxu0 %v241
  %v335 = vpop.f32.mrf.mxu0
  %v336 = vadd.f32 %v66, %v335
  %v337 = vpop.f32.mrf.mxu0
  %v338 = vadd.f32 %v66, %v337
  %339 = vmatmul.bf16.gmra.mxu0 %v244
  %v340 = vpop.f32.mrf.mxu0
  %v341 = vadd.f32 %v66, %v340
  %v342 = vpop.f32.mrf.mxu0
  %v343 = vadd.f32 %v66, %v342
  %344 = vmatmul.bf16.gmra.mxu0 %v247
  %v345 = vpop.f32.mrf.mxu0
  %v346 = vadd.f32 %v66, %v345
  %v347 = vpop.f32.mrf.mxu0
  %v348 = vadd.f32 %v66, %v347
  %349 = vmatmul.bf16.gmra.mxu0 %v250
  %v350 = vpop.f32.mrf.mxu0
  %v351 = vadd.f32 %v66, %v350
  %v352 = vpop.f32.mrf.mxu0
  %v353 = vadd.f32 %v66, %v352
  %354 = vdwg.mxu0
  %v355 = vmax.f32 %v266, 0.0
  %v356 = vmax.f32 %v268, 0.0
  %v357 = vmax.f32 %v271, 0.0
  %v358 = vmax.f32 %v273, 0.0
  %v359 = vmax.f32 %v276, 0.0
  %v360 = vmax.f32 %v278, 0.0
  %v361 = vmax.f32 %v281, 0.0
  %v362 = vmax.f32 %v283, 0.0
  %v363 = vmax.f32 %v286, 0.0
  %v364 = vmax.f32 %v288, 0.0
  %v365 = vmax.f32 %v291, 0.0
  %v366 = vmax.f32 %v293, 0.0
  %v367 = vmax.f32 %v296, 0.0
  %v368 = vmax.f32 %v298, 0.0
  %v369 = vmax.f32 %v301, 0.0
  %v370 = vmax.f32 %v303, 0.0
  %v371 = vmax.f32 %v306, 0.0
  %v372 = vmax.f32 %v308, 0.0
  %v373 = vmax.f32 %v311, 0.0
  %v374 = vmax.f32 %v313, 0.0
  %v375 = vmax.f32 %v316, 0.0
  %v376 = vmax.f32 %v318, 0.0
  %v377 = vmax.f32 %v321, 0.0
  %v378 = vmax.f32 %v323, 0.0
  %v379 = vmax.f32 %v326, 0.0
  %v380 = vmax.f32 %v328, 0.0
  %v381 = vmax.f32 %v331, 0.0
  %v382 = vmax.f32 %v333, 0.0
  %v383 = vmax.f32 %v336, 0.0
  %v384 = vmax.f32 %v338, 0.0
  %v385 = vmax.f32 %v341, 0.0
  %v386 = vmax.f32 %v343, 0.0
  %v387 = vmax.f32 %v346, 0.0
  %v388 = vmax.f32 %v348, 0.0
  %v389 = vmax.f32 %v351, 0.0
  %v390 = vmax.f32 %v353, 0.0
  %427 = vrot.lane.b32.xlu0 %v355, 118
  %v428 = vpop.permute.xlu0 %427
  %429 = vrot.lane.b32.xlu0 %v356, 118
  %v430 = vpop.permute.xlu0 %429
  %431 = vrot.lane.b32.xlu0 %v357, 118
  %v432 = vpop.permute.xlu0 %431
  %433 = vrot.lane.b32.xlu0 %v358, 118
  %v434 = vpop.permute.xlu0 %433
  %435 = vrot.lane.b32.xlu0 %v359, 118
  %v436 = vpop.permute.xlu0 %435
  %437 = vrot.lane.b32.xlu0 %v360, 118
  %v438 = vpop.permute.xlu0 %437
  %439 = vrot.lane.b32.xlu0 %v361, 118
  %v440 = vpop.permute.xlu0 %439
  %441 = vrot.lane.b32.xlu0 %v362, 118
  %v442 = vpop.permute.xlu0 %441
  %443 = vrot.lane.b32.xlu0 %v363, 118
  %v444 = vpop.permute.xlu0 %443
  %445 = vrot.lane.b32.xlu0 %v364, 118
  %v446 = vpop.permute.xlu0 %445
  %447 = vrot.lane.b32.xlu0 %v365, 118
  %v448 = vpop.permute.xlu0 %447
  %449 = vrot.lane.b32.xlu0 %v366, 118
  %v450 = vpop.permute.xlu0 %449
  %451 = vrot.lane.b32.xlu0 %v367, 118
  %v452 = vpop.permute.xlu0 %451
  %453 = vrot.lane.b32.xlu0 %v368, 118
  %v454 = vpop.permute.xlu0 %453
  %455 = vrot.lane.b32.xlu0 %v369, 118
  %v456 = vpop.permute.xlu0 %455
  %457 = vrot.lane.b32.xlu0 %v370, 118
  %v458 = vpop.permute.xlu0 %457
  %459 = vrot.lane.b32.xlu0 %v371, 118
  %v460 = vpop.permute.xlu0 %459
  %461 = vrot.lane.b32.xlu0 %v372, 118
  %v462 = vpop.permute.xlu0 %461
  %463 = vrot.lane.b32.xlu0 %v373, 118
  %v464 = vpop.permute.xlu0 %463
  %465 = vrot.lane.b32.xlu0 %v374, 118
  %v466 = vpop.permute.xlu0 %465
  %467 = vrot.lane.b32.xlu0 %v375, 118
  %v468 = vpop.permute.xlu0 %467
  %469 = vrot.lane.b32.xlu0 %v376, 118
  %v470 = vpop.permute.xlu0 %469
  %471 = vrot.lane.b32.xlu0 %v377, 118
  %v472 = vpop.permute.xlu0 %471
  %473 = vrot.lane.b32.xlu0 %v378, 118
  %v474 = vpop.permute.xlu0 %473
  %475 = vrot.lane.b32.xlu0 %v379, 118
  %v476 = vpop.permute.xlu0 %475
  %477 = vrot.lane.b32.xlu0 %v380, 118
  %v478 = vpop.permute.xlu0 %477
  %479 = vrot.lane.b32.xlu0 %v381, 118
  %v480 = vpop.permute.xlu0 %479
  %481 = vrot.lane.b32.xlu0 %v382, 118
  %v482 = vpop.permute.xlu0 %481
  %483 = vrot.lane.b32.xlu0 %v383, 118
  %v484 = vpop.permute.xlu0 %483
  %485 = vrot.lane.b32.xlu0 %v384, 118
  %v486 = vpop.permute.xlu0 %485
  %487 = vrot.lane.b32.xlu0 %v385, 118
  %v488 = vpop.permute.xlu0 %487
  %489 = vrot.lane.b32.xlu0 %v386, 118
  %v490 = vpop.permute.xlu0 %489
  %491 = vrot.lane.b32.xlu0 %v387, 118
  %v492 = vpop.permute.xlu0 %491
  %493 = vrot.lane.b32.xlu0 %v388, 118
  %v494 = vpop.permute.xlu0 %493
  %495 = vrot.lane.b32.xlu0 %v389, 118
  %v496 = vpop.permute.xlu0 %495
  %497 = vrot.lane.b32.xlu0 %v390, 118
  %v498 = vpop.permute.xlu0 %497
  %v535 = vmax.f32 %v355, %v428
  %v536 = vmax.f32 %v356, %v430
  %v537 = vmax.f32 %v357, %v432
  %v538 = vmax.f32 %v358, %v434
  %v539 = vmax.f32 %v359, %v436
  %v540 = vmax.f32 %v360, %v438
  %v541 = vmax.f32 %v361, %v440
  %v542 = vmax.f32 %v362, %v442
  %v543 = vmax.f32 %v363, %v444
  %v544 = vmax.f32 %v364, %v446
  %v545 = vmax.f32 %v365, %v448
  %v546 = vmax.f32 %v366, %v450
  %v547 = vmax.f32 %v367, %v452
  %v548 = vmax.f32 %v368, %v454
  %v549 = vmax.f32 %v369, %v456
  %v550 = vmax.f32 %v370, %v458
  %v551 = vmax.f32 %v371, %v460
  %v552 = vmax.f32 %v372, %v462
  %v553 = vmax.f32 %v373, %v464
  %v554 = vmax.f32 %v374, %v466
  %v555 = vmax.f32 %v375, %v468
  %v556 = vmax.f32 %v376, %v470
  %v557 = vmax.f32 %v377, %v472
  %v558 = vmax.f32 %v378, %v474
  %v559 = vmax.f32 %v379, %v476
  %v560 = vmax.f32 %v380, %v478
  %v561 = vmax.f32 %v381, %v480
  %v562 = vmax.f32 %v382, %v482
  %v563 = vmax.f32 %v383, %v484
  %v564 = vmax.f32 %v384, %v486
  %v565 = vmax.f32 %v385, %v488
  %v566 = vmax.f32 %v386, %v490
  %v567 = vmax.f32 %v387, %v492
  %v568 = vmax.f32 %v388, %v494
  %v569 = vmax.f32 %v389, %v496
  %v570 = vmax.f32 %v390, %v498
  %607 = vrot.lane.b32.xlu0 %v535, 108
  %v608 = vpop.permute.xlu0 %607
  %609 = vrot.lane.b32.xlu0 %v536, 108
  %v610 = vpop.permute.xlu0 %609
  %611 = vrot.lane.b32.xlu0 %v537, 108
  %v612 = vpop.permute.xlu0 %611
  %613 = vrot.lane.b32.xlu0 %v538, 108
  %v614 = vpop.permute.xlu0 %613
  %615 = vrot.lane.b32.xlu0 %v539, 108
  %v616 = vpop.permute.xlu0 %615
  %617 = vrot.lane.b32.xlu0 %v540, 108
  %v618 = vpop.permute.xlu0 %617
  %619 = vrot.lane.b32.xlu0 %v541, 108
  %v620 = vpop.permute.xlu0 %619
  %621 = vrot.lane.b32.xlu0 %v542, 108
  %v622 = vpop.permute.xlu0 %621
  %623 = vrot.lane.b32.xlu0 %v543, 108
  %v624 = vpop.permute.xlu0 %623
  %625 = vrot.lane.b32.xlu0 %v544, 108
  %v626 = vpop.permute.xlu0 %625
  %627 = vrot.lane.b32.xlu0 %v545, 108
  %v628 = vpop.permute.xlu0 %627
  %629 = vrot.lane.b32.xlu0 %v546, 108
  %v630 = vpop.permute.xlu0 %629
  %631 = vrot.lane.b32.xlu0 %v547, 108
  %v632 = vpop.permute.xlu0 %631
  %633 = vrot.lane.b32.xlu0 %v548, 108
  %v634 = vpop.permute.xlu0 %633
  %635 = vrot.lane.b32.xlu0 %v549, 108
  %v636 = vpop.permute.xlu0 %635
  %637 = vrot.lane.b32.xlu0 %v550, 108
  %v638 = vpop.permute.xlu0 %637
  %639 = vrot.lane.b32.xlu0 %v551, 108
  %v640 = vpop.permute.xlu0 %639
  %641 = vrot.lane.b32.xlu0 %v552, 108
  %v642 = vpop.permute.xlu0 %641
  %643 = vrot.lane.b32.xlu0 %v553, 108
  %v644 = vpop.permute.xlu0 %643
  %645 = vrot.lane.b32.xlu0 %v554, 108
  %v646 = vpop.permute.xlu0 %645
  %647 = vrot.lane.b32.xlu0 %v555, 108
  %v648 = vpop.permute.xlu0 %647
  %649 = vrot.lane.b32.xlu0 %v556, 108
  %v650 = vpop.permute.xlu0 %649
  %651 = vrot.lane.b32.xlu0 %v557, 108
  %v652 = vpop.permute.xlu0 %651
  %653 = vrot.lane.b32.xlu0 %v558, 108
  %v654 = vpop.permute.xlu0 %653
  %655 = vrot.lane.b32.xlu0 %v559, 108
  %v656 = vpop.permute.xlu0 %655
  %657 = vrot.lane.b32.xlu0 %v560, 108
  %v658 = vpop.permute.xlu0 %657
  %659 = vrot.lane.b32.xlu0 %v561, 108
  %v660 = vpop.permute.xlu0 %659
  %661 = vrot.lane.b32.xlu0 %v562, 108
  %v662 = vpop.permute.xlu0 %661
  %663 = vrot.lane.b32.xlu0 %v563, 108
  %v664 = vpop.permute.xlu0 %663
  %665 = vrot.lane.b32.xlu0 %v564, 108
  %v666 = vpop.permute.xlu0 %665
  %667 = vrot.lane.b32.xlu0 %v565, 108
  %v668 = vpop.permute.xlu0 %667
  %669 = vrot.lane.b32.xlu0 %v566, 108
  %v670 = vpop.permute.xlu0 %669
  %671 = vrot.lane.b32.xlu0 %v567, 108
  %v672 = vpop.permute.xlu0 %671
  %673 = vrot.lane.b32.xlu0 %v568, 108
  %v674 = vpop.permute.xlu0 %673
  %675 = vrot.lane.b32.xlu0 %v569, 108
  %v676 = vpop.permute.xlu0 %675
  %677 = vrot.lane.b32.xlu0 %v570, 108
  %v678 = vpop.permute.xlu0 %677
  %v715 = vmax.f32 %v535, %v608
  %v716 = vmax.f32 %v536, %v610
  %v717 = vmax.f32 %v537, %v612
  %v718 = vmax.f32 %v538, %v614
  %v719 = vmax.f32 %v539, %v616
  %v720 = vmax.f32 %v540, %v618
  %v721 = vmax.f32 %v541, %v620
  %v722 = vmax.f32 %v542, %v622
  %v723 = vmax.f32 %v543, %v624
  %v724 = vmax.f32 %v544, %v626
  %v725 = vmax.f32 %v545, %v628
  %v726 = vmax.f32 %v546, %v630
  %v727 = vmax.f32 %v547, %v632
  %v728 = vmax.f32 %v548, %v634
  %v729 = vmax.f32 %v549, %v636
  %v730 = vmax.f32 %v550, %v638
  %v731 = vmax.f32 %v551, %v640
  %v732 = vmax.f32 %v552, %v642
  %v733 = vmax.f32 %v553, %v644
  %v734 = vmax.f32 %v554, %v646
  %v735 = vmax.f32 %v555, %v648
  %v736 = vmax.f32 %v556, %v650
  %v737 = vmax.f32 %v557, %v652
  %v738 = vmax.f32 %v558, %v654
  %v739 = vmax.f32 %v559, %v656
  %v740 = vmax.f32 %v560, %v658
  %v741 = vmax.f32 %v561, %v660
  %v742 = vmax.f32 %v562, %v662
  %v743 = vmax.f32 %v563, %v664
  %v744 = vmax.f32 %v564, %v666
  %v745 = vmax.f32 %v565, %v668
  %v746 = vmax.f32 %v566, %v670
  %v747 = vmax.f32 %v567, %v672
  %v748 = vmax.f32 %v568, %v674
  %v749 = vmax.f32 %v569, %v676
  %v750 = vmax.f32 %v570, %v678
  %v751 = vpack.c.bf16 %v715, %v715
  %v752 = vpack.c.bf16 %v716, %v716
  %v753 = vpack.c.bf16 %v717, %v717
  %v754 = vpack.c.bf16 %v718, %v718
  %v755 = vpack.c.bf16 %v719, %v719
  %v756 = vpack.c.bf16 %v720, %v720
  %v757 = vpack.c.bf16 %v721, %v721
  %v758 = vpack.c.bf16 %v722, %v722
  %v759 = vpack.c.bf16 %v723, %v723
  %v760 = vpack.c.bf16 %v724, %v724
  %v761 = vpack.c.bf16 %v725, %v725
  %v762 = vpack.c.bf16 %v726, %v726
  %v763 = vpack.c.bf16 %v727, %v727
  %v764 = vpack.c.bf16 %v728, %v728
  %v765 = vpack.c.bf16 %v729, %v729
  %v766 = vpack.c.bf16 %v730, %v730
  %v767 = vpack.c.bf16 %v731, %v731
  %v768 = vpack.c.bf16 %v732, %v732
  %v769 = vpack.c.bf16 %v733, %v733
  %v770 = vpack.c.bf16 %v734, %v734
  %v771 = vpack.c.bf16 %v735, %v735
  %v772 = vpack.c.bf16 %v736, %v736
  %v773 = vpack.c.bf16 %v737, %v737
  %v774 = vpack.c.bf16 %v738, %v738
  %v775 = vpack.c.bf16 %v739, %v739
  %v776 = vpack.c.bf16 %v740, %v740
  %v777 = vpack.c.bf16 %v741, %v741
  %v778 = vpack.c.bf16 %v742, %v742
  %v779 = vpack.c.bf16 %v743, %v743
  %v780 = vpack.c.bf16 %v744, %v744
  %v781 = vpack.c.bf16 %v745, %v745
  %v782 = vpack.c.bf16 %v746, %v746
  %v783 = vpack.c.bf16 %v747, %v747
  %v784 = vpack.c.bf16 %v748, %v748
  %v785 = vpack.c.bf16 %v749, %v749
  %v786 = vpack.c.bf16 %v750, %v750
  %vm787 = vcmask 76800
  %788 = vst.msk [vmem:[%s3] sm:$0xf] %vm787, %v751
  %789 = vst.msk [vmem:[%s3 + $0x4] sm:$0xf] %vm787, %v752
  %790 = vst.msk [vmem:[%s3 + $0x8] sm:$0xf] %vm787, %v753
  %791 = vst.msk [vmem:[%s3 + $0xc] sm:$0xf] %vm787, %v754
  %792 = vst.msk [vmem:[%s3 + $0x10] sm:$0xf] %vm787, %v755
  %793 = vst.msk [vmem:[%s3 + $0x14] sm:$0xf] %vm787, %v756
  %794 = vst.msk [vmem:[%s3 + $0x18] sm:$0xf] %vm787, %v757
  %795 = vst.msk [vmem:[%s3 + $0x1c] sm:$0xf] %vm787, %v758
  %796 = vst.msk [vmem:[%s3 + $0x20] sm:$0xf] %vm787, %v759
  %797 = vst.msk [vmem:[%s3 + $0x24] sm:$0xf] %vm787, %v760
  %798 = vst.msk [vmem:[%s3 + $0x28] sm:$0xf] %vm787, %v761
  %799 = vst.msk [vmem:[%s3 + $0x2c] sm:$0xf] %vm787, %v762
  %800 = vst.msk [vmem:[%s3 + $0x30] sm:$0xf] %vm787, %v763
  %801 = vst.msk [vmem:[%s3 + $0x34] sm:$0xf] %vm787, %v764
  %802 = vst.msk [vmem:[%s3 + $0x38] sm:$0xf] %vm787, %v765
  %803 = vst.msk [vmem:[%s3 + $0x3c] sm:$0xf] %vm787, %v766
  %804 = vst.msk [vmem:[%s3 + $0x40] sm:$0xf] %vm787, %v767
  %805 = vst.msk [vmem:[%s3 + $0x44] sm:$0xf] %vm787, %v768
  %806 = vst.msk [vmem:[%s3 + $0x48] sm:$0xf] %vm787, %v769
  %807 = vst.msk [vmem:[%s3 + $0x4c] sm:$0xf] %vm787, %v770
  %808 = vst.msk [vmem:[%s3 + $0x50] sm:$0xf] %vm787, %v771
  %809 = vst.msk [vmem:[%s3 + $0x54] sm:$0xf] %vm787, %v772
  %810 = vst.msk [vmem:[%s3 + $0x58] sm:$0xf] %vm787, %v773
  %811 = vst.msk [vmem:[%s3 + $0x5c] sm:$0xf] %vm787, %v774
  %812 = vst.msk [vmem:[%s3 + $0x60] sm:$0xf] %vm787, %v775
  %813 = vst.msk [vmem:[%s3 + $0x64] sm:$0xf] %vm787, %v776
  %814 = vst.msk [vmem:[%s3 + $0x68] sm:$0xf] %vm787, %v777
  %815 = vst.msk [vmem:[%s3 + $0x6c] sm:$0xf] %vm787, %v778
  %816 = vst.msk [vmem:[%s3 + $0x70] sm:$0xf] %vm787, %v779
  %817 = vst.msk [vmem:[%s3 + $0x74] sm:$0xf] %vm787, %v780
  %818 = vst.msk [vmem:[%s3 + $0x78] sm:$0xf] %vm787, %v781
  %819 = vst.msk [vmem:[%s3 + $0x7c] sm:$0xf] %vm787, %v782
  %820 = vst.msk [vmem:[%s3 + $0x80] sm:$0xf] %vm787, %v783
  %821 = vst.msk [vmem:[%s3 + $0x84] sm:$0xf] %vm787, %v784
  %822 = vst.msk [vmem:[%s3 + $0x88] sm:$0xf] %vm787, %v785
  %823 = vst.msk [vmem:[%s3 + $0x8c] sm:$0xf] %vm787, %v786
  // Predicated region
  $region14: #{digit_forward.3} parent=0 // pred_check
    _
  $region15: #{digit_forward.3} parent=0 // pred_check_branch
    %825 = sbr.rel (0) target = $region17
  $region16: #{digit_forward.3} parent=0 // pred_region
    _
  $region17: #{digit_forward.3} parent=0 // pred_fallthru
    _
  // Predicated region
  $region18: #{digit_forward.3} parent=0 // pred_check
    _
  $region19: #{digit_forward.3} parent=0 // pred_check_branch
    %827 = sbr.rel (0) target = $region21
  $region20: #{digit_forward.3} parent=0 // pred_region
    _
  $region21: #{digit_forward.3} parent=0 // pred_fallthru
    _

// kernel: digit_forward.4
$region0: #{digit_forward.4}
  #allocation0 [shape = 'u32[]', space=smem, size = 0x4, offset = 0x4, fixed_abs, tag = 'smem constant byte address 0x4 - core index']
  #allocation1 [shape = 'u32[72,128]{1,0:T(1,128)}', space=vmem, size = 0x9000, scoped, tag = 'internal scratch']
  %s0 = inlined_call_operand.vmem [shape: bf16[200,90], index: 0, kind: input, shape index: {}]
  %s1 = inlined_call_operand.vmem [shape: bf16[90,20], index: 1, kind: input, shape index: {}]
  %s2 = inlined_call_operand.vmem [shape: f32[1,20], index: 2, kind: input, shape index: {}]
  %s3 = inlined_call_operand.vmem [shape: bf16[200,20], index: 3, kind: output, shape index: {}]
  %s4 = sld [smem:[#allocation0]]
  $region22: #{digit_forward.4} parent=0
    _
  %s6 = ssub.s32 1, %s4
  %s7 = scalar_select 0, %s6, %s4
  // Predicated region
  $region2: #{digit_forward.4} parent=0 // pred_check
    _
  $region3: #{digit_forward.4} parent=0 // pred_check_branch
    %9 = sbr.rel (0) target = $region5
  $region4: #{digit_forward.4} parent=0 // pred_region
    _
  $region5: #{digit_forward.4} parent=0 // pred_fallthru
    _
  // Predicated region
  $region6: #{digit_forward.4} parent=0 // pred_check
    _
  $region7: #{digit_forward.4} parent=0 // pred_check_branch
    %11 = sbr.rel (0) target = $region9
  $region8: #{digit_forward.4} parent=0 // pred_region
    _
  $region9: #{digit_forward.4} parent=0 // pred_fallthru
    _
  // Predicated region
  $region10: #{digit_forward.4} parent=0 // pred_check
    _
  $region11: #{digit_forward.4} parent=0 // pred_check_branch
    %13 = sbr.rel (0) target = $region13
  $region12: #{digit_forward.4} parent=0 // pred_region
    _
  $region13: #{digit_forward.4} parent=0 // pred_fallthru
    _
  %v15 = vld [vmem:[%s0] sm:$0xf]
  %v16 = vld [vmem:[%s0 + $0x4] sm:$0xf]
  %v17 = vld [vmem:[%s0 + $0x8] sm:$0xf]
  %v18 = vld [vmem:[%s0 + $0xc] sm:$0xf]
  %v19 = vld [vmem:[%s0 + $0x10] sm:$0xf]
  %v20 = vld [vmem:[%s0 + $0x14] sm:$0xf]
  %v21 = vld [vmem:[%s0 + $0x18] sm:$0xf]
  %v22 = vld [vmem:[%s0 + $0x1c] sm:$0xf]
  %v23 = vld [vmem:[%s0 + $0x20] sm:$0xf]
  %v24 = vld [vmem:[%s0 + $0x24] sm:$0xf]
  %v25 = vld [vmem:[%s0 + $0x28] sm:$0xf]
  %v26 = vld [vmem:[%s0 + $0x2c] sm:$0xf]
  %v27 = vld [vmem:[%s0 + $0x30] sm:$0xf]
  %v28 = vld [vmem:[%s0 + $0x34] sm:$0xf]
  %v29 = vld [vmem:[%s0 + $0x38] sm:$0xf]
  %v30 = vld [vmem:[%s0 + $0x3c] sm:$0xf]
  %v31 = vld [vmem:[%s0 + $0x40] sm:$0xf]
  %v32 = vld [vmem:[%s0 + $0x44] sm:$0xf]
  %v33 = vld [vmem:[%s0 + $0x48] sm:$0xf]
  %v34 = vld [vmem:[%s0 + $0x4c] sm:$0xf]
  %v35 = vld [vmem:[%s0 + $0x50] sm:$0xf]
  %v36 = vld [vmem:[%s0 + $0x54] sm:$0xf]
  %v37 = vld [vmem:[%s0 + $0x58] sm:$0xf]
  %v38 = vld [vmem:[%s0 + $0x5c] sm:$0xf]
  %v39 = vld [vmem:[%s0 + $0x60] sm:$0xf]
  %v40 = vld [vmem:[%s1] sm:$0xf]
  %v41 = vld [vmem:[%s1 + $0x4] sm:$0xf]
  %v42 = vld [vmem:[%s1 + $0x8] sm:$0xf]
  %v43 = vld [vmem:[%s1 + $0xc] sm:$0xf]
  %v44 = vld [vmem:[%s1 + $0x10] sm:$0xf]
  %v45 = vld [vmem:[%s1 + $0x14] sm:$0xf]
  %v46 = vld [vmem:[%s1 + $0x18] sm:$0xf]
  %v47 = vld [vmem:[%s1 + $0x1c] sm:$0xf]
  %v48 = vld [vmem:[%s1 + $0x20] sm:$0xf]
  %v49 = vld [vmem:[%s1 + $0x24] sm:$0xf]
  %v50 = vld [vmem:[%s1 + $0x28] sm:$0xf]
  %v51 = vld [vmem:[%s1 + $0x2c] sm:$0x1]
  %v52 = vld [vmem:[%s2] sm:$0x1]
  %v54 = vperm.slane %v52, 0
  %v81 = vunpack.c.l.b16 %v15
  %v82 = vunpack.c.l.b16 %v16
  %v83 = vunpack.c.l.b16 %v17
  %v84 = vunpack.c.l.b16 %v18
  %v85 = vunpack.c.l.b16 %v19
  %v86 = vunpack.c.l.b16 %v20
  %v87 = vunpack.c.l.b16 %v21
  %v88 = vunpack.c.l.b16 %v22
  %v89 = vunpack.c.l.b16 %v23
  %v90 = vunpack.c.l.b16 %v24
  %v91 = vunpack.c.l.b16 %v25
  %v92 = vunpack.c.l.b16 %v26
  %v93 = vunpack.c.l.b16 %v27
  %v94 = vunpack.c.l.b16 %v28
  %v95 = vunpack.c.l.b16 %v29
  %v96 = vunpack.c.l.b16 %v30
  %v97 = vunpack.c.l.b16 %v31
  %v98 = vunpack.c.l.b16 %v32
  %v99 = vunpack.c.l.b16 %v33
  %v100 = vunpack.c.l.b16 %v34
  %v101 = vunpack.c.l.b16 %v35
  %v102 = vunpack.c.l.b16 %v36
  %v103 = vunpack.c.l.b16 %v37
  %v104 = vunpack.c.l.b16 %v38
  %v105 = vunpack.c.l.b16 %v39
  %v106 = vpack.c.b16 %v82, %v81
  %v107 = vpack.c.b16 %v84, %v83
  %v108 = vpack.c.b16 %v86, %v85
  %v109 = vpack.c.b16 %v88, %v87
  %v110 = vpack.c.b16 %v90, %v89
  %v111 = vpack.c.b16 %v92, %v91
  %v112 = vpack.c.b16 %v94, %v93
  %v113 = vpack.c.b16 %v96, %v95
  %v114 = vpack.c.b16 %v98, %v97
  %v115 = vpack.c.b16 %v100, %v99
  %v116 = vpack.c.b16 %v102, %v101
  %v117 = vpack.c.b16 %v104, %v103
  %v118 = vpack.c.b16 %v105, %v105
  %v131 = vunpack.c.l.b16 %v40
  %v132 = vunpack.c.l.b16 %v41
  %v133 = vunpack.c.l.b16 %v42
  %v134 = vunpack.c.l.b16 %v43
  %v135 = vunpack.c.l.b16 %v44
  %v136 = vunpack.c.l.b16 %v45
  %v137 = vunpack.c.l.b16 %v46
  %v138 = vunpack.c.l.b16 %v47
  %v139 = vunpack.c.l.b16 %v48
  %v140 = vunpack.c.l.b16 %v49
  %v141 = vunpack.c.l.b16 %v50
  %v142 = vunpack.c.l.b16 %v51
  %v143 = vpack.c.b16 %v132, %v131
  %v144 = vpack.c.b16 %v134, %v133
  %v145 = vpack.c.b16 %v136, %v135
  %v146 = vpack.c.b16 %v138, %v137
  %v147 = vpack.c.b16 %v140, %v139
  %v148 = vpack.c.b16 %v142, %v141
  %vm154 = vcmask 736256
  %v156 = vsel %vm154, %v106, 0
  %v159 = vsel %vm154, %v107, 0
  %v162 = vsel %vm154, %v108, 0
  %v165 = vsel %vm154, %v109, 0
  %v168 = vsel %vm154, %v110, 0
  %v171 = vsel %vm154, %v111, 0
  %v174 = vsel %vm154, %v112, 0
  %v177 = vsel %vm154, %v113, 0
  %v180 = vsel %vm154, %v114, 0
  %v183 = vsel %vm154, %v115, 0
  %v186 = vsel %vm154, %v116, 0
  %v189 = vsel %vm154, %v117, 0
  %v192 = vsel %vm154, %v118, 0
  %vm194 = vcmask 1044480
  %v196 = vsel %vm194, %v148, 0
  %198 = vmatpush.bf16.msra.mxu0 0
  %199 = vmatpush.bf16.msra.mxu0 0
  %200 = vmatpush.bf16.msra.mxu0 %v196
  %201 = vmatpush.bf16.msra.mxu0 %v147
  %202 = vmatpush.bf16.msra.mxu0 %v146
  %203 = vmatpush.bf16.msra.mxu0 %v145
  %204 = vmatpush.bf16.msra.mxu0 %v144
  %205 = vmatpush.bf16.msra.mxu0 %v143
  %206 = vmatmul.bf16.gmra.mxu0 %v156
  %v207 = vpop.f32.mrf.mxu0
  %v208 = vadd.f32 %v54, %v207
  %v209 = vpop.f32.mrf.mxu0
  %v210 = vadd.f32 %v54, %v209
  %211 = vmatmul.bf16.gmra.mxu0 %v159
  %v212 = vpop.f32.mrf.mxu0
  %v213 = vadd.f32 %v54, %v212
  %v214 = vpop.f32.mrf.mxu0
  %v215 = vadd.f32 %v54, %v214
  %216 = vmatmul.bf16.gmra.mxu0 %v162
  %v217 = vpop.f32.mrf.mxu0
  %v218 = vadd.f32 %v54, %v217
  %v219 = vpop.f32.mrf.mxu0
  %v220 = vadd.f32 %v54, %v219
  %221 = vmatmul.bf16.gmra.mxu0 %v165
  %v222 = vpop.f32.mrf.mxu0
  %v223 = vadd.f32 %v54, %v222
  %v224 = vpop.f32.mrf.mxu0
  %v225 = vadd.f32 %v54, %v224
  %226 = vmatmul.bf16.gmra.mxu0 %v168
  %v227 = vpop.f32.mrf.mxu0
  %v228 = vadd.f32 %v54, %v227
  %v229 = vpop.f32.mrf.mxu0
  %v230 = vadd.f32 %v54, %v229
  %231 = vmatmul.bf16.gmra.mxu0 %v171
  %v232 = vpop.f32.mrf.mxu0
  %v233 = vadd.f32 %v54, %v232
  %v234 = vpop.f32.mrf.mxu0
  %v235 = vadd.f32 %v54, %v234
  %236 = vmatmul.bf16.gmra.mxu0 %v174
  %v237 = vpop.f32.mrf.mxu0
  %v238 = vadd.f32 %v54, %v237
  %v239 = vpop.f32.mrf.mxu0
  %v240 = vadd.f32 %v54, %v239
  %241 = vmatmul.bf16.gmra.mxu0 %v177
  %v242 = vpop.f32.mrf.mxu0
  %v243 = vadd.f32 %v54, %v242
  %v244 = vpop.f32.mrf.mxu0
  %v245 = vadd.f32 %v54, %v244
  %246 = vmatmul.bf16.gmra.mxu0 %v180
  %v247 = vpop.f32.mrf.mxu0
  %v248 = vadd.f32 %v54, %v247
  %v249 = vpop.f32.mrf.mxu0
  %v250 = vadd.f32 %v54, %v249
  %251 = vmatmul.bf16.gmra.mxu0 %v183
  %v252 = vpop.f32.mrf.mxu0
  %v253 = vadd.f32 %v54, %v252
  %v254 = vpop.f32.mrf.mxu0
  %v255 = vadd.f32 %v54, %v254
  %256 = vmatmul.bf16.gmra.mxu0 %v186
  %v257 = vpop.f32.mrf.mxu0
  %v258 = vadd.f32 %v54, %v257
  %v259 = vpop.f32.mrf.mxu0
  %v260 = vadd.f32 %v54, %v259
  %261 = vmatmul.bf16.gmra.mxu0 %v189
  %v262 = vpop.f32.mrf.mxu0
  %v263 = vadd.f32 %v54, %v262
  %v264 = vpop.f32.mrf.mxu0
  %v265 = vadd.f32 %v54, %v264
  %266 = vmatmul.bf16.gmra.mxu0 %v192
  %v267 = vpop.f32.mrf.mxu0
  %v268 = vadd.f32 %v54, %v267
  %v269 = vpop.f32.mrf.mxu0
  %270 = vdwg.mxu0
  %v271 = vmax.f32 %v208, 0.0
  %v272 = vmax.f32 %v210, 0.0
  %v273 = vmax.f32 %v213, 0.0
  %v274 = vmax.f32 %v215, 0.0
  %v275 = vmax.f32 %v218, 0.0
  %v276 = vmax.f32 %v220, 0.0
  %v277 = vmax.f32 %v223, 0.0
  %v278 = vmax.f32 %v225, 0.0
  %v279 = vmax.f32 %v228, 0.0
  %v280 = vmax.f32 %v230, 0.0
  %v281 = vmax.f32 %v233, 0.0
  %v282 = vmax.f32 %v235, 0.0
  %v283 = vmax.f32 %v238, 0.0
  %v284 = vmax.f32 %v240, 0.0
  %v285 = vmax.f32 %v243, 0.0
  %v286 = vmax.f32 %v245, 0.0
  %v287 = vmax.f32 %v248, 0.0
  %v288 = vmax.f32 %v250, 0.0
  %v289 = vmax.f32 %v253, 0.0
  %v290 = vmax.f32 %v255, 0.0
  %v291 = vmax.f32 %v258, 0.0
  %v292 = vmax.f32 %v260, 0.0
  %v293 = vmax.f32 %v263, 0.0
  %v294 = vmax.f32 %v265, 0.0
  %v295 = vmax.f32 %v268, 0.0
  %v296 = vpack.c.bf16 %v271, %v271
  %v297 = vpack.c.bf16 %v272, %v272
  %v298 = vpack.c.bf16 %v273, %v273
  %v299 = vpack.c.bf16 %v274, %v274
  %v300 = vpack.c.bf16 %v275, %v275
  %v301 = vpack.c.bf16 %v276, %v276
  %v302 = vpack.c.bf16 %v277, %v277
  %v303 = vpack.c.bf16 %v278, %v278
  %v304 = vpack.c.bf16 %v279, %v279
  %v305 = vpack.c.bf16 %v280, %v280
  %v306 = vpack.c.bf16 %v281, %v281
  %v307 = vpack.c.bf16 %v282, %v282
  %v308 = vpack.c.bf16 %v283, %v283
  %v309 = vpack.c.bf16 %v284, %v284
  %v310 = vpack.c.bf16 %v285, %v285
  %v311 = vpack.c.bf16 %v286, %v286
  %v312 = vpack.c.bf16 %v287, %v287
  %v313 = vpack.c.bf16 %v288, %v288
  %v314 = vpack.c.bf16 %v289, %v289
  %v315 = vpack.c.bf16 %v290, %v290
  %v316 = vpack.c.bf16 %v291, %v291
  %v317 = vpack.c.bf16 %v292, %v292
  %v318 = vpack.c.bf16 %v293, %v293
  %v319 = vpack.c.bf16 %v294, %v294
  %v320 = vpack.c.bf16 %v295, %v295
  %vm321 = vcmask 158720
  %322 = vst.msk [vmem:[%s3] sm:$0xf] %vm321, %v296
  %323 = vst.msk [vmem:[%s3 + $0x4] sm:$0xf] %vm321, %v297
  %324 = vst.msk [vmem:[%s3 + $0x8] sm:$0xf] %vm321, %v298
  %325 = vst.msk [vmem:[%s3 + $0xc] sm:$0xf] %vm321, %v299
  %326 = vst.msk [vmem:[%s3 + $0x10] sm:$0xf] %vm321, %v300
  %327 = vst.msk [vmem:[%s3 + $0x14] sm:$0xf] %vm321, %v301
  %328 = vst.msk [vmem:[%s3 + $0x18] sm:$0xf] %vm321, %v302
  %329 = vst.msk [vmem:[%s3 + $0x1c] sm:$0xf] %vm321, %v303
  %330 = vst.msk [vmem:[%s3 + $0x20] sm:$0xf] %vm321, %v304
  %331 = vst.msk [vmem:[%s3 + $0x24] sm:$0xf] %vm321, %v305
  %332 = vst.msk [vmem:[%s3 + $0x28] sm:$0xf] %vm321, %v306
  %333 = vst.msk [vmem:[%s3 + $0x2c] sm:$0xf] %vm321, %v307
  %334 = vst.msk [vmem:[%s3 + $0x30] sm:$0xf] %vm321, %v308
  %335 = vst.msk [vmem:[%s3 + $0x34] sm:$0xf] %vm321, %v309
  %336 = vst.msk [vmem:[%s3 + $0x38] sm:$0xf] %vm321, %v310
  %337 = vst.msk [vmem:[%s3 + $0x3c] sm:$0xf] %vm321, %v311
  %338 = vst.msk [vmem:[%s3 + $0x40] sm:$0xf] %vm321, %v312
  %339 = vst.msk [vmem:[%s3 + $0x44] sm:$0xf] %vm321, %v313
  %340 = vst.msk [vmem:[%s3 + $0x48] sm:$0xf] %vm321, %v314
  %341 = vst.msk [vmem:[%s3 + $0x4c] sm:$0xf] %vm321, %v315
  %342 = vst.msk [vmem:[%s3 + $0x50] sm:$0xf] %vm321, %v316
  %343 = vst.msk [vmem:[%s3 + $0x54] sm:$0xf] %vm321, %v317
  %344 = vst.msk [vmem:[%s3 + $0x58] sm:$0xf] %vm321, %v318
  %345 = vst.msk [vmem:[%s3 + $0x5c] sm:$0xf] %vm321, %v319
  %346 = vst.msk [vmem:[%s3 + $0x60] sm:$0xf] %vm321, %v320
  // Predicated region
  $region14: #{digit_forward.4} parent=0 // pred_check
    _
  $region15: #{digit_forward.4} parent=0 // pred_check_branch
    %348 = sbr.rel (0) target = $region17
  $region16: #{digit_forward.4} parent=0 // pred_region
    _
  $region17: #{digit_forward.4} parent=0 // pred_fallthru
    _
  // Predicated region
  $region18: #{digit_forward.4} parent=0 // pred_check
    _
  $region19: #{digit_forward.4} parent=0 // pred_check_branch
    %350 = sbr.rel (0) target = $region21
  $region20: #{digit_forward.4} parent=0 // pred_region
    _
  $region21: #{digit_forward.4} parent=0 // pred_fallthru
    _

// kernel: digit_forward.5
$region0: #{digit_forward.5}
  #allocation0 [shape = 'u32[]', space=smem, size = 0x4, offset = 0x4, fixed_abs, tag = 'smem constant byte address 0x4 - core index']
  #allocation1 [shape = 'u32[72,128]{1,0:T(1,128)}', space=vmem, size = 0x9000, scoped, tag = 'internal scratch']
  %s0 = inlined_call_operand.vmem [shape: bf16[2,2000], index: 0, kind: input, shape index: {}]
  %s1 = inlined_call_operand.vmem [shape: bf16[2000,500], index: 1, kind: input, shape index: {}]
  %s2 = inlined_call_operand.vmem [shape: f32[1,500], index: 2, kind: input, shape index: {}]
  %s3 = inlined_call_operand.vmem [shape: bf16[500,10], index: 3, kind: input, shape index: {}]
  %s4 = inlined_call_operand.vmem [shape: f32[1,10], index: 4, kind: input, shape index: {}]
  %s5 = inlined_call_operand.hbm [shape: f32[2,10], index: 5, kind: output, shape index: {}]
  %s6 = sld [smem:[#allocation0]]
  $region30: #{digit_forward.5} parent=0
    _
  %s8 = ssub.s32 1, %s6
  %s9 = scalar_select 0, %s8, %s6
  $region1: #{digit_forward.5} parent=0
    #allocation2 [shape = 'u8[1024]{0}', space=vmem, size = 0x400, scoped, tag = 'output window, operand 0, single buffered']
    #allocation3 [shape = 's32[1]{0}', space=sflag, size = 0x4, scoped, tag = 'scoped memory for digit_forward.5']
    %10 = vsyncpa [#allocation3], 0
    // Predicated region
    $region2: #{digit_forward.5} parent=1 // pred_check
      _
    $region3: #{digit_forward.5} parent=1 // pred_check_branch
      %12 = sbr.rel (0) target = $region5
    $region4: #{digit_forward.5} parent=1 // pred_region
      _
    $region5: #{digit_forward.5} parent=1 // pred_fallthru
      _
    // Predicated region
    $region6: #{digit_forward.5} parent=1 // pred_check
      _
    $region7: #{digit_forward.5} parent=1 // pred_check_branch
      %14 = sbr.rel (0) target = $region9
    $region8: #{digit_forward.5} parent=1 // pred_region
      _
    $region9: #{digit_forward.5} parent=1 // pred_fallthru
      _
    // Predicated region
    $region10: #{digit_forward.5} parent=1 // pred_check
      _
    $region11: #{digit_forward.5} parent=1 // pred_check_branch
      %16 = sbr.rel (0) target = $region13
    $region12: #{digit_forward.5} parent=1 // pred_region
      _
    $region13: #{digit_forward.5} parent=1 // pred_fallthru
      _
    // Predicated region
    $region14: #{digit_forward.5} parent=1 // pred_check
      _
    $region15: #{digit_forward.5} parent=1 // pred_check_branch
      %18 = sbr.rel (0) target = $region17
    $region16: #{digit_forward.5} parent=1 // pred_region
      _
    $region17: #{digit_forward.5} parent=1 // pred_fallthru
      _
    // Predicated region
    $region18: #{digit_forward.5} parent=1 // pred_check
      _
    $region19: #{digit_forward.5} parent=1 // pred_check_branch
      %20 = sbr.rel (0) target = $region21
    $region20: #{digit_forward.5} parent=1 // pred_region
      _
    $region21: #{digit_forward.5} parent=1 // pred_fallthru
      _
    %v22 = vld [vmem:[%s0] sm:$0xff]
    %v23 = vld [vmem:[%s0 + $0x8] sm:$0xff]
    %v24 = vld [vmem:[%s1] sm:$0xff]
    %v25 = vld [vmem:[%s1 + $0x8] sm:$0xff]
    %v26 = vld [vmem:[%s1 + $0x10] sm:$0xff]
    %v27 = vld [vmem:[%s1 + $0x18] sm:$0xff]
    %v28 = vld [vmem:[%s1 + $0x20] sm:$0xff]
    %v29 = vld [vmem:[%s1 + $0x28] sm:$0xff]
    %v30 = vld [vmem:[%s1 + $0x30] sm:$0xff]
    %v31 = vld [vmem:[%s1 + $0x38] sm:$0xff]
    %v32 = vld [vmem:[%s1 + $0x40] sm:$0xff]
    %v33 = vld [vmem:[%s1 + $0x48] sm:$0xff]
    %v34 = vld [vmem:[%s1 + $0x50] sm:$0xff]
    %v35 = vld [vmem:[%s1 + $0x58] sm:$0xff]
    %v36 = vld [vmem:[%s1 + $0x60] sm:$0xff]
    %v37 = vld [vmem:[%s1 + $0x68] sm:$0xff]
    %v38 = vld [vmem:[%s1 + $0x70] sm:$0xff]
    %v39 = vld [vmem:[%s1 + $0x78] sm:$0xff]
    %v40 = vld [vmem:[%s1 + $0x80] sm:$0xff]
    %v41 = vld [vmem:[%s1 + $0x88] sm:$0xff]
    %v42 = vld [vmem:[%s1 + $0x90] sm:$0xff]
    %v43 = vld [vmem:[%s1 + $0x98] sm:$0xff]
    %v44 = vld [vmem:[%s1 + $0xa0] sm:$0xff]
    %v45 = vld [vmem:[%s1 + $0xa8] sm:$0xff]
    %v46 = vld [vmem:[%s1 + $0xb0] sm:$0xff]
    %v47 = vld [vmem:[%s1 + $0xb8] sm:$0xff]
    %v48 = vld [vmem:[%s1 + $0xc0] sm:$0xff]
    %v49 = vld [vmem:[%s1 + $0xc8] sm:$0xff]
    %v50 = vld [vmem:[%s1 + $0xd0] sm:$0xff]
    %v51 = vld [vmem:[%s1 + $0xd8] sm:$0xff]
    %v52 = vld [vmem:[%s1 + $0xe0] sm:$0xff]
    %v53 = vld [vmem:[%s1 + $0xe8] sm:$0xff]
    %v54 = vld [vmem:[%s1 + $0xf0] sm:$0xff]
    %v55 = vld [vmem:[%s1 + $0xf8] sm:$0xff]
    %v56 = vld [vmem:[%s1 + $0x100] sm:$0xff]
    %v57 = vld [vmem:[%s1 + $0x108] sm:$0xff]
    %v58 = vld [vmem:[%s1 + $0x110] sm:$0xff]
    %v59 = vld [vmem:[%s1 + $0x118] sm:$0xff]
    %v60 = vld [vmem:[%s1 + $0x120] sm:$0xff]
    %v61 = vld [vmem:[%s1 + $0x128] sm:$0xff]
    %v62 = vld [vmem:[%s1 + $0x130] sm:$0xff]
    %v63 = vld [vmem:[%s1 + $0x138] sm:$0xff]
    %v64 = vld [vmem:[%s1 + $0x140] sm:$0xff]
    %v65 = vld [vmem:[%s1 + $0x148] sm:$0xff]
    %v66 = vld [vmem:[%s1 + $0x150] sm:$0xff]
    %v67 = vld [vmem:[%s1 + $0x158] sm:$0xff]
    %v68 = vld [vmem:[%s1 + $0x160] sm:$0xff]
    %v69 = vld [vmem:[%s1 + $0x168] sm:$0xff]
    %v70 = vld [vmem:[%s1 + $0x170] sm:$0xff]
    %v71 = vld [vmem:[%s1 + $0x178] sm:$0xff]
    %v72 = vld [vmem:[%s1 + $0x180] sm:$0xff]
    %v73 = vld [vmem:[%s1 + $0x188] sm:$0xff]
    %v74 = vld [vmem:[%s1 + $0x190] sm:$0xff]
    %v75 = vld [vmem:[%s1 + $0x198] sm:$0xff]
    %v76 = vld [vmem:[%s1 + $0x1a0] sm:$0xff]
    %v77 = vld [vmem:[%s1 + $0x1a8] sm:$0xff]
    %v78 = vld [vmem:[%s1 + $0x1b0] sm:$0xff]
    %v79 = vld [vmem:[%s1 + $0x1b8] sm:$0xff]
    %v80 = vld [vmem:[%s1 + $0x1c0] sm:$0xff]
    %v81 = vld [vmem:[%s1 + $0x1c8] sm:$0xff]
    %v82 = vld [vmem:[%s1 + $0x1d0] sm:$0xff]
    %v83 = vld [vmem:[%s1 + $0x1d8] sm:$0xff]
    %v84 = vld [vmem:[%s1 + $0x1e0] sm:$0xff]
    %v85 = vld [vmem:[%s1 + $0x1e8] sm:$0xff]
    %v86 = vld [vmem:[%s1 + $0x1f0] sm:$0xff]
    %v87 = vld [vmem:[%s1 + $0x1f8] sm:$0xff]
    %v88 = vld [vmem:[%s1 + $0x200] sm:$0xff]
    %v89 = vld [vmem:[%s1 + $0x208] sm:$0xff]
    %v90 = vld [vmem:[%s1 + $0x210] sm:$0xff]
    %v91 = vld [vmem:[%s1 + $0x218] sm:$0xff]
    %v92 = vld [vmem:[%s1 + $0x220] sm:$0xff]
    %v93 = vld [vmem:[%s1 + $0x228] sm:$0xff]
    %v94 = vld [vmem:[%s1 + $0x230] sm:$0xff]
    %v95 = vld [vmem:[%s1 + $0x238] sm:$0xff]
    %v96 = vld [vmem:[%s1 + $0x240] sm:$0xff]
    %v97 = vld [vmem:[%s1 + $0x248] sm:$0xff]
    %v98 = vld [vmem:[%s1 + $0x250] sm:$0xff]
    %v99 = vld [vmem:[%s1 + $0x258] sm:$0xff]
    %v100 = vld [vmem:[%s1 + $0x260] sm:$0xff]
    %v101 = vld [vmem:[%s1 + $0x268] sm:$0xff]
    %v102 = vld [vmem:[%s1 + $0x270] sm:$0xff]
    %v103 = vld [vmem:[%s1 + $0x278] sm:$0xff]
    %v104 = vld [vmem:[%s1 + $0x280] sm:$0xff]
    %v105 = vld [vmem:[%s1 + $0x288] sm:$0xff]
    %v106 = vld [vmem:[%s1 + $0x290] sm:$0xff]
    %v107 = vld [vmem:[%s1 + $0x298] sm:$0xff]
    %v108 = vld [vmem:[%s1 + $0x2a0] sm:$0xff]
    %v109 = vld [vmem:[%s1 + $0x2a8] sm:$0xff]
    %v110 = vld [vmem:[%s1 + $0x2b0] sm:$0xff]
    %v111 = vld [vmem:[%s1 + $0x2b8] sm:$0xff]
    %v112 = vld [vmem:[%s1 + $0x2c0] sm:$0xff]
    %v113 = vld [vmem:[%s1 + $0x2c8] sm:$0xff]
    %v114 = vld [vmem:[%s1 + $0x2d0] sm:$0xff]
    %v115 = vld [vmem:[%s1 + $0x2d8] sm:$0xff]
    %v116 = vld [vmem:[%s1 + $0x2e0] sm:$0xff]
    %v117 = vld [vmem:[%s1 + $0x2e8] sm:$0xff]
    %v118 = vld [vmem:[%s1 + $0x2f0] sm:$0xff]
    %v119 = vld [vmem:[%s1 + $0x2f8] sm:$0xff]
    %v120 = vld [vmem:[%s1 + $0x300] sm:$0xff]
    %v121 = vld [vmem:[%s1 + $0x308] sm:$0xff]
    %v122 = vld [vmem:[%s1 + $0x310] sm:$0xff]
    %v123 = vld [vmem:[%s1 + $0x318] sm:$0xff]
    %v124 = vld [vmem:[%s1 + $0x320] sm:$0xff]
    %v125 = vld [vmem:[%s1 + $0x328] sm:$0xff]
    %v126 = vld [vmem:[%s1 + $0x330] sm:$0xff]
    %v127 = vld [vmem:[%s1 + $0x338] sm:$0xff]
    %v128 = vld [vmem:[%s1 + $0x340] sm:$0xff]
    %v129 = vld [vmem:[%s1 + $0x348] sm:$0xff]
    %v130 = vld [vmem:[%s1 + $0x350] sm:$0xff]
    %v131 = vld [vmem:[%s1 + $0x358] sm:$0xff]
    %v132 = vld [vmem:[%s1 + $0x360] sm:$0xff]
    %v133 = vld [vmem:[%s1 + $0x368] sm:$0xff]
    %v134 = vld [vmem:[%s1 + $0x370] sm:$0xff]
    %v135 = vld [vmem:[%s1 + $0x378] sm:$0xff]
    %v136 = vld [vmem:[%s1 + $0x380] sm:$0xff]
    %v137 = vld [vmem:[%s1 + $0x388] sm:$0xff]
    %v138 = vld [vmem:[%s1 + $0x390] sm:$0xff]
    %v139 = vld [vmem:[%s1 + $0x398] sm:$0xff]
    %v140 = vld [vmem:[%s1 + $0x3a0] sm:$0xff]
    %v141 = vld [vmem:[%s1 + $0x3a8] sm:$0xff]
    %v142 = vld [vmem:[%s1 + $0x3b0] sm:$0xff]
    %v143 = vld [vmem:[%s1 + $0x3b8] sm:$0xff]
    %v144 = vld [vmem:[%s1 + $0x3c0] sm:$0xff]
    %v145 = vld [vmem:[%s1 + $0x3c8] sm:$0xff]
    %v146 = vld [vmem:[%s1 + $0x3d0] sm:$0xff]
    %v147 = vld [vmem:[%s1 + $0x3d8] sm:$0xff]
    %v148 = vld [vmem:[%s1 + $0x3e0] sm:$0xff]
    %v149 = vld [vmem:[%s1 + $0x3e8] sm:$0xff]
    %v150 = vld [vmem:[%s1 + $0x3f0] sm:$0xff]
    %v151 = vld [vmem:[%s1 + $0x3f8] sm:$0xff]
    %v152 = vld [vmem:[%s1 + $0x400] sm:$0xff]
    %v153 = vld [vmem:[%s1 + $0x408] sm:$0xff]
    %v154 = vld [vmem:[%s1 + $0x410] sm:$0xff]
    %v155 = vld [vmem:[%s1 + $0x418] sm:$0xff]
    %v156 = vld [vmem:[%s1 + $0x420] sm:$0xff]
    %v157 = vld [vmem:[%s1 + $0x428] sm:$0xff]
    %v158 = vld [vmem:[%s1 + $0x430] sm:$0xff]
    %v159 = vld [vmem:[%s1 + $0x438] sm:$0xff]
    %v160 = vld [vmem:[%s1 + $0x440] sm:$0xff]
    %v161 = vld [vmem:[%s1 + $0x448] sm:$0xff]
    %v162 = vld [vmem:[%s1 + $0x450] sm:$0xff]
    %v163 = vld [vmem:[%s1 + $0x458] sm:$0xff]
    %v164 = vld [vmem:[%s1 + $0x460] sm:$0xff]
    %v165 = vld [vmem:[%s1 + $0x468] sm:$0xff]
    %v166 = vld [vmem:[%s1 + $0x470] sm:$0xff]
    %v167 = vld [vmem:[%s1 + $0x478] sm:$0xff]
    %v168 = vld [vmem:[%s1 + $0x480] sm:$0xff]
    %v169 = vld [vmem:[%s1 + $0x488] sm:$0xff]
    %v170 = vld [vmem:[%s1 + $0x490] sm:$0xff]
    %v171 = vld [vmem:[%s1 + $0x498] sm:$0xff]
    %v172 = vld [vmem:[%s1 + $0x4a0] sm:$0xff]
    %v173 = vld [vmem:[%s1 + $0x4a8] sm:$0xff]
    %v174 = vld [vmem:[%s1 + $0x4b0] sm:$0xff]
    %v175 = vld [vmem:[%s1 + $0x4b8] sm:$0xff]
    %v176 = vld [vmem:[%s1 + $0x4c0] sm:$0xff]
    %v177 = vld [vmem:[%s1 + $0x4c8] sm:$0xff]
    %v178 = vld [vmem:[%s1 + $0x4d0] sm:$0xff]
    %v179 = vld [vmem:[%s1 + $0x4d8] sm:$0xff]
    %v180 = vld [vmem:[%s1 + $0x4e0] sm:$0xff]
    %v181 = vld [vmem:[%s1 + $0x4e8] sm:$0xff]
    %v182 = vld [vmem:[%s1 + $0x4f0] sm:$0xff]
    %v183 = vld [vmem:[%s1 + $0x4f8] sm:$0xff]
    %v184 = vld [vmem:[%s1 + $0x500] sm:$0xff]
    %v185 = vld [vmem:[%s1 + $0x508] sm:$0xff]
    %v186 = vld [vmem:[%s1 + $0x510] sm:$0xff]
    %v187 = vld [vmem:[%s1 + $0x518] sm:$0xff]
    %v188 = vld [vmem:[%s1 + $0x520] sm:$0xff]
    %v189 = vld [vmem:[%s1 + $0x528] sm:$0xff]
    %v190 = vld [vmem:[%s1 + $0x530] sm:$0xff]
    %v191 = vld [vmem:[%s1 + $0x538] sm:$0xff]
    %v192 = vld [vmem:[%s1 + $0x540] sm:$0xff]
    %v193 = vld [vmem:[%s1 + $0x548] sm:$0xff]
    %v194 = vld [vmem:[%s1 + $0x550] sm:$0xff]
    %v195 = vld [vmem:[%s1 + $0x558] sm:$0xff]
    %v196 = vld [vmem:[%s1 + $0x560] sm:$0xff]
    %v197 = vld [vmem:[%s1 + $0x568] sm:$0xff]
    %v198 = vld [vmem:[%s1 + $0x570] sm:$0xff]
    %v199 = vld [vmem:[%s1 + $0x578] sm:$0xff]
    %v200 = vld [vmem:[%s1 + $0x580] sm:$0xff]
    %v201 = vld [vmem:[%s1 + $0x588] sm:$0xff]
    %v202 = vld [vmem:[%s1 + $0x590] sm:$0xff]
    %v203 = vld [vmem:[%s1 + $0x598] sm:$0xff]
    %v204 = vld [vmem:[%s1 + $0x5a0] sm:$0xff]
    %v205 = vld [vmem:[%s1 + $0x5a8] sm:$0xff]
    %v206 = vld [vmem:[%s1 + $0x5b0] sm:$0xff]
    %v207 = vld [vmem:[%s1 + $0x5b8] sm:$0xff]
    %v208 = vld [vmem:[%s1 + $0x5c0] sm:$0xff]
    %v209 = vld [vmem:[%s1 + $0x5c8] sm:$0xff]
    %v210 = vld [vmem:[%s1 + $0x5d0] sm:$0xff]
    %v211 = vld [vmem:[%s1 + $0x5d8] sm:$0xff]
    %v212 = vld [vmem:[%s1 + $0x5e0] sm:$0xff]
    %v213 = vld [vmem:[%s1 + $0x5e8] sm:$0xff]
    %v214 = vld [vmem:[%s1 + $0x5f0] sm:$0xff]
    %v215 = vld [vmem:[%s1 + $0x5f8] sm:$0xff]
    %v216 = vld [vmem:[%s1 + $0x600] sm:$0xff]
    %v217 = vld [vmem:[%s1 + $0x608] sm:$0xff]
    %v218 = vld [vmem:[%s1 + $0x610] sm:$0xff]
    %v219 = vld [vmem:[%s1 + $0x618] sm:$0xff]
    %v220 = vld [vmem:[%s1 + $0x620] sm:$0xff]
    %v221 = vld [vmem:[%s1 + $0x628] sm:$0xff]
    %v222 = vld [vmem:[%s1 + $0x630] sm:$0xff]
    %v223 = vld [vmem:[%s1 + $0x638] sm:$0xff]
    %v224 = vld [vmem:[%s1 + $0x640] sm:$0xff]
    %v225 = vld [vmem:[%s1 + $0x648] sm:$0xff]
    %v226 = vld [vmem:[%s1 + $0x650] sm:$0xff]
    %v227 = vld [vmem:[%s1 + $0x658] sm:$0xff]
    %v228 = vld [vmem:[%s1 + $0x660] sm:$0xff]
    %v229 = vld [vmem:[%s1 + $0x668] sm:$0xff]
    %v230 = vld [vmem:[%s1 + $0x670] sm:$0xff]
    %v231 = vld [vmem:[%s1 + $0x678] sm:$0xff]
    %v232 = vld [vmem:[%s1 + $0x680] sm:$0xff]
    %v233 = vld [vmem:[%s1 + $0x688] sm:$0xff]
    %v234 = vld [vmem:[%s1 + $0x690] sm:$0xff]
    %v235 = vld [vmem:[%s1 + $0x698] sm:$0xff]
    %v236 = vld [vmem:[%s1 + $0x6a0] sm:$0xff]
    %v237 = vld [vmem:[%s1 + $0x6a8] sm:$0xff]
    %v238 = vld [vmem:[%s1 + $0x6b0] sm:$0xff]
    %v239 = vld [vmem:[%s1 + $0x6b8] sm:$0xff]
    %v240 = vld [vmem:[%s1 + $0x6c0] sm:$0xff]
    %v241 = vld [vmem:[%s1 + $0x6c8] sm:$0xff]
    %v242 = vld [vmem:[%s1 + $0x6d0] sm:$0xff]
    %v243 = vld [vmem:[%s1 + $0x6d8] sm:$0xff]
    %v244 = vld [vmem:[%s1 + $0x6e0] sm:$0xff]
    %v245 = vld [vmem:[%s1 + $0x6e8] sm:$0xff]
    %v246 = vld [vmem:[%s1 + $0x6f0] sm:$0xff]
    %v247 = vld [vmem:[%s1 + $0x6f8] sm:$0xff]
    %v248 = vld [vmem:[%s1 + $0x700] sm:$0xff]
    %v249 = vld [vmem:[%s1 + $0x708] sm:$0xff]
    %v250 = vld [vmem:[%s1 + $0x710] sm:$0xff]
    %v251 = vld [vmem:[%s1 + $0x718] sm:$0xff]
    %v252 = vld [vmem:[%s1 + $0x720] sm:$0xff]
    %v253 = vld [vmem:[%s1 + $0x728] sm:$0xff]
    %v254 = vld [vmem:[%s1 + $0x730] sm:$0xff]
    %v255 = vld [vmem:[%s1 + $0x738] sm:$0xff]
    %v256 = vld [vmem:[%s1 + $0x740] sm:$0xff]
    %v257 = vld [vmem:[%s1 + $0x748] sm:$0xff]
    %v258 = vld [vmem:[%s1 + $0x750] sm:$0xff]
    %v259 = vld [vmem:[%s1 + $0x758] sm:$0xff]
    %v260 = vld [vmem:[%s1 + $0x760] sm:$0xff]
    %v261 = vld [vmem:[%s1 + $0x768] sm:$0xff]
    %v262 = vld [vmem:[%s1 + $0x770] sm:$0xff]
    %v263 = vld [vmem:[%s1 + $0x778] sm:$0xff]
    %v264 = vld [vmem:[%s1 + $0x780] sm:$0xff]
    %v265 = vld [vmem:[%s1 + $0x788] sm:$0xff]
    %v266 = vld [vmem:[%s1 + $0x790] sm:$0xff]
    %v267 = vld [vmem:[%s1 + $0x798] sm:$0xff]
    %v268 = vld [vmem:[%s1 + $0x7a0] sm:$0xff]
    %v269 = vld [vmem:[%s1 + $0x7a8] sm:$0xff]
    %v270 = vld [vmem:[%s1 + $0x7b0] sm:$0xff]
    %v271 = vld [vmem:[%s1 + $0x7b8] sm:$0xff]
    %v272 = vld [vmem:[%s1 + $0x7c0] sm:$0xff]
    %v273 = vld [vmem:[%s1 + $0x7c8] sm:$0xff]
    %v274 = vld [vmem:[%s1 + $0x7d0] sm:$0xff]
    %v275 = vld [vmem:[%s1 + $0x7d8] sm:$0xff]
    %v276 = vld [vmem:[%s1 + $0x7e0] sm:$0xff]
    %v277 = vld [vmem:[%s1 + $0x7e8] sm:$0xff]
    %v278 = vld [vmem:[%s1 + $0x7f0] sm:$0xff]
    %v279 = vld [vmem:[%s1 + $0x7f8] sm:$0xff]
    %v280 = vld [vmem:[%s1 + $0x800] sm:$0xff]
    %v281 = vld [vmem:[%s1 + $0x808] sm:$0xff]
    %v282 = vld [vmem:[%s1 + $0x810] sm:$0xff]
    %v283 = vld [vmem:[%s1 + $0x818] sm:$0xff]
    %v284 = vld [vmem:[%s1 + $0x820] sm:$0xff]
    %v285 = vld [vmem:[%s1 + $0x828] sm:$0xff]
    %v286 = vld [vmem:[%s1 + $0x830] sm:$0xff]
    %v287 = vld [vmem:[%s1 + $0x838] sm:$0xff]
    %v288 = vld [vmem:[%s1 + $0x840] sm:$0xff]
    %v289 = vld [vmem:[%s1 + $0x848] sm:$0xff]
    %v290 = vld [vmem:[%s1 + $0x850] sm:$0xff]
    %v291 = vld [vmem:[%s1 + $0x858] sm:$0xff]
    %v292 = vld [vmem:[%s1 + $0x860] sm:$0xff]
    %v293 = vld [vmem:[%s1 + $0x868] sm:$0xff]
    %v294 = vld [vmem:[%s1 + $0x870] sm:$0xff]
    %v295 = vld [vmem:[%s1 + $0x878] sm:$0xff]
    %v296 = vld [vmem:[%s1 + $0x880] sm:$0xff]
    %v297 = vld [vmem:[%s1 + $0x888] sm:$0xff]
    %v298 = vld [vmem:[%s1 + $0x890] sm:$0xff]
    %v299 = vld [vmem:[%s1 + $0x898] sm:$0xff]
    %v300 = vld [vmem:[%s1 + $0x8a0] sm:$0xff]
    %v301 = vld [vmem:[%s1 + $0x8a8] sm:$0xff]
    %v302 = vld [vmem:[%s1 + $0x8b0] sm:$0xff]
    %v303 = vld [vmem:[%s1 + $0x8b8] sm:$0xff]
    %v304 = vld [vmem:[%s1 + $0x8c0] sm:$0xff]
    %v305 = vld [vmem:[%s1 + $0x8c8] sm:$0xff]
    %v306 = vld [vmem:[%s1 + $0x8d0] sm:$0xff]
    %v307 = vld [vmem:[%s1 + $0x8d8] sm:$0xff]
    %v308 = vld [vmem:[%s1 + $0x8e0] sm:$0xff]
    %v309 = vld [vmem:[%s1 + $0x8e8] sm:$0xff]
    %v310 = vld [vmem:[%s1 + $0x8f0] sm:$0xff]
    %v311 = vld [vmem:[%s1 + $0x8f8] sm:$0xff]
    %v312 = vld [vmem:[%s1 + $0x900] sm:$0xff]
    %v313 = vld [vmem:[%s1 + $0x908] sm:$0xff]
    %v314 = vld [vmem:[%s1 + $0x910] sm:$0xff]
    %v315 = vld [vmem:[%s1 + $0x918] sm:$0xff]
    %v316 = vld [vmem:[%s1 + $0x920] sm:$0xff]
    %v317 = vld [vmem:[%s1 + $0x928] sm:$0xff]
    %v318 = vld [vmem:[%s1 + $0x930] sm:$0xff]
    %v319 = vld [vmem:[%s1 + $0x938] sm:$0xff]
    %v320 = vld [vmem:[%s1 + $0x940] sm:$0xff]
    %v321 = vld [vmem:[%s1 + $0x948] sm:$0xff]
    %v322 = vld [vmem:[%s1 + $0x950] sm:$0xff]
    %v323 = vld [vmem:[%s1 + $0x958] sm:$0xff]
    %v324 = vld [vmem:[%s1 + $0x960] sm:$0xff]
    %v325 = vld [vmem:[%s1 + $0x968] sm:$0xff]
    %v326 = vld [vmem:[%s1 + $0x970] sm:$0xff]
    %v327 = vld [vmem:[%s1 + $0x978] sm:$0xff]
    %v328 = vld [vmem:[%s1 + $0x980] sm:$0xff]
    %v329 = vld [vmem:[%s1 + $0x988] sm:$0xff]
    %v330 = vld [vmem:[%s1 + $0x990] sm:$0xff]
    %v331 = vld [vmem:[%s1 + $0x998] sm:$0xff]
    %v332 = vld [vmem:[%s1 + $0x9a0] sm:$0xff]
    %v333 = vld [vmem:[%s1 + $0x9a8] sm:$0xff]
    %v334 = vld [vmem:[%s1 + $0x9b0] sm:$0xff]
    %v335 = vld [vmem:[%s1 + $0x9b8] sm:$0xff]
    %v336 = vld [vmem:[%s1 + $0x9c0] sm:$0xff]
    %v337 = vld [vmem:[%s1 + $0x9c8] sm:$0xff]
    %v338 = vld [vmem:[%s1 + $0x9d0] sm:$0xff]
    %v339 = vld [vmem:[%s1 + $0x9d8] sm:$0xff]
    %v340 = vld [vmem:[%s1 + $0x9e0] sm:$0xff]
    %v341 = vld [vmem:[%s1 + $0x9e8] sm:$0xff]
    %v342 = vld [vmem:[%s1 + $0x9f0] sm:$0xff]
    %v343 = vld [vmem:[%s1 + $0x9f8] sm:$0xff]
    %v344 = vld [vmem:[%s1 + $0xa00] sm:$0xff]
    %v345 = vld [vmem:[%s1 + $0xa08] sm:$0xff]
    %v346 = vld [vmem:[%s1 + $0xa10] sm:$0xff]
    %v347 = vld [vmem:[%s1 + $0xa18] sm:$0xff]
    %v348 = vld [vmem:[%s1 + $0xa20] sm:$0xff]
    %v349 = vld [vmem:[%s1 + $0xa28] sm:$0xff]
    %v350 = vld [vmem:[%s1 + $0xa30] sm:$0xff]
    %v351 = vld [vmem:[%s1 + $0xa38] sm:$0xff]
    %v352 = vld [vmem:[%s1 + $0xa40] sm:$0xff]
    %v353 = vld [vmem:[%s1 + $0xa48] sm:$0xff]
    %v354 = vld [vmem:[%s1 + $0xa50] sm:$0xff]
    %v355 = vld [vmem:[%s1 + $0xa58] sm:$0xff]
    %v356 = vld [vmem:[%s1 + $0xa60] sm:$0xff]
    %v357 = vld [vmem:[%s1 + $0xa68] sm:$0xff]
    %v358 = vld [vmem:[%s1 + $0xa70] sm:$0xff]
    %v359 = vld [vmem:[%s1 + $0xa78] sm:$0xff]
    %v360 = vld [vmem:[%s1 + $0xa80] sm:$0xff]
    %v361 = vld [vmem:[%s1 + $0xa88] sm:$0xff]
    %v362 = vld [vmem:[%s1 + $0xa90] sm:$0xff]
    %v363 = vld [vmem:[%s1 + $0xa98] sm:$0xff]
    %v364 = vld [vmem:[%s1 + $0xaa0] sm:$0xff]
    %v365 = vld [vmem:[%s1 + $0xaa8] sm:$0xff]
    %v366 = vld [vmem:[%s1 + $0xab0] sm:$0xff]
    %v367 = vld [vmem:[%s1 + $0xab8] sm:$0xff]
    %v368 = vld [vmem:[%s1 + $0xac0] sm:$0xff]
    %v369 = vld [vmem:[%s1 + $0xac8] sm:$0xff]
    %v370 = vld [vmem:[%s1 + $0xad0] sm:$0xff]
    %v371 = vld [vmem:[%s1 + $0xad8] sm:$0xff]
    %v372 = vld [vmem:[%s1 + $0xae0] sm:$0xff]
    %v373 = vld [vmem:[%s1 + $0xae8] sm:$0xff]
    %v374 = vld [vmem:[%s1 + $0xaf0] sm:$0xff]
    %v375 = vld [vmem:[%s1 + $0xaf8] sm:$0xff]
    %v376 = vld [vmem:[%s1 + $0xb00] sm:$0xff]
    %v377 = vld [vmem:[%s1 + $0xb08] sm:$0xff]
    %v378 = vld [vmem:[%s1 + $0xb10] sm:$0xff]
    %v379 = vld [vmem:[%s1 + $0xb18] sm:$0xff]
    %v380 = vld [vmem:[%s1 + $0xb20] sm:$0xff]
    %v381 = vld [vmem:[%s1 + $0xb28] sm:$0xff]
    %v382 = vld [vmem:[%s1 + $0xb30] sm:$0xff]
    %v383 = vld [vmem:[%s1 + $0xb38] sm:$0xff]
    %v384 = vld [vmem:[%s1 + $0xb40] sm:$0xff]
    %v385 = vld [vmem:[%s1 + $0xb48] sm:$0xff]
    %v386 = vld [vmem:[%s1 + $0xb50] sm:$0xff]
    %v387 = vld [vmem:[%s1 + $0xb58] sm:$0xff]
    %v388 = vld [vmem:[%s1 + $0xb60] sm:$0xff]
    %v389 = vld [vmem:[%s1 + $0xb68] sm:$0xff]
    %v390 = vld [vmem:[%s1 + $0xb70] sm:$0xff]
    %v391 = vld [vmem:[%s1 + $0xb78] sm:$0xff]
    %v392 = vld [vmem:[%s1 + $0xb80] sm:$0xff]
    %v393 = vld [vmem:[%s1 + $0xb88] sm:$0xff]
    %v394 = vld [vmem:[%s1 + $0xb90] sm:$0xff]
    %v395 = vld [vmem:[%s1 + $0xb98] sm:$0xff]
    %v396 = vld [vmem:[%s1 + $0xba0] sm:$0xff]
    %v397 = vld [vmem:[%s1 + $0xba8] sm:$0xff]
    %v398 = vld [vmem:[%s1 + $0xbb0] sm:$0xff]
    %v399 = vld [vmem:[%s1 + $0xbb8] sm:$0xff]
    %v400 = vld [vmem:[%s1 + $0xbc0] sm:$0xff]
    %v401 = vld [vmem:[%s1 + $0xbc8] sm:$0xff]
    %v402 = vld [vmem:[%s1 + $0xbd0] sm:$0xff]
    %v403 = vld [vmem:[%s1 + $0xbd8] sm:$0xff]
    %v404 = vld [vmem:[%s1 + $0xbe0] sm:$0xff]
    %v405 = vld [vmem:[%s1 + $0xbe8] sm:$0xff]
    %v406 = vld [vmem:[%s1 + $0xbf0] sm:$0xff]
    %v407 = vld [vmem:[%s1 + $0xbf8] sm:$0xff]
    %v408 = vld [vmem:[%s1 + $0xc00] sm:$0xff]
    %v409 = vld [vmem:[%s1 + $0xc08] sm:$0xff]
    %v410 = vld [vmem:[%s1 + $0xc10] sm:$0xff]
    %v411 = vld [vmem:[%s1 + $0xc18] sm:$0xff]
    %v412 = vld [vmem:[%s1 + $0xc20] sm:$0xff]
    %v413 = vld [vmem:[%s1 + $0xc28] sm:$0xff]
    %v414 = vld [vmem:[%s1 + $0xc30] sm:$0xff]
    %v415 = vld [vmem:[%s1 + $0xc38] sm:$0xff]
    %v416 = vld [vmem:[%s1 + $0xc40] sm:$0xff]
    %v417 = vld [vmem:[%s1 + $0xc48] sm:$0xff]
    %v418 = vld [vmem:[%s1 + $0xc50] sm:$0xff]
    %v419 = vld [vmem:[%s1 + $0xc58] sm:$0xff]
    %v420 = vld [vmem:[%s1 + $0xc60] sm:$0xff]
    %v421 = vld [vmem:[%s1 + $0xc68] sm:$0xff]
    %v422 = vld [vmem:[%s1 + $0xc70] sm:$0xff]
    %v423 = vld [vmem:[%s1 + $0xc78] sm:$0xff]
    %v424 = vld [vmem:[%s1 + $0xc80] sm:$0xff]
    %v425 = vld [vmem:[%s1 + $0xc88] sm:$0xff]
    %v426 = vld [vmem:[%s1 + $0xc90] sm:$0xff]
    %v427 = vld [vmem:[%s1 + $0xc98] sm:$0xff]
    %v428 = vld [vmem:[%s1 + $0xca0] sm:$0xff]
    %v429 = vld [vmem:[%s1 + $0xca8] sm:$0xff]
    %v430 = vld [vmem:[%s1 + $0xcb0] sm:$0xff]
    %v431 = vld [vmem:[%s1 + $0xcb8] sm:$0xff]
    %v432 = vld [vmem:[%s1 + $0xcc0] sm:$0xff]
    %v433 = vld [vmem:[%s1 + $0xcc8] sm:$0xff]
    %v434 = vld [vmem:[%s1 + $0xcd0] sm:$0xff]
    %v435 = vld [vmem:[%s1 + $0xcd8] sm:$0xff]
    %v436 = vld [vmem:[%s1 + $0xce0] sm:$0xff]
    %v437 = vld [vmem:[%s1 + $0xce8] sm:$0xff]
    %v438 = vld [vmem:[%s1 + $0xcf0] sm:$0xff]
    %v439 = vld [vmem:[%s1 + $0xcf8] sm:$0xff]
    %v440 = vld [vmem:[%s1 + $0xd00] sm:$0xff]
    %v441 = vld [vmem:[%s1 + $0xd08] sm:$0xff]
    %v442 = vld [vmem:[%s1 + $0xd10] sm:$0xff]
    %v443 = vld [vmem:[%s1 + $0xd18] sm:$0xff]
    %v444 = vld [vmem:[%s1 + $0xd20] sm:$0xff]
    %v445 = vld [vmem:[%s1 + $0xd28] sm:$0xff]
    %v446 = vld [vmem:[%s1 + $0xd30] sm:$0xff]
    %v447 = vld [vmem:[%s1 + $0xd38] sm:$0xff]
    %v448 = vld [vmem:[%s1 + $0xd40] sm:$0xff]
    %v449 = vld [vmem:[%s1 + $0xd48] sm:$0xff]
    %v450 = vld [vmem:[%s1 + $0xd50] sm:$0xff]
    %v451 = vld [vmem:[%s1 + $0xd58] sm:$0xff]
    %v452 = vld [vmem:[%s1 + $0xd60] sm:$0xff]
    %v453 = vld [vmem:[%s1 + $0xd68] sm:$0xff]
    %v454 = vld [vmem:[%s1 + $0xd70] sm:$0xff]
    %v455 = vld [vmem:[%s1 + $0xd78] sm:$0xff]
    %v456 = vld [vmem:[%s1 + $0xd80] sm:$0xff]
    %v457 = vld [vmem:[%s1 + $0xd88] sm:$0xff]
    %v458 = vld [vmem:[%s1 + $0xd90] sm:$0xff]
    %v459 = vld [vmem:[%s1 + $0xd98] sm:$0xff]
    %v460 = vld [vmem:[%s1 + $0xda0] sm:$0xff]
    %v461 = vld [vmem:[%s1 + $0xda8] sm:$0xff]
    %v462 = vld [vmem:[%s1 + $0xdb0] sm:$0xff]
    %v463 = vld [vmem:[%s1 + $0xdb8] sm:$0xff]
    %v464 = vld [vmem:[%s1 + $0xdc0] sm:$0xff]
    %v465 = vld [vmem:[%s1 + $0xdc8] sm:$0xff]
    %v466 = vld [vmem:[%s1 + $0xdd0] sm:$0xff]
    %v467 = vld [vmem:[%s1 + $0xdd8] sm:$0xff]
    %v468 = vld [vmem:[%s1 + $0xde0] sm:$0xff]
    %v469 = vld [vmem:[%s1 + $0xde8] sm:$0xff]
    %v470 = vld [vmem:[%s1 + $0xdf0] sm:$0xff]
    %v471 = vld [vmem:[%s1 + $0xdf8] sm:$0xff]
    %v472 = vld [vmem:[%s1 + $0xe00] sm:$0xff]
    %v473 = vld [vmem:[%s1 + $0xe08] sm:$0xff]
    %v474 = vld [vmem:[%s1 + $0xe10] sm:$0xff]
    %v475 = vld [vmem:[%s1 + $0xe18] sm:$0xff]
    %v476 = vld [vmem:[%s1 + $0xe20] sm:$0xff]
    %v477 = vld [vmem:[%s1 + $0xe28] sm:$0xff]
    %v478 = vld [vmem:[%s1 + $0xe30] sm:$0xff]
    %v479 = vld [vmem:[%s1 + $0xe38] sm:$0xff]
    %v480 = vld [vmem:[%s1 + $0xe40] sm:$0xff]
    %v481 = vld [vmem:[%s1 + $0xe48] sm:$0xff]
    %v482 = vld [vmem:[%s1 + $0xe50] sm:$0xff]
    %v483 = vld [vmem:[%s1 + $0xe58] sm:$0xff]
    %v484 = vld [vmem:[%s1 + $0xe60] sm:$0xff]
    %v485 = vld [vmem:[%s1 + $0xe68] sm:$0xff]
    %v486 = vld [vmem:[%s1 + $0xe70] sm:$0xff]
    %v487 = vld [vmem:[%s1 + $0xe78] sm:$0xff]
    %v488 = vld [vmem:[%s1 + $0xe80] sm:$0xff]
    %v489 = vld [vmem:[%s1 + $0xe88] sm:$0xff]
    %v490 = vld [vmem:[%s1 + $0xe90] sm:$0xff]
    %v491 = vld [vmem:[%s1 + $0xe98] sm:$0xff]
    %v492 = vld [vmem:[%s1 + $0xea0] sm:$0xff]
    %v493 = vld [vmem:[%s1 + $0xea8] sm:$0xff]
    %v494 = vld [vmem:[%s1 + $0xeb0] sm:$0xff]
    %v495 = vld [vmem:[%s1 + $0xeb8] sm:$0xff]
    %v496 = vld [vmem:[%s1 + $0xec0] sm:$0xff]
    %v497 = vld [vmem:[%s1 + $0xec8] sm:$0xff]
    %v498 = vld [vmem:[%s1 + $0xed0] sm:$0xff]
    %v499 = vld [vmem:[%s1 + $0xed8] sm:$0xff]
    %v500 = vld [vmem:[%s1 + $0xee0] sm:$0xff]
    %v501 = vld [vmem:[%s1 + $0xee8] sm:$0xff]
    %v502 = vld [vmem:[%s1 + $0xef0] sm:$0xff]
    %v503 = vld [vmem:[%s1 + $0xef8] sm:$0xff]
    %v504 = vld [vmem:[%s1 + $0xf00] sm:$0xff]
    %v505 = vld [vmem:[%s1 + $0xf08] sm:$0xff]
    %v506 = vld [vmem:[%s1 + $0xf10] sm:$0xff]
    %v507 = vld [vmem:[%s1 + $0xf18] sm:$0xff]
    %v508 = vld [vmem:[%s1 + $0xf20] sm:$0xff]
    %v509 = vld [vmem:[%s1 + $0xf28] sm:$0xff]
    %v510 = vld [vmem:[%s1 + $0xf30] sm:$0xff]
    %v511 = vld [vmem:[%s1 + $0xf38] sm:$0xff]
    %v512 = vld [vmem:[%s1 + $0xf40] sm:$0xff]
    %v513 = vld [vmem:[%s1 + $0xf48] sm:$0xff]
    %v514 = vld [vmem:[%s1 + $0xf50] sm:$0xff]
    %v515 = vld [vmem:[%s1 + $0xf58] sm:$0xff]
    %v516 = vld [vmem:[%s1 + $0xf60] sm:$0xff]
    %v517 = vld [vmem:[%s1 + $0xf68] sm:$0xff]
    %v518 = vld [vmem:[%s1 + $0xf70] sm:$0xff]
    %v519 = vld [vmem:[%s1 + $0xf78] sm:$0xff]
    %v520 = vld [vmem:[%s1 + $0xf80] sm:$0xff]
    %v521 = vld [vmem:[%s1 + $0xf88] sm:$0xff]
    %v522 = vld [vmem:[%s1 + $0xf90] sm:$0xff]
    %v523 = vld [vmem:[%s1 + $0xf98] sm:$0xff]
    %v524 = vld [vmem:[%s2] sm:$0xf]
    %v526 = vperm.slane %v524, 0
    %v527 = vperm.slane %v524, 1
    %v528 = vperm.slane %v524, 2
    %v529 = vperm.slane %v524, 3
    %535 = vst [vmem:[#allocation1] ss:$9 sm:$0xff] %v22
    %v536 = vld [vmem:[#allocation1] sm:$0xff]
    %v537 = vld [vmem:[#allocation1 + $0x9] sm:$0xff]
    %v538 = vld [vmem:[#allocation1 + $0x12] sm:$0xff]
    %v539 = vld [vmem:[#allocation1 + $0x1b] sm:$0xff]
    %v540 = vld [vmem:[#allocation1 + $0x24] sm:$0xff]
    %v541 = vld [vmem:[#allocation1 + $0x2d] sm:$0xff]
    %v542 = vld [vmem:[#allocation1 + $0x36] sm:$0xff]
    %v543 = vld [vmem:[#allocation1 + $0x3f] sm:$0xff]
    %545 = vst [vmem:[#allocation1] ss:$9 sm:$0xff] %v23
    %v546 = vld [vmem:[#allocation1] sm:$0xff]
    %v547 = vld [vmem:[#allocation1 + $0x9] sm:$0xff]
    %v548 = vld [vmem:[#allocation1 + $0x12] sm:$0xff]
    %v549 = vld [vmem:[#allocation1 + $0x1b] sm:$0xff]
    %v550 = vld [vmem:[#allocation1 + $0x24] sm:$0xff]
    %v551 = vld [vmem:[#allocation1 + $0x2d] sm:$0xff]
    %v552 = vld [vmem:[#allocation1 + $0x36] sm:$0xff]
    %v553 = vld [vmem:[#allocation1 + $0x3f] sm:$0xff]
    %v1069 = vunpack.c.l.b16 %v24
    %v1070 = vunpack.c.h.b16 %v24
    %v1071 = vunpack.c.l.b16 %v25
    %v1072 = vunpack.c.h.b16 %v25
    %v1073 = vunpack.c.l.b16 %v26
    %v1074 = vunpack.c.h.b16 %v26
    %v1075 = vunpack.c.l.b16 %v27
    %v1076 = vunpack.c.h.b16 %v27
    %v1077 = vunpack.c.l.b16 %v28
    %v1078 = vunpack.c.h.b16 %v28
    %v1079 = vunpack.c.l.b16 %v29
    %v1080 = vunpack.c.h.b16 %v29
    %v1081 = vunpack.c.l.b16 %v30
    %v1082 = vunpack.c.h.b16 %v30
    %v1083 = vunpack.c.l.b16 %v31
    %v1084 = vunpack.c.h.b16 %v31
    %v1085 = vunpack.c.l.b16 %v32
    %v1086 = vunpack.c.h.b16 %v32
    %v1087 = vunpack.c.l.b16 %v33
    %v1088 = vunpack.c.h.b16 %v33
    %v1089 = vunpack.c.l.b16 %v34
    %v1090 = vunpack.c.h.b16 %v34
    %v1091 = vunpack.c.l.b16 %v35
    %v1092 = vunpack.c.h.b16 %v35
    %v1093 = vunpack.c.l.b16 %v36
    %v1094 = vunpack.c.h.b16 %v36
    %v1095 = vunpack.c.l.b16 %v37
    %v1096 = vunpack.c.h.b16 %v37
    %v1097 = vunpack.c.l.b16 %v38
    %v1098 = vunpack.c.h.b16 %v38
    %v1099 = vunpack.c.l.b16 %v39
    %v1100 = vunpack.c.h.b16 %v39
    %v1101 = vunpack.c.l.b16 %v40
    %v1102 = vunpack.c.h.b16 %v40
    %v1103 = vunpack.c.l.b16 %v41
    %v1104 = vunpack.c.h.b16 %v41
    %v1105 = vunpack.c.l.b16 %v42
    %v1106 = vunpack.c.h.b16 %v42
    %v1107 = vunpack.c.l.b16 %v43
    %v1108 = vunpack.c.h.b16 %v43
    %v1109 = vunpack.c.l.b16 %v44
    %v1110 = vunpack.c.h.b16 %v44
    %v1111 = vunpack.c.l.b16 %v45
    %v1112 = vunpack.c.h.b16 %v45
    %v1113 = vunpack.c.l.b16 %v46
    %v1114 = vunpack.c.h.b16 %v46
    %v1115 = vunpack.c.l.b16 %v47
    %v1116 = vunpack.c.h.b16 %v47
    %v1117 = vunpack.c.l.b16 %v48
    %v1118 = vunpack.c.h.b16 %v48
    %v1119 = vunpack.c.l.b16 %v49
    %v1120 = vunpack.c.h.b16 %v49
    %v1121 = vunpack.c.l.b16 %v50
    %v1122 = vunpack.c.h.b16 %v50
    %v1123 = vunpack.c.l.b16 %v51
    %v1124 = vunpack.c.h.b16 %v51
    %v1125 = vunpack.c.l.b16 %v52
    %v1126 = vunpack.c.h.b16 %v52
    %v1127 = vunpack.c.l.b16 %v53
    %v1128 = vunpack.c.h.b16 %v53
    %v1129 = vunpack.c.l.b16 %v54
    %v1130 = vunpack.c.h.b16 %v54
    %v1131 = vunpack.c.l.b16 %v55
    %v1132 = vunpack.c.h.b16 %v55
    %v1133 = vunpack.c.l.b16 %v56
    %v1134 = vunpack.c.h.b16 %v56
    %v1135 = vunpack.c.l.b16 %v57
    %v1136 = vunpack.c.h.b16 %v57
    %v1137 = vunpack.c.l.b16 %v58
    %v1138 = vunpack.c.h.b16 %v58
    %v1139 = vunpack.c.l.b16 %v59
    %v1140 = vunpack.c.h.b16 %v59
    %v1141 = vunpack.c.l.b16 %v60
    %v1142 = vunpack.c.h.b16 %v60
    %v1143 = vunpack.c.l.b16 %v61
    %v1144 = vunpack.c.h.b16 %v61
    %v1145 = vunpack.c.l.b16 %v62
    %v1146 = vunpack.c.h.b16 %v62
    %v1147 = vunpack.c.l.b16 %v63
    %v1148 = vunpack.c.h.b16 %v63
    %v1149 = vunpack.c.l.b16 %v64
    %v1150 = vunpack.c.h.b16 %v64
    %v1151 = vunpack.c.l.b16 %v65
    %v1152 = vunpack.c.h.b16 %v65
    %v1153 = vunpack.c.l.b16 %v66
    %v1154 = vunpack.c.h.b16 %v66
    %v1155 = vunpack.c.l.b16 %v67
    %v1156 = vunpack.c.h.b16 %v67
    %v1157 = vunpack.c.l.b16 %v68
    %v1158 = vunpack.c.h.b16 %v68
    %v1159 = vunpack.c.l.b16 %v69
    %v1160 = vunpack.c.h.b16 %v69
    %v1161 = vunpack.c.l.b16 %v70
    %v1162 = vunpack.c.h.b16 %v70
    %v1163 = vunpack.c.l.b16 %v71
    %v1164 = vunpack.c.h.b16 %v71
    %v1165 = vunpack.c.l.b16 %v72
    %v1166 = vunpack.c.h.b16 %v72
    %v1167 = vunpack.c.l.b16 %v73
    %v1168 = vunpack.c.h.b16 %v73
    %v1169 = vunpack.c.l.b16 %v74
    %v1170 = vunpack.c.h.b16 %v74
    %v1171 = vunpack.c.l.b16 %v75
    %v1172 = vunpack.c.h.b16 %v75
    %v1173 = vunpack.c.l.b16 %v76
    %v1174 = vunpack.c.h.b16 %v76
    %v1175 = vunpack.c.l.b16 %v77
    %v1176 = vunpack.c.h.b16 %v77
    %v1177 = vunpack.c.l.b16 %v78
    %v1178 = vunpack.c.h.b16 %v78
    %v1179 = vunpack.c.l.b16 %v79
    %v1180 = vunpack.c.h.b16 %v79
    %v1181 = vunpack.c.l.b16 %v80
    %v1182 = vunpack.c.h.b16 %v80
    %v1183 = vunpack.c.l.b16 %v81
    %v1184 = vunpack.c.h.b16 %v81
    %v1185 = vunpack.c.l.b16 %v82
    %v1186 = vunpack.c.h.b16 %v82
    %v1187 = vunpack.c.l.b16 %v83
    %v1188 = vunpack.c.h.b16 %v83
    %v1189 = vunpack.c.l.b16 %v84
    %v1190 = vunpack.c.h.b16 %v84
    %v1191 = vunpack.c.l.b16 %v85
    %v1192 = vunpack.c.h.b16 %v85
    %v1193 = vunpack.c.l.b16 %v86
    %v1194 = vunpack.c.h.b16 %v86
    %v1195 = vunpack.c.l.b16 %v87
    %v1196 = vunpack.c.h.b16 %v87
    %v1197 = vunpack.c.l.b16 %v88
    %v1198 = vunpack.c.h.b16 %v88
    %v1199 = vunpack.c.l.b16 %v89
    %v1200 = vunpack.c.h.b16 %v89
    %v1201 = vunpack.c.l.b16 %v90
    %v1202 = vunpack.c.h.b16 %v90
    %v1203 = vunpack.c.l.b16 %v91
    %v1204 = vunpack.c.h.b16 %v91
    %v1205 = vunpack.c.l.b16 %v92
    %v1206 = vunpack.c.h.b16 %v92
    %v1207 = vunpack.c.l.b16 %v93
    %v1208 = vunpack.c.h.b16 %v93
    %v1209 = vunpack.c.l.b16 %v94
    %v1210 = vunpack.c.h.b16 %v94
    %v1211 = vunpack.c.l.b16 %v95
    %v1212 = vunpack.c.h.b16 %v95
    %v1213 = vunpack.c.l.b16 %v96
    %v1214 = vunpack.c.h.b16 %v96
    %v1215 = vunpack.c.l.b16 %v97
    %v1216 = vunpack.c.h.b16 %v97
    %v1217 = vunpack.c.l.b16 %v98
    %v1218 = vunpack.c.h.b16 %v98
    %v1219 = vunpack.c.l.b16 %v99
    %v1220 = vunpack.c.h.b16 %v99
    %v1221 = vunpack.c.l.b16 %v100
    %v1222 = vunpack.c.h.b16 %v100
    %v1223 = vunpack.c.l.b16 %v101
    %v1224 = vunpack.c.h.b16 %v101
    %v1225 = vunpack.c.l.b16 %v102
    %v1226 = vunpack.c.h.b16 %v102
    %v1227 = vunpack.c.l.b16 %v103
    %v1228 = vunpack.c.h.b16 %v103
    %v1229 = vunpack.c.l.b16 %v104
    %v1230 = vunpack.c.h.b16 %v104
    %v1231 = vunpack.c.l.b16 %v105
    %v1232 = vunpack.c.h.b16 %v105
    %v1233 = vunpack.c.l.b16 %v106
    %v1234 = vunpack.c.h.b16 %v106
    %v1235 = vunpack.c.l.b16 %v107
    %v1236 = vunpack.c.h.b16 %v107
    %v1237 = vunpack.c.l.b16 %v108
    %v1238 = vunpack.c.h.b16 %v108
    %v1239 = vunpack.c.l.b16 %v109
    %v1240 = vunpack.c.h.b16 %v109
    %v1241 = vunpack.c.l.b16 %v110
    %v1242 = vunpack.c.h.b16 %v110
    %v1243 = vunpack.c.l.b16 %v111
    %v1244 = vunpack.c.h.b16 %v111
    %v1245 = vunpack.c.l.b16 %v112
    %v1246 = vunpack.c.h.b16 %v112
    %v1247 = vunpack.c.l.b16 %v113
    %v1248 = vunpack.c.h.b16 %v113
    %v1249 = vunpack.c.l.b16 %v114
    %v1250 = vunpack.c.h.b16 %v114
    %v1251 = vunpack.c.l.b16 %v115
    %v1252 = vunpack.c.h.b16 %v115
    %v1253 = vunpack.c.l.b16 %v116
    %v1254 = vunpack.c.h.b16 %v116
    %v1255 = vunpack.c.l.b16 %v117
    %v1256 = vunpack.c.h.b16 %v117
    %v1257 = vunpack.c.l.b16 %v118
    %v1258 = vunpack.c.h.b16 %v118
    %v1259 = vunpack.c.l.b16 %v119
    %v1260 = vunpack.c.h.b16 %v119
    %v1261 = vunpack.c.l.b16 %v120
    %v1262 = vunpack.c.h.b16 %v120
    %v1263 = vunpack.c.l.b16 %v121
    %v1264 = vunpack.c.h.b16 %v121
    %v1265 = vunpack.c.l.b16 %v122
    %v1266 = vunpack.c.h.b16 %v122
    %v1267 = vunpack.c.l.b16 %v123
    %v1268 = vunpack.c.h.b16 %v123
    %v1269 = vunpack.c.l.b16 %v124
    %v1270 = vunpack.c.h.b16 %v124
    %v1271 = vunpack.c.l.b16 %v125
    %v1272 = vunpack.c.h.b16 %v125
    %v1273 = vunpack.c.l.b16 %v126
    %v1274 = vunpack.c.h.b16 %v126
    %v1275 = vunpack.c.l.b16 %v127
    %v1276 = vunpack.c.h.b16 %v127
    %v1277 = vunpack.c.l.b16 %v128
    %v1278 = vunpack.c.h.b16 %v128
    %v1279 = vunpack.c.l.b16 %v129
    %v1280 = vunpack.c.h.b16 %v129
    %v1281 = vunpack.c.l.b16 %v130
    %v1282 = vunpack.c.h.b16 %v130
    %v1283 = vunpack.c.l.b16 %v131
    %v1284 = vunpack.c.h.b16 %v131
    %v1285 = vunpack.c.l.b16 %v132
    %v1286 = vunpack.c.h.b16 %v132
    %v1287 = vunpack.c.l.b16 %v133
    %v1288 = vunpack.c.h.b16 %v133
    %v1289 = vunpack.c.l.b16 %v134
    %v1290 = vunpack.c.h.b16 %v134
    %v1291 = vunpack.c.l.b16 %v135
    %v1292 = vunpack.c.h.b16 %v135
    %v1293 = vunpack.c.l.b16 %v136
    %v1294 = vunpack.c.h.b16 %v136
    %v1295 = vunpack.c.l.b16 %v137
    %v1296 = vunpack.c.h.b16 %v137
    %v1297 = vunpack.c.l.b16 %v138
    %v1298 = vunpack.c.h.b16 %v138
    %v1299 = vunpack.c.l.b16 %v139
    %v1300 = vunpack.c.h.b16 %v139
    %v1301 = vunpack.c.l.b16 %v140
    %v1302 = vunpack.c.h.b16 %v140
    %v1303 = vunpack.c.l.b16 %v141
    %v1304 = vunpack.c.h.b16 %v141
    %v1305 = vunpack.c.l.b16 %v142
    %v1306 = vunpack.c.h.b16 %v142
    %v1307 = vunpack.c.l.b16 %v143
    %v1308 = vunpack.c.h.b16 %v143
    %v1309 = vunpack.c.l.b16 %v144
    %v1310 = vunpack.c.h.b16 %v144
    %v1311 = vunpack.c.l.b16 %v145
    %v1312 = vunpack.c.h.b16 %v145
    %v1313 = vunpack.c.l.b16 %v146
    %v1314 = vunpack.c.h.b16 %v146
    %v1315 = vunpack.c.l.b16 %v147
    %v1316 = vunpack.c.h.b16 %v147
    %v1317 = vunpack.c.l.b16 %v148
    %v1318 = vunpack.c.h.b16 %v148
    %v1319 = vunpack.c.l.b16 %v149
    %v1320 = vunpack.c.h.b16 %v149
    %v1321 = vunpack.c.l.b16 %v150
    %v1322 = vunpack.c.h.b16 %v150
    %v1323 = vunpack.c.l.b16 %v151
    %v1324 = vunpack.c.h.b16 %v151
    %v1325 = vunpack.c.l.b16 %v152
    %v1326 = vunpack.c.h.b16 %v152
    %v1327 = vunpack.c.l.b16 %v153
    %v1328 = vunpack.c.h.b16 %v153
    %v1329 = vunpack.c.l.b16 %v154
    %v1330 = vunpack.c.h.b16 %v154
    %v1331 = vunpack.c.l.b16 %v155
    %v1332 = vunpack.c.h.b16 %v155
    %v1333 = vunpack.c.l.b16 %v156
    %v1334 = vunpack.c.h.b16 %v156
    %v1335 = vunpack.c.l.b16 %v157
    %v1336 = vunpack.c.h.b16 %v157
    %v1337 = vunpack.c.l.b16 %v158
    %v1338 = vunpack.c.h.b16 %v158
    %v1339 = vunpack.c.l.b16 %v159
    %v1340 = vunpack.c.h.b16 %v159
    %v1341 = vunpack.c.l.b16 %v160
    %v1342 = vunpack.c.h.b16 %v160
    %v1343 = vunpack.c.l.b16 %v161
    %v1344 = vunpack.c.h.b16 %v161
    %v1345 = vunpack.c.l.b16 %v162
    %v1346 = vunpack.c.h.b16 %v162
    %v1347 = vunpack.c.l.b16 %v163
    %v1348 = vunpack.c.h.b16 %v163
    %v1349 = vunpack.c.l.b16 %v164
    %v1350 = vunpack.c.h.b16 %v164
    %v1351 = vunpack.c.l.b16 %v165
    %v1352 = vunpack.c.h.b16 %v165
    %v1353 = vunpack.c.l.b16 %v166
    %v1354 = vunpack.c.h.b16 %v166
    %v1355 = vunpack.c.l.b16 %v167
    %v1356 = vunpack.c.h.b16 %v167
    %v1357 = vunpack.c.l.b16 %v168
    %v1358 = vunpack.c.h.b16 %v168
    %v1359 = vunpack.c.l.b16 %v169
    %v1360 = vunpack.c.h.b16 %v169
    %v1361 = vunpack.c.l.b16 %v170
    %v1362 = vunpack.c.h.b16 %v170
    %v1363 = vunpack.c.l.b16 %v171
    %v1364 = vunpack.c.h.b16 %v171
    %v1365 = vunpack.c.l.b16 %v172
    %v1366 = vunpack.c.h.b16 %v172
    %v1367 = vunpack.c.l.b16 %v173
    %v1368 = vunpack.c.h.b16 %v173
    %v1369 = vunpack.c.l.b16 %v174
    %v1370 = vunpack.c.h.b16 %v174
    %v1371 = vunpack.c.l.b16 %v175
    %v1372 = vunpack.c.h.b16 %v175
    %v1373 = vunpack.c.l.b16 %v176
    %v1374 = vunpack.c.h.b16 %v176
    %v1375 = vunpack.c.l.b16 %v177
    %v1376 = vunpack.c.h.b16 %v177
    %v1377 = vunpack.c.l.b16 %v178
    %v1378 = vunpack.c.h.b16 %v178
    %v1379 = vunpack.c.l.b16 %v179
    %v1380 = vunpack.c.h.b16 %v179
    %v1381 = vunpack.c.l.b16 %v180
    %v1382 = vunpack.c.h.b16 %v180
    %v1383 = vunpack.c.l.b16 %v181
    %v1384 = vunpack.c.h.b16 %v181
    %v1385 = vunpack.c.l.b16 %v182
    %v1386 = vunpack.c.h.b16 %v182
    %v1387 = vunpack.c.l.b16 %v183
    %v1388 = vunpack.c.h.b16 %v183
    %v1389 = vunpack.c.l.b16 %v184
    %v1390 = vunpack.c.h.b16 %v184
    %v1391 = vunpack.c.l.b16 %v185
    %v1392 = vunpack.c.h.b16 %v185
    %v1393 = vunpack.c.l.b16 %v186
    %v1394 = vunpack.c.h.b16 %v186
    %v1395 = vunpack.c.l.b16 %v187
    %v1396 = vunpack.c.h.b16 %v187
    %v1397 = vunpack.c.l.b16 %v188
    %v1398 = vunpack.c.h.b16 %v188
    %v1399 = vunpack.c.l.b16 %v189
    %v1400 = vunpack.c.h.b16 %v189
    %v1401 = vunpack.c.l.b16 %v190
    %v1402 = vunpack.c.h.b16 %v190
    %v1403 = vunpack.c.l.b16 %v191
    %v1404 = vunpack.c.h.b16 %v191
    %v1405 = vunpack.c.l.b16 %v192
    %v1406 = vunpack.c.h.b16 %v192
    %v1407 = vunpack.c.l.b16 %v193
    %v1408 = vunpack.c.h.b16 %v193
    %v1409 = vunpack.c.l.b16 %v194
    %v1410 = vunpack.c.h.b16 %v194
    %v1411 = vunpack.c.l.b16 %v195
    %v1412 = vunpack.c.h.b16 %v195
    %v1413 = vunpack.c.l.b16 %v196
    %v1414 = vunpack.c.h.b16 %v196
    %v1415 = vunpack.c.l.b16 %v197
    %v1416 = vunpack.c.h.b16 %v197
    %v1417 = vunpack.c.l.b16 %v198
    %v1418 = vunpack.c.h.b16 %v198
    %v1419 = vunpack.c.l.b16 %v199
    %v1420 = vunpack.c.h.b16 %v199
    %v1421 = vunpack.c.l.b16 %v200
    %v1422 = vunpack.c.h.b16 %v200
    %v1423 = vunpack.c.l.b16 %v201
    %v1424 = vunpack.c.h.b16 %v201
    %v1425 = vunpack.c.l.b16 %v202
    %v1426 = vunpack.c.h.b16 %v202
    %v1427 = vunpack.c.l.b16 %v203
    %v1428 = vunpack.c.h.b16 %v203
    %v1429 = vunpack.c.l.b16 %v204
    %v1430 = vunpack.c.h.b16 %v204
    %v1431 = vunpack.c.l.b16 %v205
    %v1432 = vunpack.c.h.b16 %v205
    %v1433 = vunpack.c.l.b16 %v206
    %v1434 = vunpack.c.h.b16 %v206
    %v1435 = vunpack.c.l.b16 %v207
    %v1436 = vunpack.c.h.b16 %v207
    %v1437 = vunpack.c.l.b16 %v208
    %v1438 = vunpack.c.h.b16 %v208
    %v1439 = vunpack.c.l.b16 %v209
    %v1440 = vunpack.c.h.b16 %v209
    %v1441 = vunpack.c.l.b16 %v210
    %v1442 = vunpack.c.h.b16 %v210
    %v1443 = vunpack.c.l.b16 %v211
    %v1444 = vunpack.c.h.b16 %v211
    %v1445 = vunpack.c.l.b16 %v212
    %v1446 = vunpack.c.h.b16 %v212
    %v1447 = vunpack.c.l.b16 %v213
    %v1448 = vunpack.c.h.b16 %v213
    %v1449 = vunpack.c.l.b16 %v214
    %v1450 = vunpack.c.h.b16 %v214
    %v1451 = vunpack.c.l.b16 %v215
    %v1452 = vunpack.c.h.b16 %v215
    %v1453 = vunpack.c.l.b16 %v216
    %v1454 = vunpack.c.h.b16 %v216
    %v1455 = vunpack.c.l.b16 %v217
    %v1456 = vunpack.c.h.b16 %v217
    %v1457 = vunpack.c.l.b16 %v218
    %v1458 = vunpack.c.h.b16 %v218
    %v1459 = vunpack.c.l.b16 %v219
    %v1460 = vunpack.c.h.b16 %v219
    %v1461 = vunpack.c.l.b16 %v220
    %v1462 = vunpack.c.h.b16 %v220
    %v1463 = vunpack.c.l.b16 %v221
    %v1464 = vunpack.c.h.b16 %v221
    %v1465 = vunpack.c.l.b16 %v222
    %v1466 = vunpack.c.h.b16 %v222
    %v1467 = vunpack.c.l.b16 %v223
    %v1468 = vunpack.c.h.b16 %v223
    %v1469 = vunpack.c.l.b16 %v224
    %v1470 = vunpack.c.h.b16 %v224
    %v1471 = vunpack.c.l.b16 %v225
    %v1472 = vunpack.c.h.b16 %v225
    %v1473 = vunpack.c.l.b16 %v226
    %v1474 = vunpack.c.h.b16 %v226
    %v1475 = vunpack.c.l.b16 %v227
    %v1476 = vunpack.c.h.b16 %v227
    %v1477 = vunpack.c.l.b16 %v228
    %v1478 = vunpack.c.h.b16 %v228
    %v1479 = vunpack.c.l.b16 %v229
    %v1480 = vunpack.c.h.b16 %v229
    %v1481 = vunpack.c.l.b16 %v230
    %v1482 = vunpack.c.h.b16 %v230
    %v1483 = vunpack.c.l.b16 %v231
    %v1484 = vunpack.c.h.b16 %v231
    %v1485 = vunpack.c.l.b16 %v232
    %v1486 = vunpack.c.h.b16 %v232
    %v1487 = vunpack.c.l.b16 %v233
    %v1488 = vunpack.c.h.b16 %v233
    %v1489 = vunpack.c.l.b16 %v234
    %v1490 = vunpack.c.h.b16 %v234
    %v1491 = vunpack.c.l.b16 %v235
    %v1492 = vunpack.c.h.b16 %v235
    %v1493 = vunpack.c.l.b16 %v236
    %v1494 = vunpack.c.h.b16 %v236
    %v1495 = vunpack.c.l.b16 %v237
    %v1496 = vunpack.c.h.b16 %v237
    %v1497 = vunpack.c.l.b16 %v238
    %v1498 = vunpack.c.h.b16 %v238
    %v1499 = vunpack.c.l.b16 %v239
    %v1500 = vunpack.c.h.b16 %v239
    %v1501 = vunpack.c.l.b16 %v240
    %v1502 = vunpack.c.h.b16 %v240
    %v1503 = vunpack.c.l.b16 %v241
    %v1504 = vunpack.c.h.b16 %v241
    %v1505 = vunpack.c.l.b16 %v242
    %v1506 = vunpack.c.h.b16 %v242
    %v1507 = vunpack.c.l.b16 %v243
    %v1508 = vunpack.c.h.b16 %v243
    %v1509 = vunpack.c.l.b16 %v244
    %v1510 = vunpack.c.h.b16 %v244
    %v1511 = vunpack.c.l.b16 %v245
    %v1512 = vunpack.c.h.b16 %v245
    %v1513 = vunpack.c.l.b16 %v246
    %v1514 = vunpack.c.h.b16 %v246
    %v1515 = vunpack.c.l.b16 %v247
    %v1516 = vunpack.c.h.b16 %v247
    %v1517 = vunpack.c.l.b16 %v248
    %v1518 = vunpack.c.h.b16 %v248
    %v1519 = vunpack.c.l.b16 %v249
    %v1520 = vunpack.c.h.b16 %v249
    %v1521 = vunpack.c.l.b16 %v250
    %v1522 = vunpack.c.h.b16 %v250
    %v1523 = vunpack.c.l.b16 %v251
    %v1524 = vunpack.c.h.b16 %v251
    %v1525 = vunpack.c.l.b16 %v252
    %v1526 = vunpack.c.h.b16 %v252
    %v1527 = vunpack.c.l.b16 %v253
    %v1528 = vunpack.c.h.b16 %v253
    %v1529 = vunpack.c.l.b16 %v254
    %v1530 = vunpack.c.h.b16 %v254
    %v1531 = vunpack.c.l.b16 %v255
    %v1532 = vunpack.c.h.b16 %v255
    %v1533 = vunpack.c.l.b16 %v256
    %v1534 = vunpack.c.h.b16 %v256
    %v1535 = vunpack.c.l.b16 %v257
    %v1536 = vunpack.c.h.b16 %v257
    %v1537 = vunpack.c.l.b16 %v258
    %v1538 = vunpack.c.h.b16 %v258
    %v1539 = vunpack.c.l.b16 %v259
    %v1540 = vunpack.c.h.b16 %v259
    %v1541 = vunpack.c.l.b16 %v260
    %v1542 = vunpack.c.h.b16 %v260
    %v1543 = vunpack.c.l.b16 %v261
    %v1544 = vunpack.c.h.b16 %v261
    %v1545 = vunpack.c.l.b16 %v262
    %v1546 = vunpack.c.h.b16 %v262
    %v1547 = vunpack.c.l.b16 %v263
    %v1548 = vunpack.c.h.b16 %v263
    %v1549 = vunpack.c.l.b16 %v264
    %v1550 = vunpack.c.h.b16 %v264
    %v1551 = vunpack.c.l.b16 %v265
    %v1552 = vunpack.c.h.b16 %v265
    %v1553 = vunpack.c.l.b16 %v266
    %v1554 = vunpack.c.h.b16 %v266
    %v1555 = vunpack.c.l.b16 %v267
    %v1556 = vunpack.c.h.b16 %v267
    %v1557 = vunpack.c.l.b16 %v268
    %v1558 = vunpack.c.h.b16 %v268
    %v1559 = vunpack.c.l.b16 %v269
    %v1560 = vunpack.c.h.b16 %v269
    %v1561 = vunpack.c.l.b16 %v270
    %v1562 = vunpack.c.h.b16 %v270
    %v1563 = vunpack.c.l.b16 %v271
    %v1564 = vunpack.c.h.b16 %v271
    %v1565 = vunpack.c.l.b16 %v272
    %v1566 = vunpack.c.h.b16 %v272
    %v1567 = vunpack.c.l.b16 %v273
    %v1568 = vunpack.c.h.b16 %v273
    %v1569 = vunpack.c.l.b16 %v274
    %v1570 = vunpack.c.h.b16 %v274
    %v1571 = vunpack.c.l.b16 %v275
    %v1572 = vunpack.c.h.b16 %v275
    %v1573 = vunpack.c.l.b16 %v276
    %v1574 = vunpack.c.h.b16 %v276
    %v1575 = vunpack.c.l.b16 %v277
    %v1576 = vunpack.c.h.b16 %v277
    %v1577 = vunpack.c.l.b16 %v278
    %v1578 = vunpack.c.h.b16 %v278
    %v1579 = vunpack.c.l.b16 %v279
    %v1580 = vunpack.c.h.b16 %v279
    %v1581 = vunpack.c.l.b16 %v280
    %v1582 = vunpack.c.h.b16 %v280
    %v1583 = vunpack.c.l.b16 %v281
    %v1584 = vunpack.c.h.b16 %v281
    %v1585 = vunpack.c.l.b16 %v282
    %v1586 = vunpack.c.h.b16 %v282
    %v1587 = vunpack.c.l.b16 %v283
    %v1588 = vunpack.c.h.b16 %v283
    %v1589 = vunpack.c.l.b16 %v284
    %v1590 = vunpack.c.h.b16 %v284
    %v1591 = vunpack.c.l.b16 %v285
    %v1592 = vunpack.c.h.b16 %v285
    %v1593 = vunpack.c.l.b16 %v286
    %v1594 = vunpack.c.h.b16 %v286
    %v1595 = vunpack.c.l.b16 %v287
    %v1596 = vunpack.c.h.b16 %v287
    %v1597 = vunpack.c.l.b16 %v288
    %v1598 = vunpack.c.h.b16 %v288
    %v1599 = vunpack.c.l.b16 %v289
    %v1600 = vunpack.c.h.b16 %v289
    %v1601 = vunpack.c.l.b16 %v290
    %v1602 = vunpack.c.h.b16 %v290
    %v1603 = vunpack.c.l.b16 %v291
    %v1604 = vunpack.c.h.b16 %v291
    %v1605 = vunpack.c.l.b16 %v292
    %v1606 = vunpack.c.h.b16 %v292
    %v1607 = vunpack.c.l.b16 %v293
    %v1608 = vunpack.c.h.b16 %v293
    %v1609 = vunpack.c.l.b16 %v294
    %v1610 = vunpack.c.h.b16 %v294
    %v1611 = vunpack.c.l.b16 %v295
    %v1612 = vunpack.c.h.b16 %v295
    %v1613 = vunpack.c.l.b16 %v296
    %v1614 = vunpack.c.h.b16 %v296
    %v1615 = vunpack.c.l.b16 %v297
    %v1616 = vunpack.c.h.b16 %v297
    %v1617 = vunpack.c.l.b16 %v298
    %v1618 = vunpack.c.h.b16 %v298
    %v1619 = vunpack.c.l.b16 %v299
    %v1620 = vunpack.c.h.b16 %v299
    %v1621 = vunpack.c.l.b16 %v300
    %v1622 = vunpack.c.h.b16 %v300
    %v1623 = vunpack.c.l.b16 %v301
    %v1624 = vunpack.c.h.b16 %v301
    %v1625 = vunpack.c.l.b16 %v302
    %v1626 = vunpack.c.h.b16 %v302
    %v1627 = vunpack.c.l.b16 %v303
    %v1628 = vunpack.c.h.b16 %v303
    %v1629 = vunpack.c.l.b16 %v304
    %v1630 = vunpack.c.h.b16 %v304
    %v1631 = vunpack.c.l.b16 %v305
    %v1632 = vunpack.c.h.b16 %v305
    %v1633 = vunpack.c.l.b16 %v306
    %v1634 = vunpack.c.h.b16 %v306
    %v1635 = vunpack.c.l.b16 %v307
    %v1636 = vunpack.c.h.b16 %v307
    %v1637 = vunpack.c.l.b16 %v308
    %v1638 = vunpack.c.h.b16 %v308
    %v1639 = vunpack.c.l.b16 %v309
    %v1640 = vunpack.c.h.b16 %v309
    %v1641 = vunpack.c.l.b16 %v310
    %v1642 = vunpack.c.h.b16 %v310
    %v1643 = vunpack.c.l.b16 %v311
    %v1644 = vunpack.c.h.b16 %v311
    %v1645 = vunpack.c.l.b16 %v312
    %v1646 = vunpack.c.h.b16 %v312
    %v1647 = vunpack.c.l.b16 %v313
    %v1648 = vunpack.c.h.b16 %v313
    %v1649 = vunpack.c.l.b16 %v314
    %v1650 = vunpack.c.h.b16 %v314
    %v1651 = vunpack.c.l.b16 %v315
    %v1652 = vunpack.c.h.b16 %v315
    %v1653 = vunpack.c.l.b16 %v316
    %v1654 = vunpack.c.h.b16 %v316
    %v1655 = vunpack.c.l.b16 %v317
    %v1656 = vunpack.c.h.b16 %v317
    %v1657 = vunpack.c.l.b16 %v318
    %v1658 = vunpack.c.h.b16 %v318
    %v1659 = vunpack.c.l.b16 %v319
    %v1660 = vunpack.c.h.b16 %v319
    %v1661 = vunpack.c.l.b16 %v320
    %v1662 = vunpack.c.h.b16 %v320
    %v1663 = vunpack.c.l.b16 %v321
    %v1664 = vunpack.c.h.b16 %v321
    %v1665 = vunpack.c.l.b16 %v322
    %v1666 = vunpack.c.h.b16 %v322
    %v1667 = vunpack.c.l.b16 %v323
    %v1668 = vunpack.c.h.b16 %v323
    %v1669 = vunpack.c.l.b16 %v324
    %v1670 = vunpack.c.h.b16 %v324
    %v1671 = vunpack.c.l.b16 %v325
    %v1672 = vunpack.c.h.b16 %v325
    %v1673 = vunpack.c.l.b16 %v326
    %v1674 = vunpack.c.h.b16 %v326
    %v1675 = vunpack.c.l.b16 %v327
    %v1676 = vunpack.c.h.b16 %v327
    %v1677 = vunpack.c.l.b16 %v328
    %v1678 = vunpack.c.h.b16 %v328
    %v1679 = vunpack.c.l.b16 %v329
    %v1680 = vunpack.c.h.b16 %v329
    %v1681 = vunpack.c.l.b16 %v330
    %v1682 = vunpack.c.h.b16 %v330
    %v1683 = vunpack.c.l.b16 %v331
    %v1684 = vunpack.c.h.b16 %v331
    %v1685 = vunpack.c.l.b16 %v332
    %v1686 = vunpack.c.h.b16 %v332
    %v1687 = vunpack.c.l.b16 %v333
    %v1688 = vunpack.c.h.b16 %v333
    %v1689 = vunpack.c.l.b16 %v334
    %v1690 = vunpack.c.h.b16 %v334
    %v1691 = vunpack.c.l.b16 %v335
    %v1692 = vunpack.c.h.b16 %v335
    %v1693 = vunpack.c.l.b16 %v336
    %v1694 = vunpack.c.h.b16 %v336
    %v1695 = vunpack.c.l.b16 %v337
    %v1696 = vunpack.c.h.b16 %v337
    %v1697 = vunpack.c.l.b16 %v338
    %v1698 = vunpack.c.h.b16 %v338
    %v1699 = vunpack.c.l.b16 %v339
    %v1700 = vunpack.c.h.b16 %v339
    %v1701 = vunpack.c.l.b16 %v340
    %v1702 = vunpack.c.h.b16 %v340
    %v1703 = vunpack.c.l.b16 %v341
    %v1704 = vunpack.c.h.b16 %v341
    %v1705 = vunpack.c.l.b16 %v342
    %v1706 = vunpack.c.h.b16 %v342
    %v1707 = vunpack.c.l.b16 %v343
    %v1708 = vunpack.c.h.b16 %v343
    %v1709 = vunpack.c.l.b16 %v344
    %v1710 = vunpack.c.h.b16 %v344
    %v1711 = vunpack.c.l.b16 %v345
    %v1712 = vunpack.c.h.b16 %v345
    %v1713 = vunpack.c.l.b16 %v346
    %v1714 = vunpack.c.h.b16 %v346
    %v1715 = vunpack.c.l.b16 %v347
    %v1716 = vunpack.c.h.b16 %v347
    %v1717 = vunpack.c.l.b16 %v348
    %v1718 = vunpack.c.h.b16 %v348
    %v1719 = vunpack.c.l.b16 %v349
    %v1720 = vunpack.c.h.b16 %v349
    %v1721 = vunpack.c.l.b16 %v350
    %v1722 = vunpack.c.h.b16 %v350
    %v1723 = vunpack.c.l.b16 %v351
    %v1724 = vunpack.c.h.b16 %v351
    %v1725 = vunpack.c.l.b16 %v352
    %v1726 = vunpack.c.h.b16 %v352
    %v1727 = vunpack.c.l.b16 %v353
    %v1728 = vunpack.c.h.b16 %v353
    %v1729 = vunpack.c.l.b16 %v354
    %v1730 = vunpack.c.h.b16 %v354
    %v1731 = vunpack.c.l.b16 %v355
    %v1732 = vunpack.c.h.b16 %v355
    %v1733 = vunpack.c.l.b16 %v356
    %v1734 = vunpack.c.h.b16 %v356
    %v1735 = vunpack.c.l.b16 %v357
    %v1736 = vunpack.c.h.b16 %v357
    %v1737 = vunpack.c.l.b16 %v358
    %v1738 = vunpack.c.h.b16 %v358
    %v1739 = vunpack.c.l.b16 %v359
    %v1740 = vunpack.c.h.b16 %v359
    %v1741 = vunpack.c.l.b16 %v360
    %v1742 = vunpack.c.h.b16 %v360
    %v1743 = vunpack.c.l.b16 %v361
    %v1744 = vunpack.c.h.b16 %v361
    %v1745 = vunpack.c.l.b16 %v362
    %v1746 = vunpack.c.h.b16 %v362
    %v1747 = vunpack.c.l.b16 %v363
    %v1748 = vunpack.c.h.b16 %v363
    %v1749 = vunpack.c.l.b16 %v364
    %v1750 = vunpack.c.h.b16 %v364
    %v1751 = vunpack.c.l.b16 %v365
    %v1752 = vunpack.c.h.b16 %v365
    %v1753 = vunpack.c.l.b16 %v366
    %v1754 = vunpack.c.h.b16 %v366
    %v1755 = vunpack.c.l.b16 %v367
    %v1756 = vunpack.c.h.b16 %v367
    %v1757 = vunpack.c.l.b16 %v368
    %v1758 = vunpack.c.h.b16 %v368
    %v1759 = vunpack.c.l.b16 %v369
    %v1760 = vunpack.c.h.b16 %v369
    %v1761 = vunpack.c.l.b16 %v370
    %v1762 = vunpack.c.h.b16 %v370
    %v1763 = vunpack.c.l.b16 %v371
    %v1764 = vunpack.c.h.b16 %v371
    %v1765 = vunpack.c.l.b16 %v372
    %v1766 = vunpack.c.h.b16 %v372
    %v1767 = vunpack.c.l.b16 %v373
    %v1768 = vunpack.c.h.b16 %v373
    %v1769 = vunpack.c.l.b16 %v374
    %v1770 = vunpack.c.h.b16 %v374
    %v1771 = vunpack.c.l.b16 %v375
    %v1772 = vunpack.c.h.b16 %v375
    %v1773 = vunpack.c.l.b16 %v376
    %v1774 = vunpack.c.h.b16 %v376
    %v1775 = vunpack.c.l.b16 %v377
    %v1776 = vunpack.c.h.b16 %v377
    %v1777 = vunpack.c.l.b16 %v378
    %v1778 = vunpack.c.h.b16 %v378
    %v1779 = vunpack.c.l.b16 %v379
    %v1780 = vunpack.c.h.b16 %v379
    %v1781 = vunpack.c.l.b16 %v380
    %v1782 = vunpack.c.h.b16 %v380
    %v1783 = vunpack.c.l.b16 %v381
    %v1784 = vunpack.c.h.b16 %v381
    %v1785 = vunpack.c.l.b16 %v382
    %v1786 = vunpack.c.h.b16 %v382
    %v1787 = vunpack.c.l.b16 %v383
    %v1788 = vunpack.c.h.b16 %v383
    %v1789 = vunpack.c.l.b16 %v384
    %v1790 = vunpack.c.h.b16 %v384
    %v1791 = vunpack.c.l.b16 %v385
    %v1792 = vunpack.c.h.b16 %v385
    %v1793 = vunpack.c.l.b16 %v386
    %v1794 = vunpack.c.h.b16 %v386
    %v1795 = vunpack.c.l.b16 %v387
    %v1796 = vunpack.c.h.b16 %v387
    %v1797 = vunpack.c.l.b16 %v388
    %v1798 = vunpack.c.h.b16 %v388
    %v1799 = vunpack.c.l.b16 %v389
    %v1800 = vunpack.c.h.b16 %v389
    %v1801 = vunpack.c.l.b16 %v390
    %v1802 = vunpack.c.h.b16 %v390
    %v1803 = vunpack.c.l.b16 %v391
    %v1804 = vunpack.c.h.b16 %v391
    %v1805 = vunpack.c.l.b16 %v392
    %v1806 = vunpack.c.h.b16 %v392
    %v1807 = vunpack.c.l.b16 %v393
    %v1808 = vunpack.c.h.b16 %v393
    %v1809 = vunpack.c.l.b16 %v394
    %v1810 = vunpack.c.h.b16 %v394
    %v1811 = vunpack.c.l.b16 %v395
    %v1812 = vunpack.c.h.b16 %v395
    %v1813 = vunpack.c.l.b16 %v396
    %v1814 = vunpack.c.h.b16 %v396
    %v1815 = vunpack.c.l.b16 %v397
    %v1816 = vunpack.c.h.b16 %v397
    %v1817 = vunpack.c.l.b16 %v398
    %v1818 = vunpack.c.h.b16 %v398
    %v1819 = vunpack.c.l.b16 %v399
    %v1820 = vunpack.c.h.b16 %v399
    %v1821 = vunpack.c.l.b16 %v400
    %v1822 = vunpack.c.h.b16 %v400
    %v1823 = vunpack.c.l.b16 %v401
    %v1824 = vunpack.c.h.b16 %v401
    %v1825 = vunpack.c.l.b16 %v402
    %v1826 = vunpack.c.h.b16 %v402
    %v1827 = vunpack.c.l.b16 %v403
    %v1828 = vunpack.c.h.b16 %v403
    %v1829 = vunpack.c.l.b16 %v404
    %v1830 = vunpack.c.h.b16 %v404
    %v1831 = vunpack.c.l.b16 %v405
    %v1832 = vunpack.c.h.b16 %v405
    %v1833 = vunpack.c.l.b16 %v406
    %v1834 = vunpack.c.h.b16 %v406
    %v1835 = vunpack.c.l.b16 %v407
    %v1836 = vunpack.c.h.b16 %v407
    %v1837 = vunpack.c.l.b16 %v408
    %v1838 = vunpack.c.h.b16 %v408
    %v1839 = vunpack.c.l.b16 %v409
    %v1840 = vunpack.c.h.b16 %v409
    %v1841 = vunpack.c.l.b16 %v410
    %v1842 = vunpack.c.h.b16 %v410
    %v1843 = vunpack.c.l.b16 %v411
    %v1844 = vunpack.c.h.b16 %v411
    %v1845 = vunpack.c.l.b16 %v412
    %v1846 = vunpack.c.h.b16 %v412
    %v1847 = vunpack.c.l.b16 %v413
    %v1848 = vunpack.c.h.b16 %v413
    %v1849 = vunpack.c.l.b16 %v414
    %v1850 = vunpack.c.h.b16 %v414
    %v1851 = vunpack.c.l.b16 %v415
    %v1852 = vunpack.c.h.b16 %v415
    %v1853 = vunpack.c.l.b16 %v416
    %v1854 = vunpack.c.h.b16 %v416
    %v1855 = vunpack.c.l.b16 %v417
    %v1856 = vunpack.c.h.b16 %v417
    %v1857 = vunpack.c.l.b16 %v418
    %v1858 = vunpack.c.h.b16 %v418
    %v1859 = vunpack.c.l.b16 %v419
    %v1860 = vunpack.c.h.b16 %v419
    %v1861 = vunpack.c.l.b16 %v420
    %v1862 = vunpack.c.h.b16 %v420
    %v1863 = vunpack.c.l.b16 %v421
    %v1864 = vunpack.c.h.b16 %v421
    %v1865 = vunpack.c.l.b16 %v422
    %v1866 = vunpack.c.h.b16 %v422
    %v1867 = vunpack.c.l.b16 %v423
    %v1868 = vunpack.c.h.b16 %v423
    %v1869 = vunpack.c.l.b16 %v424
    %v1870 = vunpack.c.h.b16 %v424
    %v1871 = vunpack.c.l.b16 %v425
    %v1872 = vunpack.c.h.b16 %v425
    %v1873 = vunpack.c.l.b16 %v426
    %v1874 = vunpack.c.h.b16 %v426
    %v1875 = vunpack.c.l.b16 %v427
    %v1876 = vunpack.c.h.b16 %v427
    %v1877 = vunpack.c.l.b16 %v428
    %v1878 = vunpack.c.h.b16 %v428
    %v1879 = vunpack.c.l.b16 %v429
    %v1880 = vunpack.c.h.b16 %v429
    %v1881 = vunpack.c.l.b16 %v430
    %v1882 = vunpack.c.h.b16 %v430
    %v1883 = vunpack.c.l.b16 %v431
    %v1884 = vunpack.c.h.b16 %v431
    %v1885 = vunpack.c.l.b16 %v432
    %v1886 = vunpack.c.h.b16 %v432
    %v1887 = vunpack.c.l.b16 %v433
    %v1888 = vunpack.c.h.b16 %v433
    %v1889 = vunpack.c.l.b16 %v434
    %v1890 = vunpack.c.h.b16 %v434
    %v1891 = vunpack.c.l.b16 %v435
    %v1892 = vunpack.c.h.b16 %v435
    %v1893 = vunpack.c.l.b16 %v436
    %v1894 = vunpack.c.h.b16 %v436
    %v1895 = vunpack.c.l.b16 %v437
    %v1896 = vunpack.c.h.b16 %v437
    %v1897 = vunpack.c.l.b16 %v438
    %v1898 = vunpack.c.h.b16 %v438
    %v1899 = vunpack.c.l.b16 %v439
    %v1900 = vunpack.c.h.b16 %v439
    %v1901 = vunpack.c.l.b16 %v440
    %v1902 = vunpack.c.h.b16 %v440
    %v1903 = vunpack.c.l.b16 %v441
    %v1904 = vunpack.c.h.b16 %v441
    %v1905 = vunpack.c.l.b16 %v442
    %v1906 = vunpack.c.h.b16 %v442
    %v1907 = vunpack.c.l.b16 %v443
    %v1908 = vunpack.c.h.b16 %v443
    %v1909 = vunpack.c.l.b16 %v444
    %v1910 = vunpack.c.h.b16 %v444
    %v1911 = vunpack.c.l.b16 %v445
    %v1912 = vunpack.c.h.b16 %v445
    %v1913 = vunpack.c.l.b16 %v446
    %v1914 = vunpack.c.h.b16 %v446
    %v1915 = vunpack.c.l.b16 %v447
    %v1916 = vunpack.c.h.b16 %v447
    %v1917 = vunpack.c.l.b16 %v448
    %v1918 = vunpack.c.h.b16 %v448
    %v1919 = vunpack.c.l.b16 %v449
    %v1920 = vunpack.c.h.b16 %v449
    %v1921 = vunpack.c.l.b16 %v450
    %v1922 = vunpack.c.h.b16 %v450
    %v1923 = vunpack.c.l.b16 %v451
    %v1924 = vunpack.c.h.b16 %v451
    %v1925 = vunpack.c.l.b16 %v452
    %v1926 = vunpack.c.h.b16 %v452
    %v1927 = vunpack.c.l.b16 %v453
    %v1928 = vunpack.c.h.b16 %v453
    %v1929 = vunpack.c.l.b16 %v454
    %v1930 = vunpack.c.h.b16 %v454
    %v1931 = vunpack.c.l.b16 %v455
    %v1932 = vunpack.c.h.b16 %v455
    %v1933 = vunpack.c.l.b16 %v456
    %v1934 = vunpack.c.h.b16 %v456
    %v1935 = vunpack.c.l.b16 %v457
    %v1936 = vunpack.c.h.b16 %v457
    %v1937 = vunpack.c.l.b16 %v458
    %v1938 = vunpack.c.h.b16 %v458
    %v1939 = vunpack.c.l.b16 %v459
    %v1940 = vunpack.c.h.b16 %v459
    %v1941 = vunpack.c.l.b16 %v460
    %v1942 = vunpack.c.h.b16 %v460
    %v1943 = vunpack.c.l.b16 %v461
    %v1944 = vunpack.c.h.b16 %v461
    %v1945 = vunpack.c.l.b16 %v462
    %v1946 = vunpack.c.h.b16 %v462
    %v1947 = vunpack.c.l.b16 %v463
    %v1948 = vunpack.c.h.b16 %v463
    %v1949 = vunpack.c.l.b16 %v464
    %v1950 = vunpack.c.h.b16 %v464
    %v1951 = vunpack.c.l.b16 %v465
    %v1952 = vunpack.c.h.b16 %v465
    %v1953 = vunpack.c.l.b16 %v466
    %v1954 = vunpack.c.h.b16 %v466
    %v1955 = vunpack.c.l.b16 %v467
    %v1956 = vunpack.c.h.b16 %v467
    %v1957 = vunpack.c.l.b16 %v468
    %v1958 = vunpack.c.h.b16 %v468
    %v1959 = vunpack.c.l.b16 %v469
    %v1960 = vunpack.c.h.b16 %v469
    %v1961 = vunpack.c.l.b16 %v470
    %v1962 = vunpack.c.h.b16 %v470
    %v1963 = vunpack.c.l.b16 %v471
    %v1964 = vunpack.c.h.b16 %v471
    %v1965 = vunpack.c.l.b16 %v472
    %v1966 = vunpack.c.h.b16 %v472
    %v1967 = vunpack.c.l.b16 %v473
    %v1968 = vunpack.c.h.b16 %v473
    %v1969 = vunpack.c.l.b16 %v474
    %v1970 = vunpack.c.h.b16 %v474
    %v1971 = vunpack.c.l.b16 %v475
    %v1972 = vunpack.c.h.b16 %v475
    %v1973 = vunpack.c.l.b16 %v476
    %v1974 = vunpack.c.h.b16 %v476
    %v1975 = vunpack.c.l.b16 %v477
    %v1976 = vunpack.c.h.b16 %v477
    %v1977 = vunpack.c.l.b16 %v478
    %v1978 = vunpack.c.h.b16 %v478
    %v1979 = vunpack.c.l.b16 %v479
    %v1980 = vunpack.c.h.b16 %v479
    %v1981 = vunpack.c.l.b16 %v480
    %v1982 = vunpack.c.h.b16 %v480
    %v1983 = vunpack.c.l.b16 %v481
    %v1984 = vunpack.c.h.b16 %v481
    %v1985 = vunpack.c.l.b16 %v482
    %v1986 = vunpack.c.h.b16 %v482
    %v1987 = vunpack.c.l.b16 %v483
    %v1988 = vunpack.c.h.b16 %v483
    %v1989 = vunpack.c.l.b16 %v484
    %v1990 = vunpack.c.h.b16 %v484
    %v1991 = vunpack.c.l.b16 %v485
    %v1992 = vunpack.c.h.b16 %v485
    %v1993 = vunpack.c.l.b16 %v486
    %v1994 = vunpack.c.h.b16 %v486
    %v1995 = vunpack.c.l.b16 %v487
    %v1996 = vunpack.c.h.b16 %v487
    %v1997 = vunpack.c.l.b16 %v488
    %v1998 = vunpack.c.h.b16 %v488
    %v1999 = vunpack.c.l.b16 %v489
    %v2000 = vunpack.c.h.b16 %v489
    %v2001 = vunpack.c.l.b16 %v490
    %v2002 = vunpack.c.h.b16 %v490
    %v2003 = vunpack.c.l.b16 %v491
    %v2004 = vunpack.c.h.b16 %v491
    %v2005 = vunpack.c.l.b16 %v492
    %v2006 = vunpack.c.h.b16 %v492
    %v2007 = vunpack.c.l.b16 %v493
    %v2008 = vunpack.c.h.b16 %v493
    %v2009 = vunpack.c.l.b16 %v494
    %v2010 = vunpack.c.h.b16 %v494
    %v2011 = vunpack.c.l.b16 %v495
    %v2012 = vunpack.c.h.b16 %v495
    %v2013 = vunpack.c.l.b16 %v496
    %v2014 = vunpack.c.h.b16 %v496
    %v2015 = vunpack.c.l.b16 %v497
    %v2016 = vunpack.c.h.b16 %v497
    %v2017 = vunpack.c.l.b16 %v498
    %v2018 = vunpack.c.h.b16 %v498
    %v2019 = vunpack.c.l.b16 %v499
    %v2020 = vunpack.c.h.b16 %v499
    %v2021 = vunpack.c.l.b16 %v500
    %v2022 = vunpack.c.h.b16 %v500
    %v2023 = vunpack.c.l.b16 %v501
    %v2024 = vunpack.c.h.b16 %v501
    %v2025 = vunpack.c.l.b16 %v502
    %v2026 = vunpack.c.h.b16 %v502
    %v2027 = vunpack.c.l.b16 %v503
    %v2028 = vunpack.c.h.b16 %v503
    %v2029 = vunpack.c.l.b16 %v504
    %v2030 = vunpack.c.h.b16 %v504
    %v2031 = vunpack.c.l.b16 %v505
    %v2032 = vunpack.c.h.b16 %v505
    %v2033 = vunpack.c.l.b16 %v506
    %v2034 = vunpack.c.h.b16 %v506
    %v2035 = vunpack.c.l.b16 %v507
    %v2036 = vunpack.c.h.b16 %v507
    %v2037 = vunpack.c.l.b16 %v508
    %v2038 = vunpack.c.h.b16 %v508
    %v2039 = vunpack.c.l.b16 %v509
    %v2040 = vunpack.c.h.b16 %v509
    %v2041 = vunpack.c.l.b16 %v510
    %v2042 = vunpack.c.h.b16 %v510
    %v2043 = vunpack.c.l.b16 %v511
    %v2044 = vunpack.c.h.b16 %v511
    %v2045 = vunpack.c.l.b16 %v512
    %v2046 = vunpack.c.h.b16 %v512
    %v2047 = vunpack.c.l.b16 %v513
    %v2048 = vunpack.c.h.b16 %v513
    %v2049 = vunpack.c.l.b16 %v514
    %v2050 = vunpack.c.h.b16 %v514
    %v2051 = vunpack.c.l.b16 %v515
    %v2052 = vunpack.c.h.b16 %v515
    %v2053 = vunpack.c.l.b16 %v516
    %v2054 = vunpack.c.h.b16 %v516
    %v2055 = vunpack.c.l.b16 %v517
    %v2056 = vunpack.c.h.b16 %v517
    %v2057 = vunpack.c.l.b16 %v518
    %v2058 = vunpack.c.h.b16 %v518
    %v2059 = vunpack.c.l.b16 %v519
    %v2060 = vunpack.c.h.b16 %v519
    %v2061 = vunpack.c.l.b16 %v520
    %v2062 = vunpack.c.h.b16 %v520
    %v2063 = vunpack.c.l.b16 %v521
    %v2064 = vunpack.c.h.b16 %v521
    %v2065 = vunpack.c.l.b16 %v522
    %v2066 = vunpack.c.h.b16 %v522
    %v2067 = vunpack.c.l.b16 %v523
    %v2068 = vunpack.c.h.b16 %v523
    %v2069 = vpack.c.b16 %v1073, %v1069
    %v2070 = vpack.c.b16 %v1074, %v1070
    %v2071 = vpack.c.b16 %v1075, %v1071
    %v2072 = vpack.c.b16 %v1076, %v1072
    %v2073 = vpack.c.b16 %v1081, %v1077
    %v2074 = vpack.c.b16 %v1082, %v1078
    %v2075 = vpack.c.b16 %v1083, %v1079
    %v2076 = vpack.c.b16 %v1084, %v1080
    %v2077 = vpack.c.b16 %v1089, %v1085
    %v2078 = vpack.c.b16 %v1090, %v1086
    %v2079 = vpack.c.b16 %v1091, %v1087
    %v2080 = vpack.c.b16 %v1092, %v1088
    %v2081 = vpack.c.b16 %v1097, %v1093
    %v2082 = vpack.c.b16 %v1098, %v1094
    %v2083 = vpack.c.b16 %v1099, %v1095
    %v2084 = vpack.c.b16 %v1100, %v1096
    %v2085 = vpack.c.b16 %v1105, %v1101
    %v2086 = vpack.c.b16 %v1106, %v1102
    %v2087 = vpack.c.b16 %v1107, %v1103
    %v2088 = vpack.c.b16 %v1108, %v1104
    %v2089 = vpack.c.b16 %v1113, %v1109
    %v2090 = vpack.c.b16 %v1114, %v1110
    %v2091 = vpack.c.b16 %v1115, %v1111
    %v2092 = vpack.c.b16 %v1116, %v1112
    %v2093 = vpack.c.b16 %v1121, %v1117
    %v2094 = vpack.c.b16 %v1122, %v1118
    %v2095 = vpack.c.b16 %v1123, %v1119
    %v2096 = vpack.c.b16 %v1124, %v1120
    %v2097 = vpack.c.b16 %v1129, %v1125
    %v2098 = vpack.c.b16 %v1130, %v1126
    %v2099 = vpack.c.b16 %v1131, %v1127
    %v2100 = vpack.c.b16 %v1132, %v1128
    %v2101 = vpack.c.b16 %v1137, %v1133
    %v2102 = vpack.c.b16 %v1138, %v1134
    %v2103 = vpack.c.b16 %v1139, %v1135
    %v2104 = vpack.c.b16 %v1140, %v1136
    %v2105 = vpack.c.b16 %v1145, %v1141
    %v2106 = vpack.c.b16 %v1146, %v1142
    %v2107 = vpack.c.b16 %v1147, %v1143
    %v2108 = vpack.c.b16 %v1148, %v1144
    %v2109 = vpack.c.b16 %v1153, %v1149
    %v2110 = vpack.c.b16 %v1154, %v1150
    %v2111 = vpack.c.b16 %v1155, %v1151
    %v2112 = vpack.c.b16 %v1156, %v1152
    %v2113 = vpack.c.b16 %v1161, %v1157
    %v2114 = vpack.c.b16 %v1162, %v1158
    %v2115 = vpack.c.b16 %v1163, %v1159
    %v2116 = vpack.c.b16 %v1164, %v1160
    %v2117 = vpack.c.b16 %v1169, %v1165
    %v2118 = vpack.c.b16 %v1170, %v1166
    %v2119 = vpack.c.b16 %v1171, %v1167
    %v2120 = vpack.c.b16 %v1172, %v1168
    %v2121 = vpack.c.b16 %v1177, %v1173
    %v2122 = vpack.c.b16 %v1178, %v1174
    %v2123 = vpack.c.b16 %v1179, %v1175
    %v2124 = vpack.c.b16 %v1180, %v1176
    %v2125 = vpack.c.b16 %v1185, %v1181
    %v2126 = vpack.c.b16 %v1186, %v1182
    %v2127 = vpack.c.b16 %v1187, %v1183
    %v2128 = vpack.c.b16 %v1188, %v1184
    %v2129 = vpack.c.b16 %v1193, %v1189
    %v2130 = vpack.c.b16 %v1194, %v1190
    %v2131 = vpack.c.b16 %v1195, %v1191
    %v2132 = vpack.c.b16 %v1196, %v1192
    %v2133 = vpack.c.b16 %v1201, %v1197
    %v2134 = vpack.c.b16 %v1202, %v1198
    %v2135 = vpack.c.b16 %v1203, %v1199
    %v2136 = vpack.c.b16 %v1204, %v1200
    %v2137 = vpack.c.b16 %v1209, %v1205
    %v2138 = vpack.c.b16 %v1210, %v1206
    %v2139 = vpack.c.b16 %v1211, %v1207
    %v2140 = vpack.c.b16 %v1212, %v1208
    %v2141 = vpack.c.b16 %v1217, %v1213
    %v2142 = vpack.c.b16 %v1218, %v1214
    %v2143 = vpack.c.b16 %v1219, %v1215
    %v2144 = vpack.c.b16 %v1220, %v1216
    %v2145 = vpack.c.b16 %v1225, %v1221
    %v2146 = vpack.c.b16 %v1226, %v1222
    %v2147 = vpack.c.b16 %v1227, %v1223
    %v2148 = vpack.c.b16 %v1228, %v1224
    %v2149 = vpack.c.b16 %v1233, %v1229
    %v2150 = vpack.c.b16 %v1234, %v1230
    %v2151 = vpack.c.b16 %v1235, %v1231
    %v2152 = vpack.c.b16 %v1236, %v1232
    %v2153 = vpack.c.b16 %v1241, %v1237
    %v2154 = vpack.c.b16 %v1242, %v1238
    %v2155 = vpack.c.b16 %v1243, %v1239
    %v2156 = vpack.c.b16 %v1244, %v1240
    %v2157 = vpack.c.b16 %v1249, %v1245
    %v2158 = vpack.c.b16 %v1250, %v1246
    %v2159 = vpack.c.b16 %v1251, %v1247
    %v2160 = vpack.c.b16 %v1252, %v1248
    %v2161 = vpack.c.b16 %v1257, %v1253
    %v2162 = vpack.c.b16 %v1258, %v1254
    %v2163 = vpack.c.b16 %v1259, %v1255
    %v2164 = vpack.c.b16 %v1260, %v1256
    %v2165 = vpack.c.b16 %v1265, %v1261
    %v2166 = vpack.c.b16 %v1266, %v1262
    %v2167 = vpack.c.b16 %v1267, %v1263
    %v2168 = vpack.c.b16 %v1268, %v1264
    %v2169 = vpack.c.b16 %v1273, %v1269
    %v2170 = vpack.c.b16 %v1274, %v1270
    %v2171 = vpack.c.b16 %v1275, %v1271
    %v2172 = vpack.c.b16 %v1276, %v1272
    %v2173 = vpack.c.b16 %v1281, %v1277
    %v2174 = vpack.c.b16 %v1282, %v1278
    %v2175 = vpack.c.b16 %v1283, %v1279
    %v2176 = vpack.c.b16 %v1284, %v1280
    %v2177 = vpack.c.b16 %v1289, %v1285
    %v2178 = vpack.c.b16 %v1290, %v1286
    %v2179 = vpack.c.b16 %v1291, %v1287
    %v2180 = vpack.c.b16 %v1292, %v1288
    %v2181 = vpack.c.b16 %v1297, %v1293
    %v2182 = vpack.c.b16 %v1298, %v1294
    %v2183 = vpack.c.b16 %v1299, %v1295
    %v2184 = vpack.c.b16 %v1300, %v1296
    %v2185 = vpack.c.b16 %v1305, %v1301
    %v2186 = vpack.c.b16 %v1306, %v1302
    %v2187 = vpack.c.b16 %v1307, %v1303
    %v2188 = vpack.c.b16 %v1308, %v1304
    %v2189 = vpack.c.b16 %v1313, %v1309
    %v2190 = vpack.c.b16 %v1314, %v1310
    %v2191 = vpack.c.b16 %v1315, %v1311
    %v2192 = vpack.c.b16 %v1316, %v1312
    %v2193 = vpack.c.b16 %v1321, %v1317
    %v2194 = vpack.c.b16 %v1322, %v1318
    %v2195 = vpack.c.b16 %v1323, %v1319
    %v2196 = vpack.c.b16 %v1324, %v1320
    %v2197 = vpack.c.b16 %v1329, %v1325
    %v2198 = vpack.c.b16 %v1330, %v1326
    %v2199 = vpack.c.b16 %v1331, %v1327
    %v2200 = vpack.c.b16 %v1332, %v1328
    %v2201 = vpack.c.b16 %v1337, %v1333
    %v2202 = vpack.c.b16 %v1338, %v1334
    %v2203 = vpack.c.b16 %v1339, %v1335
    %v2204 = vpack.c.b16 %v1340, %v1336
    %v2205 = vpack.c.b16 %v1345, %v1341
    %v2206 = vpack.c.b16 %v1346, %v1342
    %v2207 = vpack.c.b16 %v1347, %v1343
    %v2208 = vpack.c.b16 %v1348, %v1344
    %v2209 = vpack.c.b16 %v1353, %v1349
    %v2210 = vpack.c.b16 %v1354, %v1350
    %v2211 = vpack.c.b16 %v1355, %v1351
    %v2212 = vpack.c.b16 %v1356, %v1352
    %v2213 = vpack.c.b16 %v1361, %v1357
    %v2214 = vpack.c.b16 %v1362, %v1358
    %v2215 = vpack.c.b16 %v1363, %v1359
    %v2216 = vpack.c.b16 %v1364, %v1360
    %v2217 = vpack.c.b16 %v1369, %v1365
    %v2218 = vpack.c.b16 %v1370, %v1366
    %v2219 = vpack.c.b16 %v1371, %v1367
    %v2220 = vpack.c.b16 %v1372, %v1368
    %v2221 = vpack.c.b16 %v1377, %v1373
    %v2222 = vpack.c.b16 %v1378, %v1374
    %v2223 = vpack.c.b16 %v1379, %v1375
    %v2224 = vpack.c.b16 %v1380, %v1376
    %v2225 = vpack.c.b16 %v1385, %v1381
    %v2226 = vpack.c.b16 %v1386, %v1382
    %v2227 = vpack.c.b16 %v1387, %v1383
    %v2228 = vpack.c.b16 %v1388, %v1384
    %v2229 = vpack.c.b16 %v1393, %v1389
    %v2230 = vpack.c.b16 %v1394, %v1390
    %v2231 = vpack.c.b16 %v1395, %v1391
    %v2232 = vpack.c.b16 %v1396, %v1392
    %v2233 = vpack.c.b16 %v1401, %v1397
    %v2234 = vpack.c.b16 %v1402, %v1398
    %v2235 = vpack.c.b16 %v1403, %v1399
    %v2236 = vpack.c.b16 %v1404, %v1400
    %v2237 = vpack.c.b16 %v1409, %v1405
    %v2238 = vpack.c.b16 %v1410, %v1406
    %v2239 = vpack.c.b16 %v1411, %v1407
    %v2240 = vpack.c.b16 %v1412, %v1408
    %v2241 = vpack.c.b16 %v1417, %v1413
    %v2242 = vpack.c.b16 %v1418, %v1414
    %v2243 = vpack.c.b16 %v1419, %v1415
    %v2244 = vpack.c.b16 %v1420, %v1416
    %v2245 = vpack.c.b16 %v1425, %v1421
    %v2246 = vpack.c.b16 %v1426, %v1422
    %v2247 = vpack.c.b16 %v1427, %v1423
    %v2248 = vpack.c.b16 %v1428, %v1424
    %v2249 = vpack.c.b16 %v1433, %v1429
    %v2250 = vpack.c.b16 %v1434, %v1430
    %v2251 = vpack.c.b16 %v1435, %v1431
    %v2252 = vpack.c.b16 %v1436, %v1432
    %v2253 = vpack.c.b16 %v1441, %v1437
    %v2254 = vpack.c.b16 %v1442, %v1438
    %v2255 = vpack.c.b16 %v1443, %v1439
    %v2256 = vpack.c.b16 %v1444, %v1440
    %v2257 = vpack.c.b16 %v1449, %v1445
    %v2258 = vpack.c.b16 %v1450, %v1446
    %v2259 = vpack.c.b16 %v1451, %v1447
    %v2260 = vpack.c.b16 %v1452, %v1448
    %v2261 = vpack.c.b16 %v1457, %v1453
    %v2262 = vpack.c.b16 %v1458, %v1454
    %v2263 = vpack.c.b16 %v1459, %v1455
    %v2264 = vpack.c.b16 %v1460, %v1456
    %v2265 = vpack.c.b16 %v1465, %v1461
    %v2266 = vpack.c.b16 %v1466, %v1462
    %v2267 = vpack.c.b16 %v1467, %v1463
    %v2268 = vpack.c.b16 %v1468, %v1464
    %v2269 = vpack.c.b16 %v1473, %v1469
    %v2270 = vpack.c.b16 %v1474, %v1470
    %v2271 = vpack.c.b16 %v1475, %v1471
    %v2272 = vpack.c.b16 %v1476, %v1472
    %v2273 = vpack.c.b16 %v1481, %v1477
    %v2274 = vpack.c.b16 %v1482, %v1478
    %v2275 = vpack.c.b16 %v1483, %v1479
    %v2276 = vpack.c.b16 %v1484, %v1480
    %v2277 = vpack.c.b16 %v1489, %v1485
    %v2278 = vpack.c.b16 %v1490, %v1486
    %v2279 = vpack.c.b16 %v1491, %v1487
    %v2280 = vpack.c.b16 %v1492, %v1488
    %v2281 = vpack.c.b16 %v1497, %v1493
    %v2282 = vpack.c.b16 %v1498, %v1494
    %v2283 = vpack.c.b16 %v1499, %v1495
    %v2284 = vpack.c.b16 %v1500, %v1496
    %v2285 = vpack.c.b16 %v1505, %v1501
    %v2286 = vpack.c.b16 %v1506, %v1502
    %v2287 = vpack.c.b16 %v1507, %v1503
    %v2288 = vpack.c.b16 %v1508, %v1504
    %v2289 = vpack.c.b16 %v1513, %v1509
    %v2290 = vpack.c.b16 %v1514, %v1510
    %v2291 = vpack.c.b16 %v1515, %v1511
    %v2292 = vpack.c.b16 %v1516, %v1512
    %v2293 = vpack.c.b16 %v1521, %v1517
    %v2294 = vpack.c.b16 %v1522, %v1518
    %v2295 = vpack.c.b16 %v1523, %v1519
    %v2296 = vpack.c.b16 %v1524, %v1520
    %v2297 = vpack.c.b16 %v1529, %v1525
    %v2298 = vpack.c.b16 %v1530, %v1526
    %v2299 = vpack.c.b16 %v1531, %v1527
    %v2300 = vpack.c.b16 %v1532, %v1528
    %v2301 = vpack.c.b16 %v1537, %v1533
    %v2302 = vpack.c.b16 %v1538, %v1534
    %v2303 = vpack.c.b16 %v1539, %v1535
    %v2304 = vpack.c.b16 %v1540, %v1536
    %v2305 = vpack.c.b16 %v1545, %v1541
    %v2306 = vpack.c.b16 %v1546, %v1542
    %v2307 = vpack.c.b16 %v1547, %v1543
    %v2308 = vpack.c.b16 %v1548, %v1544
    %v2309 = vpack.c.b16 %v1553, %v1549
    %v2310 = vpack.c.b16 %v1554, %v1550
    %v2311 = vpack.c.b16 %v1555, %v1551
    %v2312 = vpack.c.b16 %v1556, %v1552
    %v2313 = vpack.c.b16 %v1561, %v1557
    %v2314 = vpack.c.b16 %v1562, %v1558
    %v2315 = vpack.c.b16 %v1563, %v1559
    %v2316 = vpack.c.b16 %v1564, %v1560
    %v2317 = vpack.c.b16 %v1569, %v1565
    %v2318 = vpack.c.b16 %v1570, %v1566
    %v2319 = vpack.c.b16 %v1571, %v1567
    %v2320 = vpack.c.b16 %v1572, %v1568
    %v2321 = vpack.c.b16 %v1577, %v1573
    %v2322 = vpack.c.b16 %v1578, %v1574
    %v2323 = vpack.c.b16 %v1579, %v1575
    %v2324 = vpack.c.b16 %v1580, %v1576
    %v2325 = vpack.c.b16 %v1585, %v1581
    %v2326 = vpack.c.b16 %v1586, %v1582
    %v2327 = vpack.c.b16 %v1587, %v1583
    %v2328 = vpack.c.b16 %v1588, %v1584
    %v2329 = vpack.c.b16 %v1593, %v1589
    %v2330 = vpack.c.b16 %v1594, %v1590
    %v2331 = vpack.c.b16 %v1595, %v1591
    %v2332 = vpack.c.b16 %v1596, %v1592
    %v2333 = vpack.c.b16 %v1601, %v1597
    %v2334 = vpack.c.b16 %v1602, %v1598
    %v2335 = vpack.c.b16 %v1603, %v1599
    %v2336 = vpack.c.b16 %v1604, %v1600
    %v2337 = vpack.c.b16 %v1609, %v1605
    %v2338 = vpack.c.b16 %v1610, %v1606
    %v2339 = vpack.c.b16 %v1611, %v1607
    %v2340 = vpack.c.b16 %v1612, %v1608
    %v2341 = vpack.c.b16 %v1617, %v1613
    %v2342 = vpack.c.b16 %v1618, %v1614
    %v2343 = vpack.c.b16 %v1619, %v1615
    %v2344 = vpack.c.b16 %v1620, %v1616
    %v2345 = vpack.c.b16 %v1625, %v1621
    %v2346 = vpack.c.b16 %v1626, %v1622
    %v2347 = vpack.c.b16 %v1627, %v1623
    %v2348 = vpack.c.b16 %v1628, %v1624
    %v2349 = vpack.c.b16 %v1633, %v1629
    %v2350 = vpack.c.b16 %v1634, %v1630
    %v2351 = vpack.c.b16 %v1635, %v1631
    %v2352 = vpack.c.b16 %v1636, %v1632
    %v2353 = vpack.c.b16 %v1641, %v1637
    %v2354 = vpack.c.b16 %v1642, %v1638
    %v2355 = vpack.c.b16 %v1643, %v1639
    %v2356 = vpack.c.b16 %v1644, %v1640
    %v2357 = vpack.c.b16 %v1649, %v1645
    %v2358 = vpack.c.b16 %v1650, %v1646
    %v2359 = vpack.c.b16 %v1651, %v1647
    %v2360 = vpack.c.b16 %v1652, %v1648
    %v2361 = vpack.c.b16 %v1657, %v1653
    %v2362 = vpack.c.b16 %v1658, %v1654
    %v2363 = vpack.c.b16 %v1659, %v1655
    %v2364 = vpack.c.b16 %v1660, %v1656
    %v2365 = vpack.c.b16 %v1665, %v1661
    %v2366 = vpack.c.b16 %v1666, %v1662
    %v2367 = vpack.c.b16 %v1667, %v1663
    %v2368 = vpack.c.b16 %v1668, %v1664
    %v2369 = vpack.c.b16 %v1673, %v1669
    %v2370 = vpack.c.b16 %v1674, %v1670
    %v2371 = vpack.c.b16 %v1675, %v1671
    %v2372 = vpack.c.b16 %v1676, %v1672
    %v2373 = vpack.c.b16 %v1681, %v1677
    %v2374 = vpack.c.b16 %v1682, %v1678
    %v2375 = vpack.c.b16 %v1683, %v1679
    %v2376 = vpack.c.b16 %v1684, %v1680
    %v2377 = vpack.c.b16 %v1689, %v1685
    %v2378 = vpack.c.b16 %v1690, %v1686
    %v2379 = vpack.c.b16 %v1691, %v1687
    %v2380 = vpack.c.b16 %v1692, %v1688
    %v2381 = vpack.c.b16 %v1697, %v1693
    %v2382 = vpack.c.b16 %v1698, %v1694
    %v2383 = vpack.c.b16 %v1699, %v1695
    %v2384 = vpack.c.b16 %v1700, %v1696
    %v2385 = vpack.c.b16 %v1705, %v1701
    %v2386 = vpack.c.b16 %v1706, %v1702
    %v2387 = vpack.c.b16 %v1707, %v1703
    %v2388 = vpack.c.b16 %v1708, %v1704
    %v2389 = vpack.c.b16 %v1713, %v1709
    %v2390 = vpack.c.b16 %v1714, %v1710
    %v2391 = vpack.c.b16 %v1715, %v1711
    %v2392 = vpack.c.b16 %v1716, %v1712
    %v2393 = vpack.c.b16 %v1721, %v1717
    %v2394 = vpack.c.b16 %v1722, %v1718
    %v2395 = vpack.c.b16 %v1723, %v1719
    %v2396 = vpack.c.b16 %v1724, %v1720
    %v2397 = vpack.c.b16 %v1729, %v1725
    %v2398 = vpack.c.b16 %v1730, %v1726
    %v2399 = vpack.c.b16 %v1731, %v1727
    %v2400 = vpack.c.b16 %v1732, %v1728
    %v2401 = vpack.c.b16 %v1737, %v1733
    %v2402 = vpack.c.b16 %v1738, %v1734
    %v2403 = vpack.c.b16 %v1739, %v1735
    %v2404 = vpack.c.b16 %v1740, %v1736
    %v2405 = vpack.c.b16 %v1745, %v1741
    %v2406 = vpack.c.b16 %v1746, %v1742
    %v2407 = vpack.c.b16 %v1747, %v1743
    %v2408 = vpack.c.b16 %v1748, %v1744
    %v2409 = vpack.c.b16 %v1753, %v1749
    %v2410 = vpack.c.b16 %v1754, %v1750
    %v2411 = vpack.c.b16 %v1755, %v1751
    %v2412 = vpack.c.b16 %v1756, %v1752
    %v2413 = vpack.c.b16 %v1761, %v1757
    %v2414 = vpack.c.b16 %v1762, %v1758
    %v2415 = vpack.c.b16 %v1763, %v1759
    %v2416 = vpack.c.b16 %v1764, %v1760
    %v2417 = vpack.c.b16 %v1769, %v1765
    %v2418 = vpack.c.b16 %v1770, %v1766
    %v2419 = vpack.c.b16 %v1771, %v1767
    %v2420 = vpack.c.b16 %v1772, %v1768
    %v2421 = vpack.c.b16 %v1777, %v1773
    %v2422 = vpack.c.b16 %v1778, %v1774
    %v2423 = vpack.c.b16 %v1779, %v1775
    %v2424 = vpack.c.b16 %v1780, %v1776
    %v2425 = vpack.c.b16 %v1785, %v1781
    %v2426 = vpack.c.b16 %v1786, %v1782
    %v2427 = vpack.c.b16 %v1787, %v1783
    %v2428 = vpack.c.b16 %v1788, %v1784
    %v2429 = vpack.c.b16 %v1793, %v1789
    %v2430 = vpack.c.b16 %v1794, %v1790
    %v2431 = vpack.c.b16 %v1795, %v1791
    %v2432 = vpack.c.b16 %v1796, %v1792
    %v2433 = vpack.c.b16 %v1801, %v1797
    %v2434 = vpack.c.b16 %v1802, %v1798
    %v2435 = vpack.c.b16 %v1803, %v1799
    %v2436 = vpack.c.b16 %v1804, %v1800
    %v2437 = vpack.c.b16 %v1809, %v1805
    %v2438 = vpack.c.b16 %v1810, %v1806
    %v2439 = vpack.c.b16 %v1811, %v1807
    %v2440 = vpack.c.b16 %v1812, %v1808
    %v2441 = vpack.c.b16 %v1817, %v1813
    %v2442 = vpack.c.b16 %v1818, %v1814
    %v2443 = vpack.c.b16 %v1819, %v1815
    %v2444 = vpack.c.b16 %v1820, %v1816
    %v2445 = vpack.c.b16 %v1825, %v1821
    %v2446 = vpack.c.b16 %v1826, %v1822
    %v2447 = vpack.c.b16 %v1827, %v1823
    %v2448 = vpack.c.b16 %v1828, %v1824
    %v2449 = vpack.c.b16 %v1833, %v1829
    %v2450 = vpack.c.b16 %v1834, %v1830
    %v2451 = vpack.c.b16 %v1835, %v1831
    %v2452 = vpack.c.b16 %v1836, %v1832
    %v2453 = vpack.c.b16 %v1841, %v1837
    %v2454 = vpack.c.b16 %v1842, %v1838
    %v2455 = vpack.c.b16 %v1843, %v1839
    %v2456 = vpack.c.b16 %v1844, %v1840
    %v2457 = vpack.c.b16 %v1849, %v1845
    %v2458 = vpack.c.b16 %v1850, %v1846
    %v2459 = vpack.c.b16 %v1851, %v1847
    %v2460 = vpack.c.b16 %v1852, %v1848
    %v2461 = vpack.c.b16 %v1857, %v1853
    %v2462 = vpack.c.b16 %v1858, %v1854
    %v2463 = vpack.c.b16 %v1859, %v1855
    %v2464 = vpack.c.b16 %v1860, %v1856
    %v2465 = vpack.c.b16 %v1865, %v1861
    %v2466 = vpack.c.b16 %v1866, %v1862
    %v2467 = vpack.c.b16 %v1867, %v1863
    %v2468 = vpack.c.b16 %v1868, %v1864
    %v2469 = vpack.c.b16 %v1873, %v1869
    %v2470 = vpack.c.b16 %v1874, %v1870
    %v2471 = vpack.c.b16 %v1875, %v1871
    %v2472 = vpack.c.b16 %v1876, %v1872
    %v2473 = vpack.c.b16 %v1881, %v1877
    %v2474 = vpack.c.b16 %v1882, %v1878
    %v2475 = vpack.c.b16 %v1883, %v1879
    %v2476 = vpack.c.b16 %v1884, %v1880
    %v2477 = vpack.c.b16 %v1889, %v1885
    %v2478 = vpack.c.b16 %v1890, %v1886
    %v2479 = vpack.c.b16 %v1891, %v1887
    %v2480 = vpack.c.b16 %v1892, %v1888
    %v2481 = vpack.c.b16 %v1897, %v1893
    %v2482 = vpack.c.b16 %v1898, %v1894
    %v2483 = vpack.c.b16 %v1899, %v1895
    %v2484 = vpack.c.b16 %v1900, %v1896
    %v2485 = vpack.c.b16 %v1905, %v1901
    %v2486 = vpack.c.b16 %v1906, %v1902
    %v2487 = vpack.c.b16 %v1907, %v1903
    %v2488 = vpack.c.b16 %v1908, %v1904
    %v2489 = vpack.c.b16 %v1913, %v1909
    %v2490 = vpack.c.b16 %v1914, %v1910
    %v2491 = vpack.c.b16 %v1915, %v1911
    %v2492 = vpack.c.b16 %v1916, %v1912
    %v2493 = vpack.c.b16 %v1921, %v1917
    %v2494 = vpack.c.b16 %v1922, %v1918
    %v2495 = vpack.c.b16 %v1923, %v1919
    %v2496 = vpack.c.b16 %v1924, %v1920
    %v2497 = vpack.c.b16 %v1929, %v1925
    %v2498 = vpack.c.b16 %v1930, %v1926
    %v2499 = vpack.c.b16 %v1931, %v1927
    %v2500 = vpack.c.b16 %v1932, %v1928
    %v2501 = vpack.c.b16 %v1937, %v1933
    %v2502 = vpack.c.b16 %v1938, %v1934
    %v2503 = vpack.c.b16 %v1939, %v1935
    %v2504 = vpack.c.b16 %v1940, %v1936
    %v2505 = vpack.c.b16 %v1945, %v1941
    %v2506 = vpack.c.b16 %v1946, %v1942
    %v2507 = vpack.c.b16 %v1947, %v1943
    %v2508 = vpack.c.b16 %v1948, %v1944
    %v2509 = vpack.c.b16 %v1953, %v1949
    %v2510 = vpack.c.b16 %v1954, %v1950
    %v2511 = vpack.c.b16 %v1955, %v1951
    %v2512 = vpack.c.b16 %v1956, %v1952
    %v2513 = vpack.c.b16 %v1961, %v1957
    %v2514 = vpack.c.b16 %v1962, %v1958
    %v2515 = vpack.c.b16 %v1963, %v1959
    %v2516 = vpack.c.b16 %v1964, %v1960
    %v2517 = vpack.c.b16 %v1969, %v1965
    %v2518 = vpack.c.b16 %v1970, %v1966
    %v2519 = vpack.c.b16 %v1971, %v1967
    %v2520 = vpack.c.b16 %v1972, %v1968
    %v2521 = vpack.c.b16 %v1977, %v1973
    %v2522 = vpack.c.b16 %v1978, %v1974
    %v2523 = vpack.c.b16 %v1979, %v1975
    %v2524 = vpack.c.b16 %v1980, %v1976
    %v2525 = vpack.c.b16 %v1985, %v1981
    %v2526 = vpack.c.b16 %v1986, %v1982
    %v2527 = vpack.c.b16 %v1987, %v1983
    %v2528 = vpack.c.b16 %v1988, %v1984
    %v2529 = vpack.c.b16 %v1993, %v1989
    %v2530 = vpack.c.b16 %v1994, %v1990
    %v2531 = vpack.c.b16 %v1995, %v1991
    %v2532 = vpack.c.b16 %v1996, %v1992
    %v2533 = vpack.c.b16 %v2001, %v1997
    %v2534 = vpack.c.b16 %v2002, %v1998
    %v2535 = vpack.c.b16 %v2003, %v1999
    %v2536 = vpack.c.b16 %v2004, %v2000
    %v2537 = vpack.c.b16 %v2009, %v2005
    %v2538 = vpack.c.b16 %v2010, %v2006
    %v2539 = vpack.c.b16 %v2011, %v2007
    %v2540 = vpack.c.b16 %v2012, %v2008
    %v2541 = vpack.c.b16 %v2017, %v2013
    %v2542 = vpack.c.b16 %v2018, %v2014
    %v2543 = vpack.c.b16 %v2019, %v2015
    %v2544 = vpack.c.b16 %v2020, %v2016
    %v2545 = vpack.c.b16 %v2025, %v2021
    %v2546 = vpack.c.b16 %v2026, %v2022
    %v2547 = vpack.c.b16 %v2027, %v2023
    %v2548 = vpack.c.b16 %v2028, %v2024
    %v2549 = vpack.c.b16 %v2033, %v2029
    %v2550 = vpack.c.b16 %v2034, %v2030
    %v2551 = vpack.c.b16 %v2035, %v2031
    %v2552 = vpack.c.b16 %v2036, %v2032
    %v2553 = vpack.c.b16 %v2041, %v2037
    %v2554 = vpack.c.b16 %v2042, %v2038
    %v2555 = vpack.c.b16 %v2043, %v2039
    %v2556 = vpack.c.b16 %v2044, %v2040
    %v2557 = vpack.c.b16 %v2049, %v2045
    %v2558 = vpack.c.b16 %v2050, %v2046
    %v2559 = vpack.c.b16 %v2051, %v2047
    %v2560 = vpack.c.b16 %v2052, %v2048
    %v2561 = vpack.c.b16 %v2057, %v2053
    %v2562 = vpack.c.b16 %v2058, %v2054
    %v2563 = vpack.c.b16 %v2059, %v2055
    %v2564 = vpack.c.b16 %v2060, %v2056
    %v2565 = vpack.c.b16 %v2065, %v2061
    %v2566 = vpack.c.b16 %v2066, %v2062
    %v2567 = vpack.c.b16 %v2067, %v2063
    %v2568 = vpack.c.b16 %v2068, %v2064
    %vm3069 = vcmask 654336
    %v3070 = vsel %vm3069, %v553, 0
    %3072 = vmatpush.bf16.msra.mxu0 %v2097
    %3073 = vmatpush.bf16.msra.mxu0 %v2093
    %3074 = vmatpush.bf16.msra.mxu0 %v2089
    %3075 = vmatpush.bf16.msra.mxu0 %v2085
    %3076 = vmatpush.bf16.msra.mxu0 %v2081
    %3077 = vmatpush.bf16.msra.mxu0 %v2077
    %3078 = vmatpush.bf16.msra.mxu0 %v2073
    %3079 = vmatpush.bf16.msra.mxu0 %v2069
    %3080 = vmatmul.bf16.gmra.mxu0 %v536
    %v3081 = vpop.f32.mrf.mxu0
    %v3082 = vadd.f32 %v526, %v3081
    %v3083 = vpop.f32.mrf.mxu0
    %3084 = vdwg.mxu0
    %3085 = vmatpush.bf16.msra.mxu0 %v2129
    %3086 = vmatpush.bf16.msra.mxu0 %v2125
    %3087 = vmatpush.bf16.msra.mxu0 %v2121
    %3088 = vmatpush.bf16.msra.mxu0 %v2117
    %3089 = vmatpush.bf16.msra.mxu0 %v2113
    %3090 = vmatpush.bf16.msra.mxu0 %v2109
    %3091 = vmatpush.bf16.msra.mxu0 %v2105
    %3092 = vmatpush.bf16.msra.mxu0 %v2101
    %3093 = vmatmul.bf16.gmra.mxu0 %v537
    %v3094 = vpop.f32.mrf.mxu0
    %v3095 = vadd.f32 %v3082, %v3094
    %v3096 = vpop.f32.mrf.mxu0
    %3097 = vdwg.mxu0
    %3098 = vmatpush.bf16.msra.mxu0 %v2161
    %3099 = vmatpush.bf16.msra.mxu0 %v2157
    %3100 = vmatpush.bf16.msra.mxu0 %v2153
    %3101 = vmatpush.bf16.msra.mxu0 %v2149
    %3102 = vmatpush.bf16.msra.mxu0 %v2145
    %3103 = vmatpush.bf16.msra.mxu0 %v2141
    %3104 = vmatpush.bf16.msra.mxu0 %v2137
    %3105 = vmatpush.bf16.msra.mxu0 %v2133
    %3106 = vmatmul.bf16.gmra.mxu0 %v538
    %v3107 = vpop.f32.mrf.mxu0
    %v3108 = vadd.f32 %v3095, %v3107
    %v3109 = vpop.f32.mrf.mxu0
    %3110 = vdwg.mxu0
    %3111 = vmatpush.bf16.msra.mxu0 %v2193
    %3112 = vmatpush.bf16.msra.mxu0 %v2189
    %3113 = vmatpush.bf16.msra.mxu0 %v2185
    %3114 = vmatpush.bf16.msra.mxu0 %v2181
    %3115 = vmatpush.bf16.msra.mxu0 %v2177
    %3116 = vmatpush.bf16.msra.mxu0 %v2173
    %3117 = vmatpush.bf16.msra.mxu0 %v2169
    %3118 = vmatpush.bf16.msra.mxu0 %v2165
    %3119 = vmatmul.bf16.gmra.mxu0 %v539
    %v3120 = vpop.f32.mrf.mxu0
    %v3121 = vadd.f32 %v3108, %v3120
    %v3122 = vpop.f32.mrf.mxu0
    %3123 = vdwg.mxu0
    %3124 = vmatpush.bf16.msra.mxu0 %v2225
    %3125 = vmatpush.bf16.msra.mxu0 %v2221
    %3126 = vmatpush.bf16.msra.mxu0 %v2217
    %3127 = vmatpush.bf16.msra.mxu0 %v2213
    %3128 = vmatpush.bf16.msra.mxu0 %v2209
    %3129 = vmatpush.bf16.msra.mxu0 %v2205
    %3130 = vmatpush.bf16.msra.mxu0 %v2201
    %3131 = vmatpush.bf16.msra.mxu0 %v2197
    %3132 = vmatmul.bf16.gmra.mxu0 %v540
    %v3133 = vpop.f32.mrf.mxu0
    %v3134 = vadd.f32 %v3121, %v3133
    %v3135 = vpop.f32.mrf.mxu0
    %3136 = vdwg.mxu0
    %3137 = vmatpush.bf16.msra.mxu0 %v2257
    %3138 = vmatpush.bf16.msra.mxu0 %v2253
    %3139 = vmatpush.bf16.msra.mxu0 %v2249
    %3140 = vmatpush.bf16.msra.mxu0 %v2245
    %3141 = vmatpush.bf16.msra.mxu0 %v2241
    %3142 = vmatpush.bf16.msra.mxu0 %v2237
    %3143 = vmatpush.bf16.msra.mxu0 %v2233
    %3144 = vmatpush.bf16.msra.mxu0 %v2229
    %3145 = vmatmul.bf16.gmra.mxu0 %v541
    %v3146 = vpop.f32.mrf.mxu0
    %v3147 = vadd.f32 %v3134, %v3146
    %v3148 = vpop.f32.mrf.mxu0
    %3149 = vdwg.mxu0
    %3150 = vmatpush.bf16.msra.mxu0 %v2289
    %3151 = vmatpush.bf16.msra.mxu0 %v2285
    %3152 = vmatpush.bf16.msra.mxu0 %v2281
    %3153 = vmatpush.bf16.msra.mxu0 %v2277
    %3154 = vmatpush.bf16.msra.mxu0 %v2273
    %3155 = vmatpush.bf16.msra.mxu0 %v2269
    %3156 = vmatpush.bf16.msra.mxu0 %v2265
    %3157 = vmatpush.bf16.msra.mxu0 %v2261
    %3158 = vmatmul.bf16.gmra.mxu0 %v542
    %v3159 = vpop.f32.mrf.mxu0
    %v3160 = vadd.f32 %v3147, %v3159
    %v3161 = vpop.f32.mrf.mxu0
    %3162 = vdwg.mxu0
    %3163 = vmatpush.bf16.msra.mxu0 %v2321
    %3164 = vmatpush.bf16.msra.mxu0 %v2317
    %3165 = vmatpush.bf16.msra.mxu0 %v2313
    %3166 = vmatpush.bf16.msra.mxu0 %v2309
    %3167 = vmatpush.bf16.msra.mxu0 %v2305
    %3168 = vmatpush.bf16.msra.mxu0 %v2301
    %3169 = vmatpush.bf16.msra.mxu0 %v2297
    %3170 = vmatpush.bf16.msra.mxu0 %v2293
    %3171 = vmatmul.bf16.gmra.mxu0 %v543
    %v3172 = vpop.f32.mrf.mxu0
    %v3173 = vadd.f32 %v3160, %v3172
    %v3174 = vpop.f32.mrf.mxu0
    %3175 = vdwg.mxu0
    %3176 = vmatpush.bf16.msra.mxu0 %v2353
    %3177 = vmatpush.bf16.msra.mxu0 %v2349
    %3178 = vmatpush.bf16.msra.mxu0 %v2345
    %3179 = vmatpush.bf16.msra.mxu0 %v2341
    %3180 = vmatpush.bf16.msra.mxu0 %v2337
    %3181 = vmatpush.bf16.msra.mxu0 %v2333
    %3182 = vmatpush.bf16.msra.mxu0 %v2329
    %3183 = vmatpush.bf16.msra.mxu0 %v2325
    %3184 = vmatmul.bf16.gmra.mxu0 %v546
    %v3185 = vpop.f32.mrf.mxu0
    %v3186 = vadd.f32 %v3173, %v3185
    %v3187 = vpop.f32.mrf.mxu0
    %3188 = vdwg.mxu0
    %3189 = vmatpush.bf16.msra.mxu0 %v2385
    %3190 = vmatpush.bf16.msra.mxu0 %v2381
    %3191 = vmatpush.bf16.msra.mxu0 %v2377
    %3192 = vmatpush.bf16.msra.mxu0 %v2373
    %3193 = vmatpush.bf16.msra.mxu0 %v2369
    %3194 = vmatpush.bf16.msra.mxu0 %v2365
    %3195 = vmatpush.bf16.msra.mxu0 %v2361
    %3196 = vmatpush.bf16.msra.mxu0 %v2357
    %3197 = vmatmul.bf16.gmra.mxu0 %v547
    %v3198 = vpop.f32.mrf.mxu0
    %v3199 = vadd.f32 %v3186, %v3198
    %v3200 = vpop.f32.mrf.mxu0
    %3201 = vdwg.mxu0
    %3202 = vmatpush.bf16.msra.mxu0 %v2417
    %3203 = vmatpush.bf16.msra.mxu0 %v2413
    %3204 = vmatpush.bf16.msra.mxu0 %v2409
    %3205 = vmatpush.bf16.msra.mxu0 %v2405
    %3206 = vmatpush.bf16.msra.mxu0 %v2401
    %3207 = vmatpush.bf16.msra.mxu0 %v2397
    %3208 = vmatpush.bf16.msra.mxu0 %v2393
    %3209 = vmatpush.bf16.msra.mxu0 %v2389
    %3210 = vmatmul.bf16.gmra.mxu0 %v548
    %v3211 = vpop.f32.mrf.mxu0
    %v3212 = vadd.f32 %v3199, %v3211
    %v3213 = vpop.f32.mrf.mxu0
    %3214 = vdwg.mxu0
    %3215 = vmatpush.bf16.msra.mxu0 %v2449
    %3216 = vmatpush.bf16.msra.mxu0 %v2445
    %3217 = vmatpush.bf16.msra.mxu0 %v2441
    %3218 = vmatpush.bf16.msra.mxu0 %v2437
    %3219 = vmatpush.bf16.msra.mxu0 %v2433
    %3220 = vmatpush.bf16.msra.mxu0 %v2429
    %3221 = vmatpush.bf16.msra.mxu0 %v2425
    %3222 = vmatpush.bf16.msra.mxu0 %v2421
    %3223 = vmatmul.bf16.gmra.mxu0 %v549
    %v3224 = vpop.f32.mrf.mxu0
    %v3225 = vadd.f32 %v3212, %v3224
    %v3226 = vpop.f32.mrf.mxu0
    %3227 = vdwg.mxu0
    %3228 = vmatpush.bf16.msra.mxu0 %v2481
    %3229 = vmatpush.bf16.msra.mxu0 %v2477
    %3230 = vmatpush.bf16.msra.mxu0 %v2473
    %3231 = vmatpush.bf16.msra.mxu0 %v2469
    %3232 = vmatpush.bf16.msra.mxu0 %v2465
    %3233 = vmatpush.bf16.msra.mxu0 %v2461
    %3234 = vmatpush.bf16.msra.mxu0 %v2457
    %3235 = vmatpush.bf16.msra.mxu0 %v2453
    %3236 = vmatmul.bf16.gmra.mxu0 %v550
    %v3237 = vpop.f32.mrf.mxu0
    %v3238 = vadd.f32 %v3225, %v3237
    %v3239 = vpop.f32.mrf.mxu0
    %3240 = vdwg.mxu0
    %3241 = vmatpush.bf16.msra.mxu0 %v2513
    %3242 = vmatpush.bf16.msra.mxu0 %v2509
    %3243 = vmatpush.bf16.msra.mxu0 %v2505
    %3244 = vmatpush.bf16.msra.mxu0 %v2501
    %3245 = vmatpush.bf16.msra.mxu0 %v2497
    %3246 = vmatpush.bf16.msra.mxu0 %v2493
    %3247 = vmatpush.bf16.msra.mxu0 %v2489
    %3248 = vmatpush.bf16.msra.mxu0 %v2485
    %3249 = vmatmul.bf16.gmra.mxu0 %v551
    %v3250 = vpop.f32.mrf.mxu0
    %v3251 = vadd.f32 %v3238, %v3250
    %v3252 = vpop.f32.mrf.mxu0
    %3253 = vdwg.mxu0
    %3254 = vmatpush.bf16.msra.mxu0 %v2545
    %3255 = vmatpush.bf16.msra.mxu0 %v2541
    %3256 = vmatpush.bf16.msra.mxu0 %v2537
    %3257 = vmatpush.bf16.msra.mxu0 %v2533
    %3258 = vmatpush.bf16.msra.mxu0 %v2529
    %3259 = vmatpush.bf16.msra.mxu0 %v2525
    %3260 = vmatpush.bf16.msra.mxu0 %v2521
    %3261 = vmatpush.bf16.msra.mxu0 %v2517
    %3262 = vmatmul.bf16.gmra.mxu0 %v552
    %v3263 = vpop.f32.mrf.mxu0
    %v3264 = vadd.f32 %v3251, %v3263
    %v3265 = vpop.f32.mrf.mxu0
    %3266 = vdwg.mxu0
    %3267 = vmatpush.bf16.msra.mxu0 0
    %3268 = vmatpush.bf16.msra.mxu0 0
    %3269 = vmatpush.bf16.msra.mxu0 0
    %3270 = vmatpush.bf16.msra.mxu0 %v2565
    %3271 = vmatpush.bf16.msra.mxu0 %v2561
    %3272 = vmatpush.bf16.msra.mxu0 %v2557
    %3273 = vmatpush.bf16.msra.mxu0 %v2553
    %3274 = vmatpush.bf16.msra.mxu0 %v2549
    %3275 = vmatmul.bf16.gmra.mxu0 %v3070
    %v3276 = vpop.f32.mrf.mxu0
    %v3277 = vadd.f32 %v3264, %v3276
    %v3278 = vpop.f32.mrf.mxu0
    %3279 = vdwg.mxu0
    %3280 = vmatpush.bf16.msra.mxu0 %v2098
    %3281 = vmatpush.bf16.msra.mxu0 %v2094
    %3282 = vmatpush.bf16.msra.mxu0 %v2090
    %3283 = vmatpush.bf16.msra.mxu0 %v2086
    %3284 = vmatpush.bf16.msra.mxu0 %v2082
    %3285 = vmatpush.bf16.msra.mxu0 %v2078
    %3286 = vmatpush.bf16.msra.mxu0 %v2074
    %3287 = vmatpush.bf16.msra.mxu0 %v2070
    %3288 = vmatmul.bf16.gmra.mxu0 %v536
    %v3289 = vpop.f32.mrf.mxu0
    %v3290 = vadd.f32 %v527, %v3289
    %v3291 = vpop.f32.mrf.mxu0
    %3292 = vdwg.mxu0
    %3293 = vmatpush.bf16.msra.mxu0 %v2130
    %3294 = vmatpush.bf16.msra.mxu0 %v2126
    %3295 = vmatpush.bf16.msra.mxu0 %v2122
    %3296 = vmatpush.bf16.msra.mxu0 %v2118
    %3297 = vmatpush.bf16.msra.mxu0 %v2114
    %3298 = vmatpush.bf16.msra.mxu0 %v2110
    %3299 = vmatpush.bf16.msra.mxu0 %v2106
    %3300 = vmatpush.bf16.msra.mxu0 %v2102
    %3301 = vmatmul.bf16.gmra.mxu0 %v537
    %v3302 = vpop.f32.mrf.mxu0
    %v3303 = vadd.f32 %v3290, %v3302
    %v3304 = vpop.f32.mrf.mxu0
    %3305 = vdwg.mxu0
    %3306 = vmatpush.bf16.msra.mxu0 %v2162
    %3307 = vmatpush.bf16.msra.mxu0 %v2158
    %3308 = vmatpush.bf16.msra.mxu0 %v2154
    %3309 = vmatpush.bf16.msra.mxu0 %v2150
    %3310 = vmatpush.bf16.msra.mxu0 %v2146
    %3311 = vmatpush.bf16.msra.mxu0 %v2142
    %3312 = vmatpush.bf16.msra.mxu0 %v2138
    %3313 = vmatpush.bf16.msra.mxu0 %v2134
    %3314 = vmatmul.bf16.gmra.mxu0 %v538
    %v3315 = vpop.f32.mrf.mxu0
    %v3316 = vadd.f32 %v3303, %v3315
    %v3317 = vpop.f32.mrf.mxu0
    %3318 = vdwg.mxu0
    %3319 = vmatpush.bf16.msra.mxu0 %v2194
    %3320 = vmatpush.bf16.msra.mxu0 %v2190
    %3321 = vmatpush.bf16.msra.mxu0 %v2186
    %3322 = vmatpush.bf16.msra.mxu0 %v2182
    %3323 = vmatpush.bf16.msra.mxu0 %v2178
    %3324 = vmatpush.bf16.msra.mxu0 %v2174
    %3325 = vmatpush.bf16.msra.mxu0 %v2170
    %3326 = vmatpush.bf16.msra.mxu0 %v2166
    %3327 = vmatmul.bf16.gmra.mxu0 %v539
    %v3328 = vpop.f32.mrf.mxu0
    %v3329 = vadd.f32 %v3316, %v3328
    %v3330 = vpop.f32.mrf.mxu0
    %3331 = vdwg.mxu0
    %3332 = vmatpush.bf16.msra.mxu0 %v2226
    %3333 = vmatpush.bf16.msra.mxu0 %v2222
    %3334 = vmatpush.bf16.msra.mxu0 %v2218
    %3335 = vmatpush.bf16.msra.mxu0 %v2214
    %3336 = vmatpush.bf16.msra.mxu0 %v2210
    %3337 = vmatpush.bf16.msra.mxu0 %v2206
    %3338 = vmatpush.bf16.msra.mxu0 %v2202
    %3339 = vmatpush.bf16.msra.mxu0 %v2198
    %3340 = vmatmul.bf16.gmra.mxu0 %v540
    %v3341 = vpop.f32.mrf.mxu0
    %v3342 = vadd.f32 %v3329, %v3341
    %v3343 = vpop.f32.mrf.mxu0
    %3344 = vdwg.mxu0
    %3345 = vmatpush.bf16.msra.mxu0 %v2258
    %3346 = vmatpush.bf16.msra.mxu0 %v2254
    %3347 = vmatpush.bf16.msra.mxu0 %v2250
    %3348 = vmatpush.bf16.msra.mxu0 %v2246
    %3349 = vmatpush.bf16.msra.mxu0 %v2242
    %3350 = vmatpush.bf16.msra.mxu0 %v2238
    %3351 = vmatpush.bf16.msra.mxu0 %v2234
    %3352 = vmatpush.bf16.msra.mxu0 %v2230
    %3353 = vmatmul.bf16.gmra.mxu0 %v541
    %v3354 = vpop.f32.mrf.mxu0
    %v3355 = vadd.f32 %v3342, %v3354
    %v3356 = vpop.f32.mrf.mxu0
    %3357 = vdwg.mxu0
    %3358 = vmatpush.bf16.msra.mxu0 %v2290
    %3359 = vmatpush.bf16.msra.mxu0 %v2286
    %3360 = vmatpush.bf16.msra.mxu0 %v2282
    %3361 = vmatpush.bf16.msra.mxu0 %v2278
    %3362 = vmatpush.bf16.msra.mxu0 %v2274
    %3363 = vmatpush.bf16.msra.mxu0 %v2270
    %3364 = vmatpush.bf16.msra.mxu0 %v2266
    %3365 = vmatpush.bf16.msra.mxu0 %v2262
    %3366 = vmatmul.bf16.gmra.mxu0 %v542
    %v3367 = vpop.f32.mrf.mxu0
    %v3368 = vadd.f32 %v3355, %v3367
    %v3369 = vpop.f32.mrf.mxu0
    %3370 = vdwg.mxu0
    %3371 = vmatpush.bf16.msra.mxu0 %v2322
    %3372 = vmatpush.bf16.msra.mxu0 %v2318
    %3373 = vmatpush.bf16.msra.mxu0 %v2314
    %3374 = vmatpush.bf16.msra.mxu0 %v2310
    %3375 = vmatpush.bf16.msra.mxu0 %v2306
    %3376 = vmatpush.bf16.msra.mxu0 %v2302
    %3377 = vmatpush.bf16.msra.mxu0 %v2298
    %3378 = vmatpush.bf16.msra.mxu0 %v2294
    %3379 = vmatmul.bf16.gmra.mxu0 %v543
    %v3380 = vpop.f32.mrf.mxu0
    %v3381 = vadd.f32 %v3368, %v3380
    %v3382 = vpop.f32.mrf.mxu0
    %3383 = vdwg.mxu0
    %3384 = vmatpush.bf16.msra.mxu0 %v2354
    %3385 = vmatpush.bf16.msra.mxu0 %v2350
    %3386 = vmatpush.bf16.msra.mxu0 %v2346
    %3387 = vmatpush.bf16.msra.mxu0 %v2342
    %3388 = vmatpush.bf16.msra.mxu0 %v2338
    %3389 = vmatpush.bf16.msra.mxu0 %v2334
    %3390 = vmatpush.bf16.msra.mxu0 %v2330
    %3391 = vmatpush.bf16.msra.mxu0 %v2326
    %3392 = vmatmul.bf16.gmra.mxu0 %v546
    %v3393 = vpop.f32.mrf.mxu0
    %v3394 = vadd.f32 %v3381, %v3393
    %v3395 = vpop.f32.mrf.mxu0
    %3396 = vdwg.mxu0
    %3397 = vmatpush.bf16.msra.mxu0 %v2386
    %3398 = vmatpush.bf16.msra.mxu0 %v2382
    %3399 = vmatpush.bf16.msra.mxu0 %v2378
    %3400 = vmatpush.bf16.msra.mxu0 %v2374
    %3401 = vmatpush.bf16.msra.mxu0 %v2370
    %3402 = vmatpush.bf16.msra.mxu0 %v2366
    %3403 = vmatpush.bf16.msra.mxu0 %v2362
    %3404 = vmatpush.bf16.msra.mxu0 %v2358
    %3405 = vmatmul.bf16.gmra.mxu0 %v547
    %v3406 = vpop.f32.mrf.mxu0
    %v3407 = vadd.f32 %v3394, %v3406
    %v3408 = vpop.f32.mrf.mxu0
    %3409 = vdwg.mxu0
    %3410 = vmatpush.bf16.msra.mxu0 %v2418
    %3411 = vmatpush.bf16.msra.mxu0 %v2414
    %3412 = vmatpush.bf16.msra.mxu0 %v2410
    %3413 = vmatpush.bf16.msra.mxu0 %v2406
    %3414 = vmatpush.bf16.msra.mxu0 %v2402
    %3415 = vmatpush.bf16.msra.mxu0 %v2398
    %3416 = vmatpush.bf16.msra.mxu0 %v2394
    %3417 = vmatpush.bf16.msra.mxu0 %v2390
    %3418 = vmatmul.bf16.gmra.mxu0 %v548
    %v3419 = vpop.f32.mrf.mxu0
    %v3420 = vadd.f32 %v3407, %v3419
    %v3421 = vpop.f32.mrf.mxu0
    %3422 = vdwg.mxu0
    %3423 = vmatpush.bf16.msra.mxu0 %v2450
    %3424 = vmatpush.bf16.msra.mxu0 %v2446
    %3425 = vmatpush.bf16.msra.mxu0 %v2442
    %3426 = vmatpush.bf16.msra.mxu0 %v2438
    %3427 = vmatpush.bf16.msra.mxu0 %v2434
    %3428 = vmatpush.bf16.msra.mxu0 %v2430
    %3429 = vmatpush.bf16.msra.mxu0 %v2426
    %3430 = vmatpush.bf16.msra.mxu0 %v2422
    %3431 = vmatmul.bf16.gmra.mxu0 %v549
    %v3432 = vpop.f32.mrf.mxu0
    %v3433 = vadd.f32 %v3420, %v3432
    %v3434 = vpop.f32.mrf.mxu0
    %3435 = vdwg.mxu0
    %3436 = vmatpush.bf16.msra.mxu0 %v2482
    %3437 = vmatpush.bf16.msra.mxu0 %v2478
    %3438 = vmatpush.bf16.msra.mxu0 %v2474
    %3439 = vmatpush.bf16.msra.mxu0 %v2470
    %3440 = vmatpush.bf16.msra.mxu0 %v2466
    %3441 = vmatpush.bf16.msra.mxu0 %v2462
    %3442 = vmatpush.bf16.msra.mxu0 %v2458
    %3443 = vmatpush.bf16.msra.mxu0 %v2454
    %3444 = vmatmul.bf16.gmra.mxu0 %v550
    %v3445 = vpop.f32.mrf.mxu0
    %v3446 = vadd.f32 %v3433, %v3445
    %v3447 = vpop.f32.mrf.mxu0
    %3448 = vdwg.mxu0
    %3449 = vmatpush.bf16.msra.mxu0 %v2514
    %3450 = vmatpush.bf16.msra.mxu0 %v2510
    %3451 = vmatpush.bf16.msra.mxu0 %v2506
    %3452 = vmatpush.bf16.msra.mxu0 %v2502
    %3453 = vmatpush.bf16.msra.mxu0 %v2498
    %3454 = vmatpush.bf16.msra.mxu0 %v2494
    %3455 = vmatpush.bf16.msra.mxu0 %v2490
    %3456 = vmatpush.bf16.msra.mxu0 %v2486
    %3457 = vmatmul.bf16.gmra.mxu0 %v551
    %v3458 = vpop.f32.mrf.mxu0
    %v3459 = vadd.f32 %v3446, %v3458
    %v3460 = vpop.f32.mrf.mxu0
    %3461 = vdwg.mxu0
    %3462 = vmatpush.bf16.msra.mxu0 %v2546
    %3463 = vmatpush.bf16.msra.mxu0 %v2542
    %3464 = vmatpush.bf16.msra.mxu0 %v2538
    %3465 = vmatpush.bf16.msra.mxu0 %v2534
    %3466 = vmatpush.bf16.msra.mxu0 %v2530
    %3467 = vmatpush.bf16.msra.mxu0 %v2526
    %3468 = vmatpush.bf16.msra.mxu0 %v2522
    %3469 = vmatpush.bf16.msra.mxu0 %v2518
    %3470 = vmatmul.bf16.gmra.mxu0 %v552
    %v3471 = vpop.f32.mrf.mxu0
    %v3472 = vadd.f32 %v3459, %v3471
    %v3473 = vpop.f32.mrf.mxu0
    %3474 = vdwg.mxu0
    %3475 = vmatpush.bf16.msra.mxu0 0
    %3476 = vmatpush.bf16.msra.mxu0 0
    %3477 = vmatpush.bf16.msra.mxu0 0
    %3478 = vmatpush.bf16.msra.mxu0 %v2566
    %3479 = vmatpush.bf16.msra.mxu0 %v2562
    %3480 = vmatpush.bf16.msra.mxu0 %v2558
    %3481 = vmatpush.bf16.msra.mxu0 %v2554
    %3482 = vmatpush.bf16.msra.mxu0 %v2550
    %3483 = vmatmul.bf16.gmra.mxu0 %v3070
    %v3484 = vpop.f32.mrf.mxu0
    %v3485 = vadd.f32 %v3472, %v3484
    %v3486 = vpop.f32.mrf.mxu0
    %3487 = vdwg.mxu0
    %3488 = vmatpush.bf16.msra.mxu0 %v2099
    %3489 = vmatpush.bf16.msra.mxu0 %v2095
    %3490 = vmatpush.bf16.msra.mxu0 %v2091
    %3491 = vmatpush.bf16.msra.mxu0 %v2087
    %3492 = vmatpush.bf16.msra.mxu0 %v2083
    %3493 = vmatpush.bf16.msra.mxu0 %v2079
    %3494 = vmatpush.bf16.msra.mxu0 %v2075
    %3495 = vmatpush.bf16.msra.mxu0 %v2071
    %3496 = vmatmul.bf16.gmra.mxu0 %v536
    %v3497 = vpop.f32.mrf.mxu0
    %v3498 = vadd.f32 %v528, %v3497
    %v3499 = vpop.f32.mrf.mxu0
    %3500 = vdwg.mxu0
    %3501 = vmatpush.bf16.msra.mxu0 %v2131
    %3502 = vmatpush.bf16.msra.mxu0 %v2127
    %3503 = vmatpush.bf16.msra.mxu0 %v2123
    %3504 = vmatpush.bf16.msra.mxu0 %v2119
    %3505 = vmatpush.bf16.msra.mxu0 %v2115
    %3506 = vmatpush.bf16.msra.mxu0 %v2111
    %3507 = vmatpush.bf16.msra.mxu0 %v2107
    %3508 = vmatpush.bf16.msra.mxu0 %v2103
    %3509 = vmatmul.bf16.gmra.mxu0 %v537
    %v3510 = vpop.f32.mrf.mxu0
    %v3511 = vadd.f32 %v3498, %v3510
    %v3512 = vpop.f32.mrf.mxu0
    %3513 = vdwg.mxu0
    %3514 = vmatpush.bf16.msra.mxu0 %v2163
    %3515 = vmatpush.bf16.msra.mxu0 %v2159
    %3516 = vmatpush.bf16.msra.mxu0 %v2155
    %3517 = vmatpush.bf16.msra.mxu0 %v2151
    %3518 = vmatpush.bf16.msra.mxu0 %v2147
    %3519 = vmatpush.bf16.msra.mxu0 %v2143
    %3520 = vmatpush.bf16.msra.mxu0 %v2139
    %3521 = vmatpush.bf16.msra.mxu0 %v2135
    %3522 = vmatmul.bf16.gmra.mxu0 %v538
    %v3523 = vpop.f32.mrf.mxu0
    %v3524 = vadd.f32 %v3511, %v3523
    %v3525 = vpop.f32.mrf.mxu0
    %3526 = vdwg.mxu0
    %3527 = vmatpush.bf16.msra.mxu0 %v2195
    %3528 = vmatpush.bf16.msra.mxu0 %v2191
    %3529 = vmatpush.bf16.msra.mxu0 %v2187
    %3530 = vmatpush.bf16.msra.mxu0 %v2183
    %3531 = vmatpush.bf16.msra.mxu0 %v2179
    %3532 = vmatpush.bf16.msra.mxu0 %v2175
    %3533 = vmatpush.bf16.msra.mxu0 %v2171
    %3534 = vmatpush.bf16.msra.mxu0 %v2167
    %3535 = vmatmul.bf16.gmra.mxu0 %v539
    %v3536 = vpop.f32.mrf.mxu0
    %v3537 = vadd.f32 %v3524, %v3536
    %v3538 = vpop.f32.mrf.mxu0
    %3539 = vdwg.mxu0
    %3540 = vmatpush.bf16.msra.mxu0 %v2227
    %3541 = vmatpush.bf16.msra.mxu0 %v2223
    %3542 = vmatpush.bf16.msra.mxu0 %v2219
    %3543 = vmatpush.bf16.msra.mxu0 %v2215
    %3544 = vmatpush.bf16.msra.mxu0 %v2211
    %3545 = vmatpush.bf16.msra.mxu0 %v2207
    %3546 = vmatpush.bf16.msra.mxu0 %v2203
    %3547 = vmatpush.bf16.msra.mxu0 %v2199
    %3548 = vmatmul.bf16.gmra.mxu0 %v540
    %v3549 = vpop.f32.mrf.mxu0
    %v3550 = vadd.f32 %v3537, %v3549
    %v3551 = vpop.f32.mrf.mxu0
    %3552 = vdwg.mxu0
    %3553 = vmatpush.bf16.msra.mxu0 %v2259
    %3554 = vmatpush.bf16.msra.mxu0 %v2255
    %3555 = vmatpush.bf16.msra.mxu0 %v2251
    %3556 = vmatpush.bf16.msra.mxu0 %v2247
    %3557 = vmatpush.bf16.msra.mxu0 %v2243
    %3558 = vmatpush.bf16.msra.mxu0 %v2239
    %3559 = vmatpush.bf16.msra.mxu0 %v2235
    %3560 = vmatpush.bf16.msra.mxu0 %v2231
    %3561 = vmatmul.bf16.gmra.mxu0 %v541
    %v3562 = vpop.f32.mrf.mxu0
    %v3563 = vadd.f32 %v3550, %v3562
    %v3564 = vpop.f32.mrf.mxu0
    %3565 = vdwg.mxu0
    %3566 = vmatpush.bf16.msra.mxu0 %v2291
    %3567 = vmatpush.bf16.msra.mxu0 %v2287
    %3568 = vmatpush.bf16.msra.mxu0 %v2283
    %3569 = vmatpush.bf16.msra.mxu0 %v2279
    %3570 = vmatpush.bf16.msra.mxu0 %v2275
    %3571 = vmatpush.bf16.msra.mxu0 %v2271
    %3572 = vmatpush.bf16.msra.mxu0 %v2267
    %3573 = vmatpush.bf16.msra.mxu0 %v2263
    %3574 = vmatmul.bf16.gmra.mxu0 %v542
    %v3575 = vpop.f32.mrf.mxu0
    %v3576 = vadd.f32 %v3563, %v3575
    %v3577 = vpop.f32.mrf.mxu0
    %3578 = vdwg.mxu0
    %3579 = vmatpush.bf16.msra.mxu0 %v2323
    %3580 = vmatpush.bf16.msra.mxu0 %v2319
    %3581 = vmatpush.bf16.msra.mxu0 %v2315
    %3582 = vmatpush.bf16.msra.mxu0 %v2311
    %3583 = vmatpush.bf16.msra.mxu0 %v2307
    %3584 = vmatpush.bf16.msra.mxu0 %v2303
    %3585 = vmatpush.bf16.msra.mxu0 %v2299
    %3586 = vmatpush.bf16.msra.mxu0 %v2295
    %3587 = vmatmul.bf16.gmra.mxu0 %v543
    %v3588 = vpop.f32.mrf.mxu0
    %v3589 = vadd.f32 %v3576, %v3588
    %v3590 = vpop.f32.mrf.mxu0
    %3591 = vdwg.mxu0
    %3592 = vmatpush.bf16.msra.mxu0 %v2355
    %3593 = vmatpush.bf16.msra.mxu0 %v2351
    %3594 = vmatpush.bf16.msra.mxu0 %v2347
    %3595 = vmatpush.bf16.msra.mxu0 %v2343
    %3596 = vmatpush.bf16.msra.mxu0 %v2339
    %3597 = vmatpush.bf16.msra.mxu0 %v2335
    %3598 = vmatpush.bf16.msra.mxu0 %v2331
    %3599 = vmatpush.bf16.msra.mxu0 %v2327
    %3600 = vmatmul.bf16.gmra.mxu0 %v546
    %v3601 = vpop.f32.mrf.mxu0
    %v3602 = vadd.f32 %v3589, %v3601
    %v3603 = vpop.f32.mrf.mxu0
    %3604 = vdwg.mxu0
    %3605 = vmatpush.bf16.msra.mxu0 %v2387
    %3606 = vmatpush.bf16.msra.mxu0 %v2383
    %3607 = vmatpush.bf16.msra.mxu0 %v2379
    %3608 = vmatpush.bf16.msra.mxu0 %v2375
    %3609 = vmatpush.bf16.msra.mxu0 %v2371
    %3610 = vmatpush.bf16.msra.mxu0 %v2367
    %3611 = vmatpush.bf16.msra.mxu0 %v2363
    %3612 = vmatpush.bf16.msra.mxu0 %v2359
    %3613 = vmatmul.bf16.gmra.mxu0 %v547
    %v3614 = vpop.f32.mrf.mxu0
    %v3615 = vadd.f32 %v3602, %v3614
    %v3616 = vpop.f32.mrf.mxu0
    %3617 = vdwg.mxu0
    %3618 = vmatpush.bf16.msra.mxu0 %v2419
    %3619 = vmatpush.bf16.msra.mxu0 %v2415
    %3620 = vmatpush.bf16.msra.mxu0 %v2411
    %3621 = vmatpush.bf16.msra.mxu0 %v2407
    %3622 = vmatpush.bf16.msra.mxu0 %v2403
    %3623 = vmatpush.bf16.msra.mxu0 %v2399
    %3624 = vmatpush.bf16.msra.mxu0 %v2395
    %3625 = vmatpush.bf16.msra.mxu0 %v2391
    %3626 = vmatmul.bf16.gmra.mxu0 %v548
    %v3627 = vpop.f32.mrf.mxu0
    %v3628 = vadd.f32 %v3615, %v3627
    %v3629 = vpop.f32.mrf.mxu0
    %3630 = vdwg.mxu0
    %3631 = vmatpush.bf16.msra.mxu0 %v2451
    %3632 = vmatpush.bf16.msra.mxu0 %v2447
    %3633 = vmatpush.bf16.msra.mxu0 %v2443
    %3634 = vmatpush.bf16.msra.mxu0 %v2439
    %3635 = vmatpush.bf16.msra.mxu0 %v2435
    %3636 = vmatpush.bf16.msra.mxu0 %v2431
    %3637 = vmatpush.bf16.msra.mxu0 %v2427
    %3638 = vmatpush.bf16.msra.mxu0 %v2423
    %3639 = vmatmul.bf16.gmra.mxu0 %v549
    %v3640 = vpop.f32.mrf.mxu0
    %v3641 = vadd.f32 %v3628, %v3640
    %v3642 = vpop.f32.mrf.mxu0
    %3643 = vdwg.mxu0
    %3644 = vmatpush.bf16.msra.mxu0 %v2483
    %3645 = vmatpush.bf16.msra.mxu0 %v2479
    %3646 = vmatpush.bf16.msra.mxu0 %v2475
    %3647 = vmatpush.bf16.msra.mxu0 %v2471
    %3648 = vmatpush.bf16.msra.mxu0 %v2467
    %3649 = vmatpush.bf16.msra.mxu0 %v2463
    %3650 = vmatpush.bf16.msra.mxu0 %v2459
    %3651 = vmatpush.bf16.msra.mxu0 %v2455
    %3652 = vmatmul.bf16.gmra.mxu0 %v550
    %v3653 = vpop.f32.mrf.mxu0
    %v3654 = vadd.f32 %v3641, %v3653
    %v3655 = vpop.f32.mrf.mxu0
    %3656 = vdwg.mxu0
    %3657 = vmatpush.bf16.msra.mxu0 %v2515
    %3658 = vmatpush.bf16.msra.mxu0 %v2511
    %3659 = vmatpush.bf16.msra.mxu0 %v2507
    %3660 = vmatpush.bf16.msra.mxu0 %v2503
    %3661 = vmatpush.bf16.msra.mxu0 %v2499
    %3662 = vmatpush.bf16.msra.mxu0 %v2495
    %3663 = vmatpush.bf16.msra.mxu0 %v2491
    %3664 = vmatpush.bf16.msra.mxu0 %v2487
    %3665 = vmatmul.bf16.gmra.mxu0 %v551
    %v3666 = vpop.f32.mrf.mxu0
    %v3667 = vadd.f32 %v3654, %v3666
    %v3668 = vpop.f32.mrf.mxu0
    %3669 = vdwg.mxu0
    %3670 = vmatpush.bf16.msra.mxu0 %v2547
    %3671 = vmatpush.bf16.msra.mxu0 %v2543
    %3672 = vmatpush.bf16.msra.mxu0 %v2539
    %3673 = vmatpush.bf16.msra.mxu0 %v2535
    %3674 = vmatpush.bf16.msra.mxu0 %v2531
    %3675 = vmatpush.bf16.msra.mxu0 %v2527
    %3676 = vmatpush.bf16.msra.mxu0 %v2523
    %3677 = vmatpush.bf16.msra.mxu0 %v2519
    %3678 = vmatmul.bf16.gmra.mxu0 %v552
    %v3679 = vpop.f32.mrf.mxu0
    %v3680 = vadd.f32 %v3667, %v3679
    %v3681 = vpop.f32.mrf.mxu0
    %3682 = vdwg.mxu0
    %3683 = vmatpush.bf16.msra.mxu0 0
    %3684 = vmatpush.bf16.msra.mxu0 0
    %3685 = vmatpush.bf16.msra.mxu0 0
    %3686 = vmatpush.bf16.msra.mxu0 %v2567
    %3687 = vmatpush.bf16.msra.mxu0 %v2563
    %3688 = vmatpush.bf16.msra.mxu0 %v2559
    %3689 = vmatpush.bf16.msra.mxu0 %v2555
    %3690 = vmatpush.bf16.msra.mxu0 %v2551
    %3691 = vmatmul.bf16.gmra.mxu0 %v3070
    %v3692 = vpop.f32.mrf.mxu0
    %v3693 = vadd.f32 %v3680, %v3692
    %v3694 = vpop.f32.mrf.mxu0
    %3695 = vdwg.mxu0
    %3696 = vmatpush.bf16.msra.mxu0 %v2100
    %3697 = vmatpush.bf16.msra.mxu0 %v2096
    %3698 = vmatpush.bf16.msra.mxu0 %v2092
    %3699 = vmatpush.bf16.msra.mxu0 %v2088
    %3700 = vmatpush.bf16.msra.mxu0 %v2084
    %3701 = vmatpush.bf16.msra.mxu0 %v2080
    %3702 = vmatpush.bf16.msra.mxu0 %v2076
    %3703 = vmatpush.bf16.msra.mxu0 %v2072
    %3704 = vmatmul.bf16.gmra.mxu0 %v536
    %v3705 = vpop.f32.mrf.mxu0
    %v3706 = vadd.f32 %v529, %v3705
    %v3707 = vpop.f32.mrf.mxu0
    %3708 = vdwg.mxu0
    %3709 = vmatpush.bf16.msra.mxu0 %v2132
    %3710 = vmatpush.bf16.msra.mxu0 %v2128
    %3711 = vmatpush.bf16.msra.mxu0 %v2124
    %3712 = vmatpush.bf16.msra.mxu0 %v2120
    %3713 = vmatpush.bf16.msra.mxu0 %v2116
    %3714 = vmatpush.bf16.msra.mxu0 %v2112
    %3715 = vmatpush.bf16.msra.mxu0 %v2108
    %3716 = vmatpush.bf16.msra.mxu0 %v2104
    %3717 = vmatmul.bf16.gmra.mxu0 %v537
    %v3718 = vpop.f32.mrf.mxu0
    %v3719 = vadd.f32 %v3706, %v3718
    %v3720 = vpop.f32.mrf.mxu0
    %3721 = vdwg.mxu0
    %3722 = vmatpush.bf16.msra.mxu0 %v2164
    %3723 = vmatpush.bf16.msra.mxu0 %v2160
    %3724 = vmatpush.bf16.msra.mxu0 %v2156
    %3725 = vmatpush.bf16.msra.mxu0 %v2152
    %3726 = vmatpush.bf16.msra.mxu0 %v2148
    %3727 = vmatpush.bf16.msra.mxu0 %v2144
    %3728 = vmatpush.bf16.msra.mxu0 %v2140
    %3729 = vmatpush.bf16.msra.mxu0 %v2136
    %3730 = vmatmul.bf16.gmra.mxu0 %v538
    %v3731 = vpop.f32.mrf.mxu0
    %v3732 = vadd.f32 %v3719, %v3731
    %v3733 = vpop.f32.mrf.mxu0
    %3734 = vdwg.mxu0
    %3735 = vmatpush.bf16.msra.mxu0 %v2196
    %3736 = vmatpush.bf16.msra.mxu0 %v2192
    %3737 = vmatpush.bf16.msra.mxu0 %v2188
    %3738 = vmatpush.bf16.msra.mxu0 %v2184
    %3739 = vmatpush.bf16.msra.mxu0 %v2180
    %3740 = vmatpush.bf16.msra.mxu0 %v2176
    %3741 = vmatpush.bf16.msra.mxu0 %v2172
    %3742 = vmatpush.bf16.msra.mxu0 %v2168
    %3743 = vmatmul.bf16.gmra.mxu0 %v539
    %v3744 = vpop.f32.mrf.mxu0
    %v3745 = vadd.f32 %v3732, %v3744
    %v3746 = vpop.f32.mrf.mxu0
    %3747 = vdwg.mxu0
    %3748 = vmatpush.bf16.msra.mxu0 %v2228
    %3749 = vmatpush.bf16.msra.mxu0 %v2224
    %3750 = vmatpush.bf16.msra.mxu0 %v2220
    %3751 = vmatpush.bf16.msra.mxu0 %v2216
    %3752 = vmatpush.bf16.msra.mxu0 %v2212
    %3753 = vmatpush.bf16.msra.mxu0 %v2208
    %3754 = vmatpush.bf16.msra.mxu0 %v2204
    %3755 = vmatpush.bf16.msra.mxu0 %v2200
    %3756 = vmatmul.bf16.gmra.mxu0 %v540
    %v3757 = vpop.f32.mrf.mxu0
    %v3758 = vadd.f32 %v3745, %v3757
    %v3759 = vpop.f32.mrf.mxu0
    %3760 = vdwg.mxu0
    %3761 = vmatpush.bf16.msra.mxu0 %v2260
    %3762 = vmatpush.bf16.msra.mxu0 %v2256
    %3763 = vmatpush.bf16.msra.mxu0 %v2252
    %3764 = vmatpush.bf16.msra.mxu0 %v2248
    %3765 = vmatpush.bf16.msra.mxu0 %v2244
    %3766 = vmatpush.bf16.msra.mxu0 %v2240
    %3767 = vmatpush.bf16.msra.mxu0 %v2236
    %3768 = vmatpush.bf16.msra.mxu0 %v2232
    %3769 = vmatmul.bf16.gmra.mxu0 %v541
    %v3770 = vpop.f32.mrf.mxu0
    %v3771 = vadd.f32 %v3758, %v3770
    %v3772 = vpop.f32.mrf.mxu0
    %3773 = vdwg.mxu0
    %3774 = vmatpush.bf16.msra.mxu0 %v2292
    %3775 = vmatpush.bf16.msra.mxu0 %v2288
    %3776 = vmatpush.bf16.msra.mxu0 %v2284
    %3777 = vmatpush.bf16.msra.mxu0 %v2280
    %3778 = vmatpush.bf16.msra.mxu0 %v2276
    %3779 = vmatpush.bf16.msra.mxu0 %v2272
    %3780 = vmatpush.bf16.msra.mxu0 %v2268
    %3781 = vmatpush.bf16.msra.mxu0 %v2264
    %3782 = vmatmul.bf16.gmra.mxu0 %v542
    %v3783 = vpop.f32.mrf.mxu0
    %v3784 = vadd.f32 %v3771, %v3783
    %v3785 = vpop.f32.mrf.mxu0
    %3786 = vdwg.mxu0
    %3787 = vmatpush.bf16.msra.mxu0 %v2324
    %3788 = vmatpush.bf16.msra.mxu0 %v2320
    %3789 = vmatpush.bf16.msra.mxu0 %v2316
    %3790 = vmatpush.bf16.msra.mxu0 %v2312
    %3791 = vmatpush.bf16.msra.mxu0 %v2308
    %3792 = vmatpush.bf16.msra.mxu0 %v2304
    %3793 = vmatpush.bf16.msra.mxu0 %v2300
    %3794 = vmatpush.bf16.msra.mxu0 %v2296
    %3795 = vmatmul.bf16.gmra.mxu0 %v543
    %v3796 = vpop.f32.mrf.mxu0
    %v3797 = vadd.f32 %v3784, %v3796
    %v3798 = vpop.f32.mrf.mxu0
    %3799 = vdwg.mxu0
    %3800 = vmatpush.bf16.msra.mxu0 %v2356
    %3801 = vmatpush.bf16.msra.mxu0 %v2352
    %3802 = vmatpush.bf16.msra.mxu0 %v2348
    %3803 = vmatpush.bf16.msra.mxu0 %v2344
    %3804 = vmatpush.bf16.msra.mxu0 %v2340
    %3805 = vmatpush.bf16.msra.mxu0 %v2336
    %3806 = vmatpush.bf16.msra.mxu0 %v2332
    %3807 = vmatpush.bf16.msra.mxu0 %v2328
    %3808 = vmatmul.bf16.gmra.mxu0 %v546
    %v3809 = vpop.f32.mrf.mxu0
    %v3810 = vadd.f32 %v3797, %v3809
    %v3811 = vpop.f32.mrf.mxu0
    %3812 = vdwg.mxu0
    %3813 = vmatpush.bf16.msra.mxu0 %v2388
    %3814 = vmatpush.bf16.msra.mxu0 %v2384
    %3815 = vmatpush.bf16.msra.mxu0 %v2380
    %3816 = vmatpush.bf16.msra.mxu0 %v2376
    %3817 = vmatpush.bf16.msra.mxu0 %v2372
    %3818 = vmatpush.bf16.msra.mxu0 %v2368
    %3819 = vmatpush.bf16.msra.mxu0 %v2364
    %3820 = vmatpush.bf16.msra.mxu0 %v2360
    %3821 = vmatmul.bf16.gmra.mxu0 %v547
    %v3822 = vpop.f32.mrf.mxu0
    %v3823 = vadd.f32 %v3810, %v3822
    %v3824 = vpop.f32.mrf.mxu0
    %3825 = vdwg.mxu0
    %3826 = vmatpush.bf16.msra.mxu0 %v2420
    %3827 = vmatpush.bf16.msra.mxu0 %v2416
    %3828 = vmatpush.bf16.msra.mxu0 %v2412
    %3829 = vmatpush.bf16.msra.mxu0 %v2408
    %3830 = vmatpush.bf16.msra.mxu0 %v2404
    %3831 = vmatpush.bf16.msra.mxu0 %v2400
    %3832 = vmatpush.bf16.msra.mxu0 %v2396
    %3833 = vmatpush.bf16.msra.mxu0 %v2392
    %3834 = vmatmul.bf16.gmra.mxu0 %v548
    %v3835 = vpop.f32.mrf.mxu0
    %v3836 = vadd.f32 %v3823, %v3835
    %v3837 = vpop.f32.mrf.mxu0
    %3838 = vdwg.mxu0
    %3839 = vmatpush.bf16.msra.mxu0 %v2452
    %3840 = vmatpush.bf16.msra.mxu0 %v2448
    %3841 = vmatpush.bf16.msra.mxu0 %v2444
    %3842 = vmatpush.bf16.msra.mxu0 %v2440
    %3843 = vmatpush.bf16.msra.mxu0 %v2436
    %3844 = vmatpush.bf16.msra.mxu0 %v2432
    %3845 = vmatpush.bf16.msra.mxu0 %v2428
    %3846 = vmatpush.bf16.msra.mxu0 %v2424
    %3847 = vmatmul.bf16.gmra.mxu0 %v549
    %v3848 = vpop.f32.mrf.mxu0
    %v3849 = vadd.f32 %v3836, %v3848
    %v3850 = vpop.f32.mrf.mxu0
    %3851 = vdwg.mxu0
    %3852 = vmatpush.bf16.msra.mxu0 %v2484
    %3853 = vmatpush.bf16.msra.mxu0 %v2480
    %3854 = vmatpush.bf16.msra.mxu0 %v2476
    %3855 = vmatpush.bf16.msra.mxu0 %v2472
    %3856 = vmatpush.bf16.msra.mxu0 %v2468
    %3857 = vmatpush.bf16.msra.mxu0 %v2464
    %3858 = vmatpush.bf16.msra.mxu0 %v2460
    %3859 = vmatpush.bf16.msra.mxu0 %v2456
    %3860 = vmatmul.bf16.gmra.mxu0 %v550
    %v3861 = vpop.f32.mrf.mxu0
    %v3862 = vadd.f32 %v3849, %v3861
    %v3863 = vpop.f32.mrf.mxu0
    %3864 = vdwg.mxu0
    %3865 = vmatpush.bf16.msra.mxu0 %v2516
    %3866 = vmatpush.bf16.msra.mxu0 %v2512
    %3867 = vmatpush.bf16.msra.mxu0 %v2508
    %3868 = vmatpush.bf16.msra.mxu0 %v2504
    %3869 = vmatpush.bf16.msra.mxu0 %v2500
    %3870 = vmatpush.bf16.msra.mxu0 %v2496
    %3871 = vmatpush.bf16.msra.mxu0 %v2492
    %3872 = vmatpush.bf16.msra.mxu0 %v2488
    %3873 = vmatmul.bf16.gmra.mxu0 %v551
    %v3874 = vpop.f32.mrf.mxu0
    %v3875 = vadd.f32 %v3862, %v3874
    %v3876 = vpop.f32.mrf.mxu0
    %3877 = vdwg.mxu0
    %3878 = vmatpush.bf16.msra.mxu0 %v2548
    %3879 = vmatpush.bf16.msra.mxu0 %v2544
    %3880 = vmatpush.bf16.msra.mxu0 %v2540
    %3881 = vmatpush.bf16.msra.mxu0 %v2536
    %3882 = vmatpush.bf16.msra.mxu0 %v2532
    %3883 = vmatpush.bf16.msra.mxu0 %v2528
    %3884 = vmatpush.bf16.msra.mxu0 %v2524
    %3885 = vmatpush.bf16.msra.mxu0 %v2520
    %3886 = vmatmul.bf16.gmra.mxu0 %v552
    %v3887 = vpop.f32.mrf.mxu0
    %v3888 = vadd.f32 %v3875, %v3887
    %v3889 = vpop.f32.mrf.mxu0
    %3890 = vdwg.mxu0
    %3891 = vmatpush.bf16.msra.mxu0 0
    %3892 = vmatpush.bf16.msra.mxu0 0
    %3893 = vmatpush.bf16.msra.mxu0 0
    %3894 = vmatpush.bf16.msra.mxu0 %v2568
    %3895 = vmatpush.bf16.msra.mxu0 %v2564
    %3896 = vmatpush.bf16.msra.mxu0 %v2560
    %3897 = vmatpush.bf16.msra.mxu0 %v2556
    %3898 = vmatpush.bf16.msra.mxu0 %v2552
    %3899 = vmatmul.bf16.gmra.mxu0 %v3070
    %v3900 = vpop.f32.mrf.mxu0
    %v3901 = vadd.f32 %v3888, %v3900
    %v3902 = vpop.f32.mrf.mxu0
    %3903 = vdwg.mxu0
    %v3904 = vmax.f32 %v3277, 0.0
    %v3905 = vmax.f32 %v3485, 0.0
    %v3906 = vmax.f32 %v3693, 0.0
    %v3907 = vmax.f32 %v3901, 0.0
    %v3908 = vpack.c.bf16 %v3904, %v3904
    %v3909 = vpack.c.bf16 %v3905, %v3905
    %v3910 = vpack.c.bf16 %v3906, %v3906
    %v3911 = vpack.c.bf16 %v3907, %v3907
    %v3912 = vld [vmem:[%s3] sm:$0xf]
    %v3913 = vld [vmem:[%s3 + $0x4] sm:$0xf]
    %v3914 = vld [vmem:[%s3 + $0x8] sm:$0xf]
    %v3915 = vld [vmem:[%s3 + $0xc] sm:$0xf]
    %v3916 = vld [vmem:[%s3 + $0x10] sm:$0xf]
    %v3917 = vld [vmem:[%s3 + $0x14] sm:$0xf]
    %v3918 = vld [vmem:[%s3 + $0x18] sm:$0xf]
    %v3919 = vld [vmem:[%s3 + $0x1c] sm:$0xf]
    %v3920 = vld [vmem:[%s3 + $0x20] sm:$0xf]
    %v3921 = vld [vmem:[%s3 + $0x24] sm:$0xf]
    %v3922 = vld [vmem:[%s3 + $0x28] sm:$0xf]
    %v3923 = vld [vmem:[%s3 + $0x2c] sm:$0xf]
    %v3924 = vld [vmem:[%s3 + $0x30] sm:$0xf]
    %v3925 = vld [vmem:[%s3 + $0x34] sm:$0xf]
    %v3926 = vld [vmem:[%s3 + $0x38] sm:$0xf]
    %v3927 = vld [vmem:[%s3 + $0x3c] sm:$0xf]
    %v3928 = vld [vmem:[%s3 + $0x40] sm:$0xf]
    %v3929 = vld [vmem:[%s3 + $0x44] sm:$0xf]
    %v3930 = vld [vmem:[%s3 + $0x48] sm:$0xf]
    %v3931 = vld [vmem:[%s3 + $0x4c] sm:$0xf]
    %v3932 = vld [vmem:[%s3 + $0x50] sm:$0xf]
    %v3933 = vld [vmem:[%s3 + $0x54] sm:$0xf]
    %v3934 = vld [vmem:[%s3 + $0x58] sm:$0xf]
    %v3935 = vld [vmem:[%s3 + $0x5c] sm:$0xf]
    %v3936 = vld [vmem:[%s3 + $0x60] sm:$0xf]
    %v3937 = vld [vmem:[%s3 + $0x64] sm:$0xf]
    %v3938 = vld [vmem:[%s3 + $0x68] sm:$0xf]
    %v3939 = vld [vmem:[%s3 + $0x6c] sm:$0xf]
    %v3940 = vld [vmem:[%s3 + $0x70] sm:$0xf]
    %v3941 = vld [vmem:[%s3 + $0x74] sm:$0xf]
    %v3942 = vld [vmem:[%s3 + $0x78] sm:$0xf]
    %v3943 = vld [vmem:[%s3 + $0x7c] sm:$0xf]
    %v3944 = vld [vmem:[%s3 + $0x80] sm:$0xf]
    %v3945 = vld [vmem:[%s3 + $0x84] sm:$0xf]
    %v3946 = vld [vmem:[%s3 + $0x88] sm:$0xf]
    %v3947 = vld [vmem:[%s3 + $0x8c] sm:$0xf]
    %v3948 = vld [vmem:[%s3 + $0x90] sm:$0xf]
    %v3949 = vld [vmem:[%s3 + $0x94] sm:$0xf]
    %v3950 = vld [vmem:[%s3 + $0x98] sm:$0xf]
    %v3951 = vld [vmem:[%s3 + $0x9c] sm:$0xf]
    %v3952 = vld [vmem:[%s3 + $0xa0] sm:$0xf]
    %v3953 = vld [vmem:[%s3 + $0xa4] sm:$0xf]
    %v3954 = vld [vmem:[%s3 + $0xa8] sm:$0xf]
    %v3955 = vld [vmem:[%s3 + $0xac] sm:$0xf]
    %v3956 = vld [vmem:[%s3 + $0xb0] sm:$0xf]
    %v3957 = vld [vmem:[%s3 + $0xb4] sm:$0xf]
    %v3958 = vld [vmem:[%s3 + $0xb8] sm:$0xf]
    %v3959 = vld [vmem:[%s3 + $0xbc] sm:$0xf]
    %v3960 = vld [vmem:[%s3 + $0xc0] sm:$0xf]
    %v3961 = vld [vmem:[%s3 + $0xc4] sm:$0xf]
    %v3962 = vld [vmem:[%s3 + $0xc8] sm:$0xf]
    %v3963 = vld [vmem:[%s3 + $0xcc] sm:$0xf]
    %v3964 = vld [vmem:[%s3 + $0xd0] sm:$0xf]
    %v3965 = vld [vmem:[%s3 + $0xd4] sm:$0xf]
    %v3966 = vld [vmem:[%s3 + $0xd8] sm:$0xf]
    %v3967 = vld [vmem:[%s3 + $0xdc] sm:$0xf]
    %v3968 = vld [vmem:[%s3 + $0xe0] sm:$0xf]
    %v3969 = vld [vmem:[%s3 + $0xe4] sm:$0xf]
    %v3970 = vld [vmem:[%s3 + $0xe8] sm:$0xf]
    %v3971 = vld [vmem:[%s3 + $0xec] sm:$0xf]
    %v3972 = vld [vmem:[%s3 + $0xf0] sm:$0xf]
    %v3973 = vld [vmem:[%s3 + $0xf4] sm:$0xf]
    %v3974 = vld [vmem:[%s3 + $0xf8] sm:$0x3]
    %v3975 = vld [vmem:[%s4] sm:$0x1]
    %v3977 = vperm.slane %v3975, 0
    %v4042 = vunpack.c.l.b16 %v3912
    %v4043 = vunpack.c.l.b16 %v3913
    %v4044 = vunpack.c.l.b16 %v3914
    %v4045 = vunpack.c.l.b16 %v3915
    %v4046 = vunpack.c.l.b16 %v3916
    %v4047 = vunpack.c.l.b16 %v3917
    %v4048 = vunpack.c.l.b16 %v3918
    %v4049 = vunpack.c.l.b16 %v3919
    %v4050 = vunpack.c.l.b16 %v3920
    %v4051 = vunpack.c.l.b16 %v3921
    %v4052 = vunpack.c.l.b16 %v3922
    %v4053 = vunpack.c.l.b16 %v3923
    %v4054 = vunpack.c.l.b16 %v3924
    %v4055 = vunpack.c.l.b16 %v3925
    %v4056 = vunpack.c.l.b16 %v3926
    %v4057 = vunpack.c.l.b16 %v3927
    %v4058 = vunpack.c.l.b16 %v3928
    %v4059 = vunpack.c.l.b16 %v3929
    %v4060 = vunpack.c.l.b16 %v3930
    %v4061 = vunpack.c.l.b16 %v3931
    %v4062 = vunpack.c.l.b16 %v3932
    %v4063 = vunpack.c.l.b16 %v3933
    %v4064 = vunpack.c.l.b16 %v3934
    %v4065 = vunpack.c.l.b16 %v3935
    %v4066 = vunpack.c.l.b16 %v3936
    %v4067 = vunpack.c.l.b16 %v3937
    %v4068 = vunpack.c.l.b16 %v3938
    %v4069 = vunpack.c.l.b16 %v3939
    %v4070 = vunpack.c.l.b16 %v3940
    %v4071 = vunpack.c.l.b16 %v3941
    %v4072 = vunpack.c.l.b16 %v3942
    %v4073 = vunpack.c.l.b16 %v3943
    %v4074 = vunpack.c.l.b16 %v3944
    %v4075 = vunpack.c.l.b16 %v3945
    %v4076 = vunpack.c.l.b16 %v3946
    %v4077 = vunpack.c.l.b16 %v3947
    %v4078 = vunpack.c.l.b16 %v3948
    %v4079 = vunpack.c.l.b16 %v3949
    %v4080 = vunpack.c.l.b16 %v3950
    %v4081 = vunpack.c.l.b16 %v3951
    %v4082 = vunpack.c.l.b16 %v3952
    %v4083 = vunpack.c.l.b16 %v3953
    %v4084 = vunpack.c.l.b16 %v3954
    %v4085 = vunpack.c.l.b16 %v3955
    %v4086 = vunpack.c.l.b16 %v3956
    %v4087 = vunpack.c.l.b16 %v3957
    %v4088 = vunpack.c.l.b16 %v3958
    %v4089 = vunpack.c.l.b16 %v3959
    %v4090 = vunpack.c.l.b16 %v3960
    %v4091 = vunpack.c.l.b16 %v3961
    %v4092 = vunpack.c.l.b16 %v3962
    %v4093 = vunpack.c.l.b16 %v3963
    %v4094 = vunpack.c.l.b16 %v3964
    %v4095 = vunpack.c.l.b16 %v3965
    %v4096 = vunpack.c.l.b16 %v3966
    %v4097 = vunpack.c.l.b16 %v3967
    %v4098 = vunpack.c.l.b16 %v3968
    %v4099 = vunpack.c.l.b16 %v3969
    %v4100 = vunpack.c.l.b16 %v3970
    %v4101 = vunpack.c.l.b16 %v3971
    %v4102 = vunpack.c.l.b16 %v3972
    %v4103 = vunpack.c.l.b16 %v3973
    %v4104 = vunpack.c.l.b16 %v3974
    %v4105 = vpack.c.b16 %v4043, %v4042
    %v4106 = vpack.c.b16 %v4045, %v4044
    %v4107 = vpack.c.b16 %v4047, %v4046
    %v4108 = vpack.c.b16 %v4049, %v4048
    %v4109 = vpack.c.b16 %v4051, %v4050
    %v4110 = vpack.c.b16 %v4053, %v4052
    %v4111 = vpack.c.b16 %v4055, %v4054
    %v4112 = vpack.c.b16 %v4057, %v4056
    %v4113 = vpack.c.b16 %v4059, %v4058
    %v4114 = vpack.c.b16 %v4061, %v4060
    %v4115 = vpack.c.b16 %v4063, %v4062
    %v4116 = vpack.c.b16 %v4065, %v4064
    %v4117 = vpack.c.b16 %v4067, %v4066
    %v4118 = vpack.c.b16 %v4069, %v4068
    %v4119 = vpack.c.b16 %v4071, %v4070
    %v4120 = vpack.c.b16 %v4073, %v4072
    %v4121 = vpack.c.b16 %v4075, %v4074
    %v4122 = vpack.c.b16 %v4077, %v4076
    %v4123 = vpack.c.b16 %v4079, %v4078
    %v4124 = vpack.c.b16 %v4081, %v4080
    %v4125 = vpack.c.b16 %v4083, %v4082
    %v4126 = vpack.c.b16 %v4085, %v4084
    %v4127 = vpack.c.b16 %v4087, %v4086
    %v4128 = vpack.c.b16 %v4089, %v4088
    %v4129 = vpack.c.b16 %v4091, %v4090
    %v4130 = vpack.c.b16 %v4093, %v4092
    %v4131 = vpack.c.b16 %v4095, %v4094
    %v4132 = vpack.c.b16 %v4097, %v4096
    %v4133 = vpack.c.b16 %v4099, %v4098
    %v4134 = vpack.c.b16 %v4101, %v4100
    %v4135 = vpack.c.b16 %v4103, %v4102
    %v4136 = vpack.c.b16 %v4104, %v4104
    %vm4168 = vcmask 949248
    %v4170 = vsel %vm4168, %v3911, 0
    %vm4172 = vcmask 1041408
    %v4174 = vsel %vm4172, %v4136, 0
    %4176 = vmatpush.bf16.msra.mxu0 %v4112
    %4177 = vmatpush.bf16.msra.mxu0 %v4111
    %4178 = vmatpush.bf16.msra.mxu0 %v4110
    %4179 = vmatpush.bf16.msra.mxu0 %v4109
    %4180 = vmatpush.bf16.msra.mxu0 %v4108
    %4181 = vmatpush.bf16.msra.mxu0 %v4107
    %4182 = vmatpush.bf16.msra.mxu0 %v4106
    %4183 = vmatpush.bf16.msra.mxu0 %v4105
    %4184 = vmatmul.bf16.gmra.mxu0 %v3908
    %v4185 = vpop.f32.mrf.mxu0
    %v4186 = vadd.f32 %v3977, %v4185
    %v4187 = vpop.f32.mrf.mxu0
    %4188 = vdwg.mxu0
    %4189 = vmatpush.bf16.msra.mxu0 %v4120
    %4190 = vmatpush.bf16.msra.mxu0 %v4119
    %4191 = vmatpush.bf16.msra.mxu0 %v4118
    %4192 = vmatpush.bf16.msra.mxu0 %v4117
    %4193 = vmatpush.bf16.msra.mxu0 %v4116
    %4194 = vmatpush.bf16.msra.mxu0 %v4115
    %4195 = vmatpush.bf16.msra.mxu0 %v4114
    %4196 = vmatpush.bf16.msra.mxu0 %v4113
    %4197 = vmatmul.bf16.gmra.mxu0 %v3909
    %v4198 = vpop.f32.mrf.mxu0
    %v4199 = vadd.f32 %v4186, %v4198
    %v4200 = vpop.f32.mrf.mxu0
    %4201 = vdwg.mxu0
    %4202 = vmatpush.bf16.msra.mxu0 %v4128
    %4203 = vmatpush.bf16.msra.mxu0 %v4127
    %4204 = vmatpush.bf16.msra.mxu0 %v4126
    %4205 = vmatpush.bf16.msra.mxu0 %v4125
    %4206 = vmatpush.bf16.msra.mxu0 %v4124
    %4207 = vmatpush.bf16.msra.mxu0 %v4123
    %4208 = vmatpush.bf16.msra.mxu0 %v4122
    %4209 = vmatpush.bf16.msra.mxu0 %v4121
    %4210 = vmatmul.bf16.gmra.mxu0 %v3910
    %v4211 = vpop.f32.mrf.mxu0
    %v4212 = vadd.f32 %v4199, %v4211
    %v4213 = vpop.f32.mrf.mxu0
    %4214 = vdwg.mxu0
    %4215 = vmatpush.bf16.msra.mxu0 %v4174
    %4216 = vmatpush.bf16.msra.mxu0 %v4135
    %4217 = vmatpush.bf16.msra.mxu0 %v4134
    %4218 = vmatpush.bf16.msra.mxu0 %v4133
    %4219 = vmatpush.bf16.msra.mxu0 %v4132
    %4220 = vmatpush.bf16.msra.mxu0 %v4131
    %4221 = vmatpush.bf16.msra.mxu0 %v4130
    %4222 = vmatpush.bf16.msra.mxu0 %v4129
    %4223 = vmatmul.bf16.gmra.mxu0 %v4170
    %v4224 = vpop.f32.mrf.mxu0
    %v4225 = vadd.f32 %v4212, %v4224
    %v4226 = vpop.f32.mrf.mxu0
    %4227 = vdwg.mxu0
    %vm4228 = vcmask 74752
    %v4229 = vsel %vm4228, %v4225, -inf
    %4230 = vmax.xlane.f32.xlu0 %v4229
    %v4231 = vpop.xlane.xlu0 %4230
    %v4232 = vsub.f32 %v4225, %v4231
    %v4233 = vmul.f32 %v4232, 1.442695
    %v4234 = vpow.pop %v4233
    %v4235 = vsel %vm4228, %v4234, 0.0
    %4236 = vadd.xlane.f32.xlu0 %v4235
    %v4237 = vpop.xlane.xlu0 %4236
    %v4238 = vlog2.pop %v4237
    %v4239 = vmul.f32 %v4238, 0.6931472
    %v4240 = vadd.f32 %v4231, %v4239
    %v4241 = vsub.f32 %v4225, %v4240
    %4242 = vst.msk [vmem:[#allocation2] sm:$0x3] %vm4228, %v4241
    // Predicated region
    $region22: #{digit_forward.5} parent=1 // pred_check
      _
    $region23: #{digit_forward.5} parent=1 // pred_check_branch
      %4244 = sbr.rel (0) target = $region25
    $region24: #{digit_forward.5} parent=1 // pred_region
      %4246 = vsyncadd [#allocation3], 0
      %s4248 = sshll.u32 [#allocation2], 4
      %s4249 = int_to_ptr.vmem [resolvable:$true] %s4248
      %s4250 = sshll.u32 %s5, 4
      %s4251 = int_to_ptr.hbm [resolvable:$true] %s4250
      %4253 = dma.vmem_to_hbm [thread:$0]  %s4249, 32, %s4251, [#allocation3]
    $region25: #{digit_forward.5} parent=1 // pred_fallthru
      _
    // Predicated region
    $region26: #{digit_forward.5} parent=1 // pred_check
      _
    $region27: #{digit_forward.5} parent=1 // pred_check_branch
      %4255 = sbr.rel (0) target = $region29
    $region28: #{digit_forward.5} parent=1 // pred_region
      %4257 = dma.done [#allocation3], 32
    $region29: #{digit_forward.5} parent=1 // pred_fallthru
      _
    %4258 = vsyncpa [#allocation3], 1

</llo_original>
